<compile_context>
chip_gen: v7x
topology: tpu7x:2x2x1
jax: 0.10.0
libtpu: 0.0.40
codegen_flags: <defaults>
</compile_context>

<pallas_src>
import math
import jax
import jax.numpy as jnp
from jax.experimental import pallas as pl
from jax.experimental.pallas import tpu as pltpu

# ---- model hyper-params (small, consistent with the module) ----
D_MODEL = 32
HEADS = 4
DK = D_MODEL // HEADS
FEED_DIM = 64
N_LAYER = 2
MAX_SEQ = 64
BATCH = 2
SEQ = 8
EPS = 1e-5  # PyTorch LayerNorm default


# ----------------------------- kernel helpers -----------------------------
def _layernorm(x, gamma, beta):
    mean = jnp.mean(x, axis=-1, keepdims=True)
    var = jnp.mean((x - mean) ** 2, axis=-1, keepdims=True)
    return (x - mean) * jax.lax.rsqrt(var + EPS) * gamma + beta


# ----------------------------- fused Pallas kernel -----------------------------
def encoder_kernel(x_ref, pe_ref, g0_ref, b0_ref,
                   wqkv_ref, bqkv_ref,
                   ga_ref, ba_ref,
                   w1_ref, b1_ref, w2_ref, b2_ref,
                   gf_ref, bf_ref,
                   o_ref):
    # x_ref : (B, S, D)    pe_ref : (S, D)    o_ref : (B*S, D)
    # wqkv  : (L, D, 3*D)  bqkv : (L, 1, 3*D)   [1/sqrt(dk) folded into the Q part]
    # ga/ba/gf/bf, b2 : (L, 1, D)   w1 : (L, D, F)   b1 : (L, 1, F)   w2 : (L, F, D)
    B, S, D = x_ref.shape
    BS = B * S

    # positional-encoding scale/add (PE broadcast over batch in-kernel) + Encoder.norm
    x = (x_ref[...] * math.sqrt(D_MODEL) + pe_ref[...][None]).reshape(BS, D)
    x = _layernorm(x, g0_ref[...], b0_ref[...])

    for l in range(N_LAYER):                                   # static unroll (N_LAYER == 2)
        # --- MultiHeadAttention (reference module has NO output projection) ---
        # ONE fused full-width QKV matmul per layer (96 output lanes).
        qkv = jnp.dot(x, wqkv_ref[l], preferred_element_type=jnp.float32) + bqkv_ref[l]

        head_outs = []
        for h in range(HEADS):                                 # static unroll; static lane slices
            qh = qkv[:, h * DK:(h + 1) * DK].reshape(B, S, DK)              # pre-scaled by 1/sqrt(dk)
            kh = qkv[:, D + h * DK:D + (h + 1) * DK].reshape(B, S, DK)
            vh = qkv[:, 2 * D + h * DK:2 * D + (h + 1) * DK].reshape(B, S, DK)
            s = jnp.einsum('bqd,bkd->bqk', qh, kh,
                           preferred_element_type=jnp.float32)              # scale already folded in
            s = s - jnp.max(s, axis=-1, keepdims=True)
            e = jnp.exp(s)
            p = e / jnp.sum(e, axis=-1, keepdims=True)                      # exact softmax denominator
            oh = jnp.einsum('bqk,bkd->bqd', p, vh,
                            preferred_element_type=jnp.float32)
            head_outs.append(oh.reshape(BS, DK))
        attn = jnp.concatenate(head_outs, axis=-1)             # (B*S, D)

        x1 = _layernorm(attn + x, ga_ref[l], ba_ref[l])

        # --- FeedForward ---
        h1 = jnp.dot(x1, w1_ref[l], preferred_element_type=jnp.float32) + b1_ref[l]
        # TODO(synk): nn.Dropout omitted (eval/inference semantics, identity)
        h1 = jnp.maximum(h1, 0.0)                              # ReLU
        y = jnp.dot(h1, w2_ref[l], preferred_element_type=jnp.float32) + b2_ref[l]
        x = _layernorm(y + x1, gf_ref[l], bf_ref[l])

    o_ref[...] = x                                             # single flat store


# ----------------------------- wrapper -----------------------------
@jax.jit
def encoder_forward(src, pe, enc_gamma, enc_beta, stk):
    B, S, D = src.shape
    out2 = pl.pallas_call(
        encoder_kernel,
        out_shape=jax.ShapeDtypeStruct((B * S, D), jnp.float32),
        # No grid / BlockSpecs: every array becomes a single VMEM-resident block.
        # At these shapes a batch/seq grid axis (for v7x's 2 TCs) is pure overhead;
        # it becomes worthwhile only once B*S is non-trivial.
        compiler_params=pltpu.CompilerParams(vmem_limit_bytes=32 * 1024 * 1024),
    )(src, pe[:S], enc_gamma, enc_beta,
      stk['wqkv'], stk['bqkv'],
      stk['ga'], stk['ba'],
      stk['w1'], stk['b1'], stk['w2'], stk['b2'],
      stk['gf'], stk['bf'])
    return out2.reshape(B, S, D)


# ----------------------------- parameter setup (glue) -----------------------------
def positional_encoding(seq_len, d_model):
    pos = jnp.arange(seq_len, dtype=jnp.float32)[:, None]            # (seq, 1)
    d = jnp.arange(d_model)[None, :]                                  # (1, d)
    phase = pos / jnp.power(10000.0, d.astype(jnp.float32) / d_model)
    return jnp.where(d % 2 == 0, jnp.sin(phase), jnp.cos(phase))      # (seq, d)


def init_params(key):
    layer_params = []
    for _ in range(N_LAYER):
        ks = jax.random.split(key, 11)
        key = ks[0]
        p = dict(
            wq=0.05 * jax.random.normal(ks[1], (D_MODEL, D_MODEL), jnp.float32),
            bq=0.05 * jax.random.normal(ks[2], (1, D_MODEL), jnp.float32),
            wk=0.05 * jax.random.normal(ks[3], (D_MODEL, D_MODEL), jnp.float32),
            bk=0.05 * jax.random.normal(ks[4], (1, D_MODEL), jnp.float32),
            wv=0.05 * jax.random.normal(ks[5], (D_MODEL, D_MODEL), jnp.float32),
            bv=0.05 * jax.random.normal(ks[6], (1, D_MODEL), jnp.float32),
            ga=jnp.ones((1, D_MODEL), jnp.float32),
            ba=jnp.zeros((1, D_MODEL), jnp.float32),
            w1=0.05 * jax.random.normal(ks[7], (D_MODEL, FEED_DIM), jnp.float32),
            b1=0.05 * jax.random.normal(ks[8], (1, FEED_DIM), jnp.float32),
            w2=0.05 * jax.random.normal(ks[9], (FEED_DIM, D_MODEL), jnp.float32),
            b2=0.05 * jax.random.normal(ks[10], (1, D_MODEL), jnp.float32),
            gf=jnp.ones((1, D_MODEL), jnp.float32),
            bf=jnp.zeros((1, D_MODEL), jnp.float32),
        )
        layer_params.append(p)
    enc_gamma = jnp.ones((1, D_MODEL), jnp.float32)
    enc_beta = jnp.zeros((1, D_MODEL), jnp.float32)
    return enc_gamma, enc_beta, layer_params, key


def stack_params(layer_params):
    """Stack per-layer weights with a leading layer axis.

    Q/K/V are fused into one (D, 3*D) weight per layer, and the 1/sqrt(dk)
    attention scale is folded into the Q columns (and Q bias) so the kernel
    never multiplies the score tensor.
    """
    scale = 1.0 / math.sqrt(DK)
    wqkv = [jnp.concatenate([p['wq'] * scale, p['wk'], p['wv']], axis=1)   # (D, 3D)
            for p in layer_params]
    bqkv = [jnp.concatenate([p['bq'] * scale, p['bk'], p['bv']], axis=1)   # (1, 3D)
            for p in layer_params]
    stk = dict(
        wqkv=jnp.stack(wqkv),                                   # (L, D, 3D)
        bqkv=jnp.stack(bqkv),                                   # (L, 1, 3D)
        ga=jnp.stack([p['ga'] for p in layer_params]),          # (L, 1, D)
        ba=jnp.stack([p['ba'] for p in layer_params]),
        w1=jnp.stack([p['w1'] for p in layer_params]),          # (L, D, F)
        b1=jnp.stack([p['b1'] for p in layer_params]),          # (L, 1, F)
        w2=jnp.stack([p['w2'] for p in layer_params]),          # (L, F, D)
        b2=jnp.stack([p['b2'] for p in layer_params]),          # (L, 1, D)
        gf=jnp.stack([p['gf'] for p in layer_params]),
        bf=jnp.stack([p['bf'] for p in layer_params]),
    )
    return stk


# ----------------------------- pure-JAX reference -----------------------------
def _ln_ref(x, g, b):
    m = jnp.mean(x, axis=-1, keepdims=True)
    v = jnp.mean((x - m) ** 2, axis=-1, keepdims=True)
    return (x - m) / jnp.sqrt(v + EPS) * g + b


def ref_forward(src, pe, enc_gamma, enc_beta, layer_params):
    B, S, D = src.shape
    dk = D // HEADS
    x = _ln_ref(src * math.sqrt(D) + pe[:S][None], enc_gamma, enc_beta)
    for p in layer_params:
        q = x @ p['wq'] + p['bq']
        k = x @ p['wk'] + p['bk']
        v = x @ p['wv'] + p['bv']
        qh = q.reshape(B, S, HEADS, dk).transpose(0, 2, 1, 3)
        kh = k.reshape(B, S, HEADS, dk).transpose(0, 2, 1, 3)
        vh = v.reshape(B, S, HEADS, dk).transpose(0, 2, 1, 3)
        s = jnp.einsum('bhqd,bhkd->bhqk', qh, kh) / math.sqrt(dk)
        a = jax.nn.softmax(s, axis=-1)
        o = jnp.einsum('bhqk,bhkd->bhqd', a, vh)
        attn = o.transpose(0, 2, 1, 3).reshape(B, S, D)
        x1 = _ln_ref(attn + x, p['ga'], p['ba'])
        h1 = jnp.maximum(x1 @ p['w1'] + p['b1'], 0.0)
        y = h1 @ p['w2'] + p['b2']
        x = _ln_ref(y + x1, p['gf'], p['bf'])
    return x


# ----------------------------- main -----------------------------
if __name__ == "__main__":
    key = jax.random.PRNGKey(0)
    enc_gamma, enc_beta, layer_params, key = init_params(key)
    src = jax.random.normal(jax.random.split(key)[1], (BATCH, SEQ, D_MODEL), jnp.float32)
    pe = positional_encoding(MAX_SEQ, D_MODEL)                       # (MAX_SEQ, D)
    stk = stack_params(layer_params)

    out = encoder_forward(src, pe, enc_gamma, enc_beta, stk)
    out = jax.block_until_ready(out)

    ref = ref_forward(src, pe, enc_gamma, enc_beta, layer_params)
    assert out.shape == (BATCH, SEQ, D_MODEL)
    max_err = float(jnp.max(jnp.abs(out - ref)))
    # exact softmax denominator -> f32-level agreement with the reference
    assert jnp.allclose(out, ref, rtol=1e-4, atol=1e-4), f"max abs err {max_err}"
    print("KERNEL_OK")
</pallas_src>

<mosaic_0001>
module attributes {stable_mosaic.version = 11 : i64} {
  func.func @encoder_kernel(%arg0: memref<2x8x32xf32, #tpu.memory_space<vmem>>, %arg1: memref<8x32xf32, #tpu.memory_space<vmem>>, %arg2: memref<1x32xf32, #tpu.memory_space<vmem>>, %arg3: memref<1x32xf32, #tpu.memory_space<vmem>>, %arg4: memref<2x32x96xf32, #tpu.memory_space<vmem>>, %arg5: memref<2x1x96xf32, #tpu.memory_space<vmem>>, %arg6: memref<2x1x32xf32, #tpu.memory_space<vmem>>, %arg7: memref<2x1x32xf32, #tpu.memory_space<vmem>>, %arg8: memref<2x32x64xf32, #tpu.memory_space<vmem>>, %arg9: memref<2x1x64xf32, #tpu.memory_space<vmem>>, %arg10: memref<2x64x32xf32, #tpu.memory_space<vmem>>, %arg11: memref<2x1x32xf32, #tpu.memory_space<vmem>>, %arg12: memref<2x1x32xf32, #tpu.memory_space<vmem>>, %arg13: memref<2x1x32xf32, #tpu.memory_space<vmem>>, %arg14: memref<16x32xf32, #tpu.memory_space<vmem>>) attributes {dimension_semantics = [], scalar_prefetch = 0 : i64, scratch_operands = 0 : i64, tpu.core_type = #tpu.core_type<tc>} {
    %c0 = arith.constant 0 : index
    %c0_0 = arith.constant 0 : index
    %c0_1 = arith.constant 0 : index
    %0 = vector.load %arg0[%c0, %c0_0, %c0_1] : memref<2x8x32xf32, #tpu.memory_space<vmem>>, vector<2x8x32xf32>
    %cst = arith.constant 5.65685415 : f32
    %1 = vector.broadcast %cst : f32 to vector<2x8x32xf32>
    %2 = arith.mulf %0, %1 : vector<2x8x32xf32>
    %c0_2 = arith.constant 0 : index
    %c0_3 = arith.constant 0 : index
    %3 = vector.load %arg1[%c0_2, %c0_3] : memref<8x32xf32, #tpu.memory_space<vmem>>, vector<8x32xf32>
    %4 = vector.shape_cast %3 : vector<8x32xf32> to vector<1x8x32xf32>
    %5 = vector.broadcast %4 : vector<1x8x32xf32> to vector<2x8x32xf32>
    %6 = arith.addf %2, %5 : vector<2x8x32xf32>
    %7 = vector.shape_cast %6 : vector<2x8x32xf32> to vector<16x32xf32>
    %c0_4 = arith.constant 0 : index
    %c0_5 = arith.constant 0 : index
    %8 = vector.load %arg2[%c0_4, %c0_5] : memref<1x32xf32, #tpu.memory_space<vmem>>, vector<1x32xf32>
    %c0_6 = arith.constant 0 : index
    %c0_7 = arith.constant 0 : index
    %9 = vector.load %arg3[%c0_6, %c0_7] : memref<1x32xf32, #tpu.memory_space<vmem>>, vector<1x32xf32>
    %cst_8 = arith.constant dense<0.000000e+00> : vector<16xf32>
    %10 = vector.multi_reduction <add>, %7, %cst_8 [1] : vector<16x32xf32> to vector<16xf32>
    %11 = vector.shape_cast %10 : vector<16xf32> to vector<16x1xf32>
    %cst_9 = arith.constant 3.200000e+01 : f32
    %12 = vector.broadcast %cst_9 : f32 to vector<16x1xf32>
    %13 = arith.divf %11, %12 : vector<16x1xf32>
    %14 = vector.broadcast %13 : vector<16x1xf32> to vector<16x32xf32>
    %15 = arith.subf %7, %14 : vector<16x32xf32>
    %16 = arith.mulf %15, %15 : vector<16x32xf32>
    %cst_10 = arith.constant dense<0.000000e+00> : vector<16xf32>
    %17 = vector.multi_reduction <add>, %16, %cst_10 [1] : vector<16x32xf32> to vector<16xf32>
    %18 = vector.shape_cast %17 : vector<16xf32> to vector<16x1xf32>
    %cst_11 = arith.constant 3.200000e+01 : f32
    %19 = vector.broadcast %cst_11 : f32 to vector<16x1xf32>
    %20 = arith.divf %18, %19 : vector<16x1xf32>
    %21 = vector.broadcast %13 : vector<16x1xf32> to vector<16x32xf32>
    %22 = arith.subf %7, %21 : vector<16x32xf32>
    %cst_12 = arith.constant 9.99999974E-6 : f32
    %23 = vector.broadcast %cst_12 : f32 to vector<16x1xf32>
    %24 = arith.addf %20, %23 : vector<16x1xf32>
    %25 = math.rsqrt %24 : vector<16x1xf32>
    %26 = vector.broadcast %25 : vector<16x1xf32> to vector<16x32xf32>
    %27 = arith.mulf %22, %26 : vector<16x32xf32>
    %28 = vector.broadcast %8 : vector<1x32xf32> to vector<16x32xf32>
    %29 = arith.mulf %27, %28 : vector<16x32xf32>
    %30 = vector.broadcast %9 : vector<1x32xf32> to vector<16x32xf32>
    %31 = arith.addf %29, %30 : vector<16x32xf32>
    %c0_13 = arith.constant 0 : index
    %c0_14 = arith.constant 0 : index
    %c0_15 = arith.constant 0 : index
    %32 = vector.load %arg4[%c0_13, %c0_14, %c0_15] : memref<2x32x96xf32, #tpu.memory_space<vmem>>, vector<1x32x96xf32>
    %33 = vector.shape_cast %32 : vector<1x32x96xf32> to vector<32x96xf32>
    %cst_16 = arith.constant dense<0.000000e+00> : vector<16x96xf32>
    %34 = tpu.matmul %31, %33, %cst_16 {dimension_numbers = #tpu.dot_dimension_numbers<[1], [0], [0], [1], [0, 0, 1, 1], [], []>} : vector<16x32xf32>, vector<32x96xf32>, vector<16x96xf32> -> vector<16x96xf32>
    %c0_17 = arith.constant 0 : index
    %c0_18 = arith.constant 0 : index
    %c0_19 = arith.constant 0 : index
    %35 = vector.load %arg5[%c0_17, %c0_18, %c0_19] : memref<2x1x96xf32, #tpu.memory_space<vmem>>, vector<1x1x96xf32>
    %36 = vector.shape_cast %35 : vector<1x1x96xf32> to vector<1x96xf32>
    %37 = vector.broadcast %36 : vector<1x96xf32> to vector<16x96xf32>
    %38 = arith.addf %34, %37 : vector<16x96xf32>
    %39 = vector.extract_strided_slice %38 {offsets = [0, 0], sizes = [16, 8], strides = [1, 1]} : vector<16x96xf32> to vector<16x8xf32>
    %40 = vector.shape_cast %39 : vector<16x8xf32> to vector<2x8x8xf32>
    %41 = vector.extract_strided_slice %38 {offsets = [0, 32], sizes = [16, 8], strides = [1, 1]} : vector<16x96xf32> to vector<16x8xf32>
    %42 = vector.shape_cast %41 : vector<16x8xf32> to vector<2x8x8xf32>
    %43 = vector.extract_strided_slice %38 {offsets = [0, 64], sizes = [16, 8], strides = [1, 1]} : vector<16x96xf32> to vector<16x8xf32>
    %44 = vector.shape_cast %43 : vector<16x8xf32> to vector<2x8x8xf32>
    "tpu.trace_start"() <{level = 10 : i32, message = "bqd,bkd->bqk"}> : () -> ()
    %cst_20 = arith.constant dense<0.000000e+00> : vector<2x8x8xf32>
    %45 = tpu.matmul %40, %42, %cst_20 {dimension_numbers = #tpu.dot_dimension_numbers<[2], [2], [1], [1], [0, 0, 0, 1, 1, 1], [0], [0]>} : vector<2x8x8xf32>, vector<2x8x8xf32>, vector<2x8x8xf32> -> vector<2x8x8xf32>
    "tpu.trace_stop"() : () -> ()
    %cst_21 = arith.constant dense<0xFF800000> : vector<2x8xf32>
    %46 = vector.multi_reduction <maximumf>, %45, %cst_21 [2] : vector<2x8x8xf32> to vector<2x8xf32>
    %47 = vector.shape_cast %46 : vector<2x8xf32> to vector<2x8x1xf32>
    %48 = vector.broadcast %47 : vector<2x8x1xf32> to vector<2x8x8xf32>
    %49 = arith.subf %45, %48 : vector<2x8x8xf32>
    %50 = math.exp %49 : vector<2x8x8xf32>
    %cst_22 = arith.constant dense<0.000000e+00> : vector<2x8xf32>
    %51 = vector.multi_reduction <add>, %50, %cst_22 [2] : vector<2x8x8xf32> to vector<2x8xf32>
    %52 = vector.shape_cast %51 : vector<2x8xf32> to vector<2x8x1xf32>
    %53 = vector.broadcast %52 : vector<2x8x1xf32> to vector<2x8x8xf32>
    %54 = arith.divf %50, %53 : vector<2x8x8xf32>
    "tpu.trace_start"() <{level = 10 : i32, message = "bqk,bkd->bqd"}> : () -> ()
    %cst_23 = arith.constant dense<0.000000e+00> : vector<2x8x8xf32>
    %55 = tpu.matmul %54, %44, %cst_23 {dimension_numbers = #tpu.dot_dimension_numbers<[2], [1], [1], [2], [0, 0, 0, 1, 1, 2], [0], [0]>} : vector<2x8x8xf32>, vector<2x8x8xf32>, vector<2x8x8xf32> -> vector<2x8x8xf32>
    "tpu.trace_stop"() : () -> ()
    %56 = vector.shape_cast %55 : vector<2x8x8xf32> to vector<16x8xf32>
    %57 = vector.extract_strided_slice %38 {offsets = [0, 8], sizes = [16, 8], strides = [1, 1]} : vector<16x96xf32> to vector<16x8xf32>
    %58 = vector.shape_cast %57 : vector<16x8xf32> to vector<2x8x8xf32>
    %59 = vector.extract_strided_slice %38 {offsets = [0, 40], sizes = [16, 8], strides = [1, 1]} : vector<16x96xf32> to vector<16x8xf32>
    %60 = vector.shape_cast %59 : vector<16x8xf32> to vector<2x8x8xf32>
    %61 = vector.extract_strided_slice %38 {offsets = [0, 72], sizes = [16, 8], strides = [1, 1]} : vector<16x96xf32> to vector<16x8xf32>
    %62 = vector.shape_cast %61 : vector<16x8xf32> to vector<2x8x8xf32>
    "tpu.trace_start"() <{level = 10 : i32, message = "bqd,bkd->bqk"}> : () -> ()
    %cst_24 = arith.constant dense<0.000000e+00> : vector<2x8x8xf32>
    %63 = tpu.matmul %58, %60, %cst_24 {dimension_numbers = #tpu.dot_dimension_numbers<[2], [2], [1], [1], [0, 0, 0, 1, 1, 1], [0], [0]>} : vector<2x8x8xf32>, vector<2x8x8xf32>, vector<2x8x8xf32> -> vector<2x8x8xf32>
    "tpu.trace_stop"() : () -> ()
    %cst_25 = arith.constant dense<0xFF800000> : vector<2x8xf32>
    %64 = vector.multi_reduction <maximumf>, %63, %cst_25 [2] : vector<2x8x8xf32> to vector<2x8xf32>
    %65 = vector.shape_cast %64 : vector<2x8xf32> to vector<2x8x1xf32>
    %66 = vector.broadcast %65 : vector<2x8x1xf32> to vector<2x8x8xf32>
    %67 = arith.subf %63, %66 : vector<2x8x8xf32>
    %68 = math.exp %67 : vector<2x8x8xf32>
    %cst_26 = arith.constant dense<0.000000e+00> : vector<2x8xf32>
    %69 = vector.multi_reduction <add>, %68, %cst_26 [2] : vector<2x8x8xf32> to vector<2x8xf32>
    %70 = vector.shape_cast %69 : vector<2x8xf32> to vector<2x8x1xf32>
    %71 = vector.broadcast %70 : vector<2x8x1xf32> to vector<2x8x8xf32>
    %72 = arith.divf %68, %71 : vector<2x8x8xf32>
    "tpu.trace_start"() <{level = 10 : i32, message = "bqk,bkd->bqd"}> : () -> ()
    %cst_27 = arith.constant dense<0.000000e+00> : vector<2x8x8xf32>
    %73 = tpu.matmul %72, %62, %cst_27 {dimension_numbers = #tpu.dot_dimension_numbers<[2], [1], [1], [2], [0, 0, 0, 1, 1, 2], [0], [0]>} : vector<2x8x8xf32>, vector<2x8x8xf32>, vector<2x8x8xf32> -> vector<2x8x8xf32>
    "tpu.trace_stop"() : () -> ()
    %74 = vector.shape_cast %73 : vector<2x8x8xf32> to vector<16x8xf32>
    %75 = vector.extract_strided_slice %38 {offsets = [0, 16], sizes = [16, 8], strides = [1, 1]} : vector<16x96xf32> to vector<16x8xf32>
    %76 = vector.shape_cast %75 : vector<16x8xf32> to vector<2x8x8xf32>
    %77 = vector.extract_strided_slice %38 {offsets = [0, 48], sizes = [16, 8], strides = [1, 1]} : vector<16x96xf32> to vector<16x8xf32>
    %78 = vector.shape_cast %77 : vector<16x8xf32> to vector<2x8x8xf32>
    %79 = vector.extract_strided_slice %38 {offsets = [0, 80], sizes = [16, 8], strides = [1, 1]} : vector<16x96xf32> to vector<16x8xf32>
    %80 = vector.shape_cast %79 : vector<16x8xf32> to vector<2x8x8xf32>
    "tpu.trace_start"() <{level = 10 : i32, message = "bqd,bkd->bqk"}> : () -> ()
    %cst_28 = arith.constant dense<0.000000e+00> : vector<2x8x8xf32>
    %81 = tpu.matmul %76, %78, %cst_28 {dimension_numbers = #tpu.dot_dimension_numbers<[2], [2], [1], [1], [0, 0, 0, 1, 1, 1], [0], [0]>} : vector<2x8x8xf32>, vector<2x8x8xf32>, vector<2x8x8xf32> -> vector<2x8x8xf32>
    "tpu.trace_stop"() : () -> ()
    %cst_29 = arith.constant dense<0xFF800000> : vector<2x8xf32>
    %82 = vector.multi_reduction <maximumf>, %81, %cst_29 [2] : vector<2x8x8xf32> to vector<2x8xf32>
    %83 = vector.shape_cast %82 : vector<2x8xf32> to vector<2x8x1xf32>
    %84 = vector.broadcast %83 : vector<2x8x1xf32> to vector<2x8x8xf32>
    %85 = arith.subf %81, %84 : vector<2x8x8xf32>
    %86 = math.exp %85 : vector<2x8x8xf32>
    %cst_30 = arith.constant dense<0.000000e+00> : vector<2x8xf32>
    %87 = vector.multi_reduction <add>, %86, %cst_30 [2] : vector<2x8x8xf32> to vector<2x8xf32>
    %88 = vector.shape_cast %87 : vector<2x8xf32> to vector<2x8x1xf32>
    %89 = vector.broadcast %88 : vector<2x8x1xf32> to vector<2x8x8xf32>
    %90 = arith.divf %86, %89 : vector<2x8x8xf32>
    "tpu.trace_start"() <{level = 10 : i32, message = "bqk,bkd->bqd"}> : () -> ()
    %cst_31 = arith.constant dense<0.000000e+00> : vector<2x8x8xf32>
    %91 = tpu.matmul %90, %80, %cst_31 {dimension_numbers = #tpu.dot_dimension_numbers<[2], [1], [1], [2], [0, 0, 0, 1, 1, 2], [0], [0]>} : vector<2x8x8xf32>, vector<2x8x8xf32>, vector<2x8x8xf32> -> vector<2x8x8xf32>
    "tpu.trace_stop"() : () -> ()
    %92 = vector.shape_cast %91 : vector<2x8x8xf32> to vector<16x8xf32>
    %93 = vector.extract_strided_slice %38 {offsets = [0, 24], sizes = [16, 8], strides = [1, 1]} : vector<16x96xf32> to vector<16x8xf32>
    %94 = vector.shape_cast %93 : vector<16x8xf32> to vector<2x8x8xf32>
    %95 = vector.extract_strided_slice %38 {offsets = [0, 56], sizes = [16, 8], strides = [1, 1]} : vector<16x96xf32> to vector<16x8xf32>
    %96 = vector.shape_cast %95 : vector<16x8xf32> to vector<2x8x8xf32>
    %97 = vector.extract_strided_slice %38 {offsets = [0, 88], sizes = [16, 8], strides = [1, 1]} : vector<16x96xf32> to vector<16x8xf32>
    %98 = vector.shape_cast %97 : vector<16x8xf32> to vector<2x8x8xf32>
    "tpu.trace_start"() <{level = 10 : i32, message = "bqd,bkd->bqk"}> : () -> ()
    %cst_32 = arith.constant dense<0.000000e+00> : vector<2x8x8xf32>
    %99 = tpu.matmul %94, %96, %cst_32 {dimension_numbers = #tpu.dot_dimension_numbers<[2], [2], [1], [1], [0, 0, 0, 1, 1, 1], [0], [0]>} : vector<2x8x8xf32>, vector<2x8x8xf32>, vector<2x8x8xf32> -> vector<2x8x8xf32>
    "tpu.trace_stop"() : () -> ()
    %cst_33 = arith.constant dense<0xFF800000> : vector<2x8xf32>
    %100 = vector.multi_reduction <maximumf>, %99, %cst_33 [2] : vector<2x8x8xf32> to vector<2x8xf32>
    %101 = vector.shape_cast %100 : vector<2x8xf32> to vector<2x8x1xf32>
    %102 = vector.broadcast %101 : vector<2x8x1xf32> to vector<2x8x8xf32>
    %103 = arith.subf %99, %102 : vector<2x8x8xf32>
    %104 = math.exp %103 : vector<2x8x8xf32>
    %cst_34 = arith.constant dense<0.000000e+00> : vector<2x8xf32>
    %105 = vector.multi_reduction <add>, %104, %cst_34 [2] : vector<2x8x8xf32> to vector<2x8xf32>
    %106 = vector.shape_cast %105 : vector<2x8xf32> to vector<2x8x1xf32>
    %107 = vector.broadcast %106 : vector<2x8x1xf32> to vector<2x8x8xf32>
    %108 = arith.divf %104, %107 : vector<2x8x8xf32>
    "tpu.trace_start"() <{level = 10 : i32, message = "bqk,bkd->bqd"}> : () -> ()
    %cst_35 = arith.constant dense<0.000000e+00> : vector<2x8x8xf32>
    %109 = tpu.matmul %108, %98, %cst_35 {dimension_numbers = #tpu.dot_dimension_numbers<[2], [1], [1], [2], [0, 0, 0, 1, 1, 2], [0], [0]>} : vector<2x8x8xf32>, vector<2x8x8xf32>, vector<2x8x8xf32> -> vector<2x8x8xf32>
    "tpu.trace_stop"() : () -> ()
    %110 = vector.shape_cast %109 : vector<2x8x8xf32> to vector<16x8xf32>
    %111 = tpu.concatenate %56, %74, %92, %110 in 1 : vector<16x8xf32>, vector<16x8xf32>, vector<16x8xf32>, vector<16x8xf32> -> vector<16x32xf32>
    %112 = arith.addf %111, %31 : vector<16x32xf32>
    %c0_36 = arith.constant 0 : index
    %c0_37 = arith.constant 0 : index
    %c0_38 = arith.constant 0 : index
    %113 = vector.load %arg6[%c0_36, %c0_37, %c0_38] : memref<2x1x32xf32, #tpu.memory_space<vmem>>, vector<1x1x32xf32>
    %114 = vector.shape_cast %113 : vector<1x1x32xf32> to vector<1x32xf32>
    %c0_39 = arith.constant 0 : index
    %c0_40 = arith.constant 0 : index
    %c0_41 = arith.constant 0 : index
    %115 = vector.load %arg7[%c0_39, %c0_40, %c0_41] : memref<2x1x32xf32, #tpu.memory_space<vmem>>, vector<1x1x32xf32>
    %116 = vector.shape_cast %115 : vector<1x1x32xf32> to vector<1x32xf32>
    %cst_42 = arith.constant dense<0.000000e+00> : vector<16xf32>
    %117 = vector.multi_reduction <add>, %112, %cst_42 [1] : vector<16x32xf32> to vector<16xf32>
    %118 = vector.shape_cast %117 : vector<16xf32> to vector<16x1xf32>
    %cst_43 = arith.constant 3.200000e+01 : f32
    %119 = vector.broadcast %cst_43 : f32 to vector<16x1xf32>
    %120 = arith.divf %118, %119 : vector<16x1xf32>
    %121 = vector.broadcast %120 : vector<16x1xf32> to vector<16x32xf32>
    %122 = arith.subf %112, %121 : vector<16x32xf32>
    %123 = arith.mulf %122, %122 : vector<16x32xf32>
    %cst_44 = arith.constant dense<0.000000e+00> : vector<16xf32>
    %124 = vector.multi_reduction <add>, %123, %cst_44 [1] : vector<16x32xf32> to vector<16xf32>
    %125 = vector.shape_cast %124 : vector<16xf32> to vector<16x1xf32>
    %cst_45 = arith.constant 3.200000e+01 : f32
    %126 = vector.broadcast %cst_45 : f32 to vector<16x1xf32>
    %127 = arith.divf %125, %126 : vector<16x1xf32>
    %128 = vector.broadcast %120 : vector<16x1xf32> to vector<16x32xf32>
    %129 = arith.subf %112, %128 : vector<16x32xf32>
    %cst_46 = arith.constant 9.99999974E-6 : f32
    %130 = vector.broadcast %cst_46 : f32 to vector<16x1xf32>
    %131 = arith.addf %127, %130 : vector<16x1xf32>
    %132 = math.rsqrt %131 : vector<16x1xf32>
    %133 = vector.broadcast %132 : vector<16x1xf32> to vector<16x32xf32>
    %134 = arith.mulf %129, %133 : vector<16x32xf32>
    %135 = vector.broadcast %114 : vector<1x32xf32> to vector<16x32xf32>
    %136 = arith.mulf %134, %135 : vector<16x32xf32>
    %137 = vector.broadcast %116 : vector<1x32xf32> to vector<16x32xf32>
    %138 = arith.addf %136, %137 : vector<16x32xf32>
    %c0_47 = arith.constant 0 : index
    %c0_48 = arith.constant 0 : index
    %c0_49 = arith.constant 0 : index
    %139 = vector.load %arg8[%c0_47, %c0_48, %c0_49] : memref<2x32x64xf32, #tpu.memory_space<vmem>>, vector<1x32x64xf32>
    %140 = vector.shape_cast %139 : vector<1x32x64xf32> to vector<32x64xf32>
    %cst_50 = arith.constant dense<0.000000e+00> : vector<16x64xf32>
    %141 = tpu.matmul %138, %140, %cst_50 {dimension_numbers = #tpu.dot_dimension_numbers<[1], [0], [0], [1], [0, 0, 1, 1], [], []>} : vector<16x32xf32>, vector<32x64xf32>, vector<16x64xf32> -> vector<16x64xf32>
    %c0_51 = arith.constant 0 : index
    %c0_52 = arith.constant 0 : index
    %c0_53 = arith.constant 0 : index
    %142 = vector.load %arg9[%c0_51, %c0_52, %c0_53] : memref<2x1x64xf32, #tpu.memory_space<vmem>>, vector<1x1x64xf32>
    %143 = vector.shape_cast %142 : vector<1x1x64xf32> to vector<1x64xf32>
    %144 = vector.broadcast %143 : vector<1x64xf32> to vector<16x64xf32>
    %145 = arith.addf %141, %144 : vector<16x64xf32>
    %cst_54 = arith.constant 0.000000e+00 : f32
    %146 = vector.broadcast %cst_54 : f32 to vector<16x64xf32>
    %147 = arith.maximumf %145, %146 : vector<16x64xf32>
    %c0_55 = arith.constant 0 : index
    %c0_56 = arith.constant 0 : index
    %c0_57 = arith.constant 0 : index
    %148 = vector.load %arg10[%c0_55, %c0_56, %c0_57] : memref<2x64x32xf32, #tpu.memory_space<vmem>>, vector<1x64x32xf32>
    %149 = vector.shape_cast %148 : vector<1x64x32xf32> to vector<64x32xf32>
    %cst_58 = arith.constant dense<0.000000e+00> : vector<16x32xf32>
    %150 = tpu.matmul %147, %149, %cst_58 {dimension_numbers = #tpu.dot_dimension_numbers<[1], [0], [0], [1], [0, 0, 1, 1], [], []>} : vector<16x64xf32>, vector<64x32xf32>, vector<16x32xf32> -> vector<16x32xf32>
    %c0_59 = arith.constant 0 : index
    %c0_60 = arith.constant 0 : index
    %c0_61 = arith.constant 0 : index
    %151 = vector.load %arg11[%c0_59, %c0_60, %c0_61] : memref<2x1x32xf32, #tpu.memory_space<vmem>>, vector<1x1x32xf32>
    %152 = vector.shape_cast %151 : vector<1x1x32xf32> to vector<1x32xf32>
    %153 = vector.broadcast %152 : vector<1x32xf32> to vector<16x32xf32>
    %154 = arith.addf %150, %153 : vector<16x32xf32>
    %155 = arith.addf %154, %138 : vector<16x32xf32>
    %c0_62 = arith.constant 0 : index
    %c0_63 = arith.constant 0 : index
    %c0_64 = arith.constant 0 : index
    %156 = vector.load %arg12[%c0_62, %c0_63, %c0_64] : memref<2x1x32xf32, #tpu.memory_space<vmem>>, vector<1x1x32xf32>
    %157 = vector.shape_cast %156 : vector<1x1x32xf32> to vector<1x32xf32>
    %c0_65 = arith.constant 0 : index
    %c0_66 = arith.constant 0 : index
    %c0_67 = arith.constant 0 : index
    %158 = vector.load %arg13[%c0_65, %c0_66, %c0_67] : memref<2x1x32xf32, #tpu.memory_space<vmem>>, vector<1x1x32xf32>
    %159 = vector.shape_cast %158 : vector<1x1x32xf32> to vector<1x32xf32>
    %cst_68 = arith.constant dense<0.000000e+00> : vector<16xf32>
    %160 = vector.multi_reduction <add>, %155, %cst_68 [1] : vector<16x32xf32> to vector<16xf32>
    %161 = vector.shape_cast %160 : vector<16xf32> to vector<16x1xf32>
    %cst_69 = arith.constant 3.200000e+01 : f32
    %162 = vector.broadcast %cst_69 : f32 to vector<16x1xf32>
    %163 = arith.divf %161, %162 : vector<16x1xf32>
    %164 = vector.broadcast %163 : vector<16x1xf32> to vector<16x32xf32>
    %165 = arith.subf %155, %164 : vector<16x32xf32>
    %166 = arith.mulf %165, %165 : vector<16x32xf32>
    %cst_70 = arith.constant dense<0.000000e+00> : vector<16xf32>
    %167 = vector.multi_reduction <add>, %166, %cst_70 [1] : vector<16x32xf32> to vector<16xf32>
    %168 = vector.shape_cast %167 : vector<16xf32> to vector<16x1xf32>
    %cst_71 = arith.constant 3.200000e+01 : f32
    %169 = vector.broadcast %cst_71 : f32 to vector<16x1xf32>
    %170 = arith.divf %168, %169 : vector<16x1xf32>
    %171 = vector.broadcast %163 : vector<16x1xf32> to vector<16x32xf32>
    %172 = arith.subf %155, %171 : vector<16x32xf32>
    %cst_72 = arith.constant 9.99999974E-6 : f32
    %173 = vector.broadcast %cst_72 : f32 to vector<16x1xf32>
    %174 = arith.addf %170, %173 : vector<16x1xf32>
    %175 = math.rsqrt %174 : vector<16x1xf32>
    %176 = vector.broadcast %175 : vector<16x1xf32> to vector<16x32xf32>
    %177 = arith.mulf %172, %176 : vector<16x32xf32>
    %178 = vector.broadcast %157 : vector<1x32xf32> to vector<16x32xf32>
    %179 = arith.mulf %177, %178 : vector<16x32xf32>
    %180 = vector.broadcast %159 : vector<1x32xf32> to vector<16x32xf32>
    %181 = arith.addf %179, %180 : vector<16x32xf32>
    %c1 = arith.constant 1 : index
    %c0_73 = arith.constant 0 : index
    %c0_74 = arith.constant 0 : index
    %182 = vector.load %arg4[%c1, %c0_73, %c0_74] : memref<2x32x96xf32, #tpu.memory_space<vmem>>, vector<1x32x96xf32>
    %183 = vector.shape_cast %182 : vector<1x32x96xf32> to vector<32x96xf32>
    %cst_75 = arith.constant dense<0.000000e+00> : vector<16x96xf32>
    %184 = tpu.matmul %181, %183, %cst_75 {dimension_numbers = #tpu.dot_dimension_numbers<[1], [0], [0], [1], [0, 0, 1, 1], [], []>} : vector<16x32xf32>, vector<32x96xf32>, vector<16x96xf32> -> vector<16x96xf32>
    %c1_76 = arith.constant 1 : index
    %c0_77 = arith.constant 0 : index
    %c0_78 = arith.constant 0 : index
    %185 = vector.load %arg5[%c1_76, %c0_77, %c0_78] : memref<2x1x96xf32, #tpu.memory_space<vmem>>, vector<1x1x96xf32>
    %186 = vector.shape_cast %185 : vector<1x1x96xf32> to vector<1x96xf32>
    %187 = vector.broadcast %186 : vector<1x96xf32> to vector<16x96xf32>
    %188 = arith.addf %184, %187 : vector<16x96xf32>
    %189 = vector.extract_strided_slice %188 {offsets = [0, 0], sizes = [16, 8], strides = [1, 1]} : vector<16x96xf32> to vector<16x8xf32>
    %190 = vector.shape_cast %189 : vector<16x8xf32> to vector<2x8x8xf32>
    %191 = vector.extract_strided_slice %188 {offsets = [0, 32], sizes = [16, 8], strides = [1, 1]} : vector<16x96xf32> to vector<16x8xf32>
    %192 = vector.shape_cast %191 : vector<16x8xf32> to vector<2x8x8xf32>
    %193 = vector.extract_strided_slice %188 {offsets = [0, 64], sizes = [16, 8], strides = [1, 1]} : vector<16x96xf32> to vector<16x8xf32>
    %194 = vector.shape_cast %193 : vector<16x8xf32> to vector<2x8x8xf32>
    "tpu.trace_start"() <{level = 10 : i32, message = "bqd,bkd->bqk"}> : () -> ()
    %cst_79 = arith.constant dense<0.000000e+00> : vector<2x8x8xf32>
    %195 = tpu.matmul %190, %192, %cst_79 {dimension_numbers = #tpu.dot_dimension_numbers<[2], [2], [1], [1], [0, 0, 0, 1, 1, 1], [0], [0]>} : vector<2x8x8xf32>, vector<2x8x8xf32>, vector<2x8x8xf32> -> vector<2x8x8xf32>
    "tpu.trace_stop"() : () -> ()
    %cst_80 = arith.constant dense<0xFF800000> : vector<2x8xf32>
    %196 = vector.multi_reduction <maximumf>, %195, %cst_80 [2] : vector<2x8x8xf32> to vector<2x8xf32>
    %197 = vector.shape_cast %196 : vector<2x8xf32> to vector<2x8x1xf32>
    %198 = vector.broadcast %197 : vector<2x8x1xf32> to vector<2x8x8xf32>
    %199 = arith.subf %195, %198 : vector<2x8x8xf32>
    %200 = math.exp %199 : vector<2x8x8xf32>
    %cst_81 = arith.constant dense<0.000000e+00> : vector<2x8xf32>
    %201 = vector.multi_reduction <add>, %200, %cst_81 [2] : vector<2x8x8xf32> to vector<2x8xf32>
    %202 = vector.shape_cast %201 : vector<2x8xf32> to vector<2x8x1xf32>
    %203 = vector.broadcast %202 : vector<2x8x1xf32> to vector<2x8x8xf32>
    %204 = arith.divf %200, %203 : vector<2x8x8xf32>
    "tpu.trace_start"() <{level = 10 : i32, message = "bqk,bkd->bqd"}> : () -> ()
    %cst_82 = arith.constant dense<0.000000e+00> : vector<2x8x8xf32>
    %205 = tpu.matmul %204, %194, %cst_82 {dimension_numbers = #tpu.dot_dimension_numbers<[2], [1], [1], [2], [0, 0, 0, 1, 1, 2], [0], [0]>} : vector<2x8x8xf32>, vector<2x8x8xf32>, vector<2x8x8xf32> -> vector<2x8x8xf32>
    "tpu.trace_stop"() : () -> ()
    %206 = vector.shape_cast %205 : vector<2x8x8xf32> to vector<16x8xf32>
    %207 = vector.extract_strided_slice %188 {offsets = [0, 8], sizes = [16, 8], strides = [1, 1]} : vector<16x96xf32> to vector<16x8xf32>
    %208 = vector.shape_cast %207 : vector<16x8xf32> to vector<2x8x8xf32>
    %209 = vector.extract_strided_slice %188 {offsets = [0, 40], sizes = [16, 8], strides = [1, 1]} : vector<16x96xf32> to vector<16x8xf32>
    %210 = vector.shape_cast %209 : vector<16x8xf32> to vector<2x8x8xf32>
    %211 = vector.extract_strided_slice %188 {offsets = [0, 72], sizes = [16, 8], strides = [1, 1]} : vector<16x96xf32> to vector<16x8xf32>
    %212 = vector.shape_cast %211 : vector<16x8xf32> to vector<2x8x8xf32>
    "tpu.trace_start"() <{level = 10 : i32, message = "bqd,bkd->bqk"}> : () -> ()
    %cst_83 = arith.constant dense<0.000000e+00> : vector<2x8x8xf32>
    %213 = tpu.matmul %208, %210, %cst_83 {dimension_numbers = #tpu.dot_dimension_numbers<[2], [2], [1], [1], [0, 0, 0, 1, 1, 1], [0], [0]>} : vector<2x8x8xf32>, vector<2x8x8xf32>, vector<2x8x8xf32> -> vector<2x8x8xf32>
    "tpu.trace_stop"() : () -> ()
    %cst_84 = arith.constant dense<0xFF800000> : vector<2x8xf32>
    %214 = vector.multi_reduction <maximumf>, %213, %cst_84 [2] : vector<2x8x8xf32> to vector<2x8xf32>
    %215 = vector.shape_cast %214 : vector<2x8xf32> to vector<2x8x1xf32>
    %216 = vector.broadcast %215 : vector<2x8x1xf32> to vector<2x8x8xf32>
    %217 = arith.subf %213, %216 : vector<2x8x8xf32>
    %218 = math.exp %217 : vector<2x8x8xf32>
    %cst_85 = arith.constant dense<0.000000e+00> : vector<2x8xf32>
    %219 = vector.multi_reduction <add>, %218, %cst_85 [2] : vector<2x8x8xf32> to vector<2x8xf32>
    %220 = vector.shape_cast %219 : vector<2x8xf32> to vector<2x8x1xf32>
    %221 = vector.broadcast %220 : vector<2x8x1xf32> to vector<2x8x8xf32>
    %222 = arith.divf %218, %221 : vector<2x8x8xf32>
    "tpu.trace_start"() <{level = 10 : i32, message = "bqk,bkd->bqd"}> : () -> ()
    %cst_86 = arith.constant dense<0.000000e+00> : vector<2x8x8xf32>
    %223 = tpu.matmul %222, %212, %cst_86 {dimension_numbers = #tpu.dot_dimension_numbers<[2], [1], [1], [2], [0, 0, 0, 1, 1, 2], [0], [0]>} : vector<2x8x8xf32>, vector<2x8x8xf32>, vector<2x8x8xf32> -> vector<2x8x8xf32>
    "tpu.trace_stop"() : () -> ()
    %224 = vector.shape_cast %223 : vector<2x8x8xf32> to vector<16x8xf32>
    %225 = vector.extract_strided_slice %188 {offsets = [0, 16], sizes = [16, 8], strides = [1, 1]} : vector<16x96xf32> to vector<16x8xf32>
    %226 = vector.shape_cast %225 : vector<16x8xf32> to vector<2x8x8xf32>
    %227 = vector.extract_strided_slice %188 {offsets = [0, 48], sizes = [16, 8], strides = [1, 1]} : vector<16x96xf32> to vector<16x8xf32>
    %228 = vector.shape_cast %227 : vector<16x8xf32> to vector<2x8x8xf32>
    %229 = vector.extract_strided_slice %188 {offsets = [0, 80], sizes = [16, 8], strides = [1, 1]} : vector<16x96xf32> to vector<16x8xf32>
    %230 = vector.shape_cast %229 : vector<16x8xf32> to vector<2x8x8xf32>
    "tpu.trace_start"() <{level = 10 : i32, message = "bqd,bkd->bqk"}> : () -> ()
    %cst_87 = arith.constant dense<0.000000e+00> : vector<2x8x8xf32>
    %231 = tpu.matmul %226, %228, %cst_87 {dimension_numbers = #tpu.dot_dimension_numbers<[2], [2], [1], [1], [0, 0, 0, 1, 1, 1], [0], [0]>} : vector<2x8x8xf32>, vector<2x8x8xf32>, vector<2x8x8xf32> -> vector<2x8x8xf32>
    "tpu.trace_stop"() : () -> ()
    %cst_88 = arith.constant dense<0xFF800000> : vector<2x8xf32>
    %232 = vector.multi_reduction <maximumf>, %231, %cst_88 [2] : vector<2x8x8xf32> to vector<2x8xf32>
    %233 = vector.shape_cast %232 : vector<2x8xf32> to vector<2x8x1xf32>
    %234 = vector.broadcast %233 : vector<2x8x1xf32> to vector<2x8x8xf32>
    %235 = arith.subf %231, %234 : vector<2x8x8xf32>
    %236 = math.exp %235 : vector<2x8x8xf32>
    %cst_89 = arith.constant dense<0.000000e+00> : vector<2x8xf32>
    %237 = vector.multi_reduction <add>, %236, %cst_89 [2] : vector<2x8x8xf32> to vector<2x8xf32>
    %238 = vector.shape_cast %237 : vector<2x8xf32> to vector<2x8x1xf32>
    %239 = vector.broadcast %238 : vector<2x8x1xf32> to vector<2x8x8xf32>
    %240 = arith.divf %236, %239 : vector<2x8x8xf32>
    "tpu.trace_start"() <{level = 10 : i32, message = "bqk,bkd->bqd"}> : () -> ()
    %cst_90 = arith.constant dense<0.000000e+00> : vector<2x8x8xf32>
    %241 = tpu.matmul %240, %230, %cst_90 {dimension_numbers = #tpu.dot_dimension_numbers<[2], [1], [1], [2], [0, 0, 0, 1, 1, 2], [0], [0]>} : vector<2x8x8xf32>, vector<2x8x8xf32>, vector<2x8x8xf32> -> vector<2x8x8xf32>
    "tpu.trace_stop"() : () -> ()
    %242 = vector.shape_cast %241 : vector<2x8x8xf32> to vector<16x8xf32>
    %243 = vector.extract_strided_slice %188 {offsets = [0, 24], sizes = [16, 8], strides = [1, 1]} : vector<16x96xf32> to vector<16x8xf32>
    %244 = vector.shape_cast %243 : vector<16x8xf32> to vector<2x8x8xf32>
    %245 = vector.extract_strided_slice %188 {offsets = [0, 56], sizes = [16, 8], strides = [1, 1]} : vector<16x96xf32> to vector<16x8xf32>
    %246 = vector.shape_cast %245 : vector<16x8xf32> to vector<2x8x8xf32>
    %247 = vector.extract_strided_slice %188 {offsets = [0, 88], sizes = [16, 8], strides = [1, 1]} : vector<16x96xf32> to vector<16x8xf32>
    %248 = vector.shape_cast %247 : vector<16x8xf32> to vector<2x8x8xf32>
    "tpu.trace_start"() <{level = 10 : i32, message = "bqd,bkd->bqk"}> : () -> ()
    %cst_91 = arith.constant dense<0.000000e+00> : vector<2x8x8xf32>
    %249 = tpu.matmul %244, %246, %cst_91 {dimension_numbers = #tpu.dot_dimension_numbers<[2], [2], [1], [1], [0, 0, 0, 1, 1, 1], [0], [0]>} : vector<2x8x8xf32>, vector<2x8x8xf32>, vector<2x8x8xf32> -> vector<2x8x8xf32>
    "tpu.trace_stop"() : () -> ()
    %cst_92 = arith.constant dense<0xFF800000> : vector<2x8xf32>
    %250 = vector.multi_reduction <maximumf>, %249, %cst_92 [2] : vector<2x8x8xf32> to vector<2x8xf32>
    %251 = vector.shape_cast %250 : vector<2x8xf32> to vector<2x8x1xf32>
    %252 = vector.broadcast %251 : vector<2x8x1xf32> to vector<2x8x8xf32>
    %253 = arith.subf %249, %252 : vector<2x8x8xf32>
    %254 = math.exp %253 : vector<2x8x8xf32>
    %cst_93 = arith.constant dense<0.000000e+00> : vector<2x8xf32>
    %255 = vector.multi_reduction <add>, %254, %cst_93 [2] : vector<2x8x8xf32> to vector<2x8xf32>
    %256 = vector.shape_cast %255 : vector<2x8xf32> to vector<2x8x1xf32>
    %257 = vector.broadcast %256 : vector<2x8x1xf32> to vector<2x8x8xf32>
    %258 = arith.divf %254, %257 : vector<2x8x8xf32>
    "tpu.trace_start"() <{level = 10 : i32, message = "bqk,bkd->bqd"}> : () -> ()
    %cst_94 = arith.constant dense<0.000000e+00> : vector<2x8x8xf32>
    %259 = tpu.matmul %258, %248, %cst_94 {dimension_numbers = #tpu.dot_dimension_numbers<[2], [1], [1], [2], [0, 0, 0, 1, 1, 2], [0], [0]>} : vector<2x8x8xf32>, vector<2x8x8xf32>, vector<2x8x8xf32> -> vector<2x8x8xf32>
    "tpu.trace_stop"() : () -> ()
    %260 = vector.shape_cast %259 : vector<2x8x8xf32> to vector<16x8xf32>
    %261 = tpu.concatenate %206, %224, %242, %260 in 1 : vector<16x8xf32>, vector<16x8xf32>, vector<16x8xf32>, vector<16x8xf32> -> vector<16x32xf32>
    %262 = arith.addf %261, %181 : vector<16x32xf32>
    %c1_95 = arith.constant 1 : index
    %c0_96 = arith.constant 0 : index
    %c0_97 = arith.constant 0 : index
    %263 = vector.load %arg6[%c1_95, %c0_96, %c0_97] : memref<2x1x32xf32, #tpu.memory_space<vmem>>, vector<1x1x32xf32>
    %264 = vector.shape_cast %263 : vector<1x1x32xf32> to vector<1x32xf32>
    %c1_98 = arith.constant 1 : index
    %c0_99 = arith.constant 0 : index
    %c0_100 = arith.constant 0 : index
    %265 = vector.load %arg7[%c1_98, %c0_99, %c0_100] : memref<2x1x32xf32, #tpu.memory_space<vmem>>, vector<1x1x32xf32>
    %266 = vector.shape_cast %265 : vector<1x1x32xf32> to vector<1x32xf32>
    %cst_101 = arith.constant dense<0.000000e+00> : vector<16xf32>
    %267 = vector.multi_reduction <add>, %262, %cst_101 [1] : vector<16x32xf32> to vector<16xf32>
    %268 = vector.shape_cast %267 : vector<16xf32> to vector<16x1xf32>
    %cst_102 = arith.constant 3.200000e+01 : f32
    %269 = vector.broadcast %cst_102 : f32 to vector<16x1xf32>
    %270 = arith.divf %268, %269 : vector<16x1xf32>
    %271 = vector.broadcast %270 : vector<16x1xf32> to vector<16x32xf32>
    %272 = arith.subf %262, %271 : vector<16x32xf32>
    %273 = arith.mulf %272, %272 : vector<16x32xf32>
    %cst_103 = arith.constant dense<0.000000e+00> : vector<16xf32>
    %274 = vector.multi_reduction <add>, %273, %cst_103 [1] : vector<16x32xf32> to vector<16xf32>
    %275 = vector.shape_cast %274 : vector<16xf32> to vector<16x1xf32>
    %cst_104 = arith.constant 3.200000e+01 : f32
    %276 = vector.broadcast %cst_104 : f32 to vector<16x1xf32>
    %277 = arith.divf %275, %276 : vector<16x1xf32>
    %278 = vector.broadcast %270 : vector<16x1xf32> to vector<16x32xf32>
    %279 = arith.subf %262, %278 : vector<16x32xf32>
    %cst_105 = arith.constant 9.99999974E-6 : f32
    %280 = vector.broadcast %cst_105 : f32 to vector<16x1xf32>
    %281 = arith.addf %277, %280 : vector<16x1xf32>
    %282 = math.rsqrt %281 : vector<16x1xf32>
    %283 = vector.broadcast %282 : vector<16x1xf32> to vector<16x32xf32>
    %284 = arith.mulf %279, %283 : vector<16x32xf32>
    %285 = vector.broadcast %264 : vector<1x32xf32> to vector<16x32xf32>
    %286 = arith.mulf %284, %285 : vector<16x32xf32>
    %287 = vector.broadcast %266 : vector<1x32xf32> to vector<16x32xf32>
    %288 = arith.addf %286, %287 : vector<16x32xf32>
    %c1_106 = arith.constant 1 : index
    %c0_107 = arith.constant 0 : index
    %c0_108 = arith.constant 0 : index
    %289 = vector.load %arg8[%c1_106, %c0_107, %c0_108] : memref<2x32x64xf32, #tpu.memory_space<vmem>>, vector<1x32x64xf32>
    %290 = vector.shape_cast %289 : vector<1x32x64xf32> to vector<32x64xf32>
    %cst_109 = arith.constant dense<0.000000e+00> : vector<16x64xf32>
    %291 = tpu.matmul %288, %290, %cst_109 {dimension_numbers = #tpu.dot_dimension_numbers<[1], [0], [0], [1], [0, 0, 1, 1], [], []>} : vector<16x32xf32>, vector<32x64xf32>, vector<16x64xf32> -> vector<16x64xf32>
    %c1_110 = arith.constant 1 : index
    %c0_111 = arith.constant 0 : index
    %c0_112 = arith.constant 0 : index
    %292 = vector.load %arg9[%c1_110, %c0_111, %c0_112] : memref<2x1x64xf32, #tpu.memory_space<vmem>>, vector<1x1x64xf32>
    %293 = vector.shape_cast %292 : vector<1x1x64xf32> to vector<1x64xf32>
    %294 = vector.broadcast %293 : vector<1x64xf32> to vector<16x64xf32>
    %295 = arith.addf %291, %294 : vector<16x64xf32>
    %cst_113 = arith.constant 0.000000e+00 : f32
    %296 = vector.broadcast %cst_113 : f32 to vector<16x64xf32>
    %297 = arith.maximumf %295, %296 : vector<16x64xf32>
    %c1_114 = arith.constant 1 : index
    %c0_115 = arith.constant 0 : index
    %c0_116 = arith.constant 0 : index
    %298 = vector.load %arg10[%c1_114, %c0_115, %c0_116] : memref<2x64x32xf32, #tpu.memory_space<vmem>>, vector<1x64x32xf32>
    %299 = vector.shape_cast %298 : vector<1x64x32xf32> to vector<64x32xf32>
    %cst_117 = arith.constant dense<0.000000e+00> : vector<16x32xf32>
    %300 = tpu.matmul %297, %299, %cst_117 {dimension_numbers = #tpu.dot_dimension_numbers<[1], [0], [0], [1], [0, 0, 1, 1], [], []>} : vector<16x64xf32>, vector<64x32xf32>, vector<16x32xf32> -> vector<16x32xf32>
    %c1_118 = arith.constant 1 : index
    %c0_119 = arith.constant 0 : index
    %c0_120 = arith.constant 0 : index
    %301 = vector.load %arg11[%c1_118, %c0_119, %c0_120] : memref<2x1x32xf32, #tpu.memory_space<vmem>>, vector<1x1x32xf32>
    %302 = vector.shape_cast %301 : vector<1x1x32xf32> to vector<1x32xf32>
    %303 = vector.broadcast %302 : vector<1x32xf32> to vector<16x32xf32>
    %304 = arith.addf %300, %303 : vector<16x32xf32>
    %305 = arith.addf %304, %288 : vector<16x32xf32>
    %c1_121 = arith.constant 1 : index
    %c0_122 = arith.constant 0 : index
    %c0_123 = arith.constant 0 : index
    %306 = vector.load %arg12[%c1_121, %c0_122, %c0_123] : memref<2x1x32xf32, #tpu.memory_space<vmem>>, vector<1x1x32xf32>
    %307 = vector.shape_cast %306 : vector<1x1x32xf32> to vector<1x32xf32>
    %c1_124 = arith.constant 1 : index
    %c0_125 = arith.constant 0 : index
    %c0_126 = arith.constant 0 : index
    %308 = vector.load %arg13[%c1_124, %c0_125, %c0_126] : memref<2x1x32xf32, #tpu.memory_space<vmem>>, vector<1x1x32xf32>
    %309 = vector.shape_cast %308 : vector<1x1x32xf32> to vector<1x32xf32>
    %cst_127 = arith.constant dense<0.000000e+00> : vector<16xf32>
    %310 = vector.multi_reduction <add>, %305, %cst_127 [1] : vector<16x32xf32> to vector<16xf32>
    %311 = vector.shape_cast %310 : vector<16xf32> to vector<16x1xf32>
    %cst_128 = arith.constant 3.200000e+01 : f32
    %312 = vector.broadcast %cst_128 : f32 to vector<16x1xf32>
    %313 = arith.divf %311, %312 : vector<16x1xf32>
    %314 = vector.broadcast %313 : vector<16x1xf32> to vector<16x32xf32>
    %315 = arith.subf %305, %314 : vector<16x32xf32>
    %316 = arith.mulf %315, %315 : vector<16x32xf32>
    %cst_129 = arith.constant dense<0.000000e+00> : vector<16xf32>
    %317 = vector.multi_reduction <add>, %316, %cst_129 [1] : vector<16x32xf32> to vector<16xf32>
    %318 = vector.shape_cast %317 : vector<16xf32> to vector<16x1xf32>
    %cst_130 = arith.constant 3.200000e+01 : f32
    %319 = vector.broadcast %cst_130 : f32 to vector<16x1xf32>
    %320 = arith.divf %318, %319 : vector<16x1xf32>
    %321 = vector.broadcast %313 : vector<16x1xf32> to vector<16x32xf32>
    %322 = arith.subf %305, %321 : vector<16x32xf32>
    %cst_131 = arith.constant 9.99999974E-6 : f32
    %323 = vector.broadcast %cst_131 : f32 to vector<16x1xf32>
    %324 = arith.addf %320, %323 : vector<16x1xf32>
    %325 = math.rsqrt %324 : vector<16x1xf32>
    %326 = vector.broadcast %325 : vector<16x1xf32> to vector<16x32xf32>
    %327 = arith.mulf %322, %326 : vector<16x32xf32>
    %328 = vector.broadcast %307 : vector<1x32xf32> to vector<16x32xf32>
    %329 = arith.mulf %327, %328 : vector<16x32xf32>
    %330 = vector.broadcast %309 : vector<1x32xf32> to vector<16x32xf32>
    %331 = arith.addf %329, %330 : vector<16x32xf32>
    %c0_132 = arith.constant 0 : index
    %c0_133 = arith.constant 0 : index
    %332 = vector.load %arg14[%c0_132, %c0_133] : memref<16x32xf32, #tpu.memory_space<vmem>>, vector<16x32xf32>
    tpu.vector_store %arg14[%c0_132, %c0_133], %331 {strides = array<i32>} : memref<16x32xf32, #tpu.memory_space<vmem>>, vector<16x32xf32>,
    return
  }
}

</mosaic_0001>

<llo_original>
// kernel: encoder_forward.1
$region0: #{encoder_forward.1}
  #allocation0 [shape = 'u32[]', space=smem, size = 0x4, offset = 0x4, fixed_abs, tag = 'smem constant byte address 0x4 - core index']
  #allocation1 [shape = 'u32[144,128]{1,0:T(1,128)}', space=vmem, size = 0x12000, scoped, tag = 'internal scratch']
  %s0 = inlined_call_operand.vmem [shape: f32[2,8,32], index: 0, kind: input, shape index: {}]
  %s1 = inlined_call_operand.vmem [shape: f32[8,32], index: 1, kind: input, shape index: {}]
  %s2 = inlined_call_operand.vmem [shape: f32[1,32], index: 2, kind: input, shape index: {}]
  %s3 = inlined_call_operand.vmem [shape: f32[1,32], index: 3, kind: input, shape index: {}]
  %s4 = inlined_call_operand.vmem [shape: f32[2,32,96], index: 4, kind: input, shape index: {}]
  %s5 = inlined_call_operand.vmem [shape: f32[2,1,96], index: 5, kind: input, shape index: {}]
  %s6 = inlined_call_operand.vmem [shape: f32[2,1,32], index: 6, kind: input, shape index: {}]
  %s7 = inlined_call_operand.vmem [shape: f32[2,1,32], index: 7, kind: input, shape index: {}]
  %s8 = inlined_call_operand.vmem [shape: f32[2,32,64], index: 8, kind: input, shape index: {}]
  %s9 = inlined_call_operand.vmem [shape: f32[2,1,64], index: 9, kind: input, shape index: {}]
  %s10 = inlined_call_operand.vmem [shape: f32[2,64,32], index: 10, kind: input, shape index: {}]
  %s11 = inlined_call_operand.vmem [shape: f32[2,1,32], index: 11, kind: input, shape index: {}]
  %s12 = inlined_call_operand.vmem [shape: f32[2,1,32], index: 12, kind: input, shape index: {}]
  %s13 = inlined_call_operand.vmem [shape: f32[2,1,32], index: 13, kind: input, shape index: {}]
  %s14 = inlined_call_operand.hbm [shape: f32[16,32], index: 14, kind: output, shape index: {}]
  %s15 = sld [smem:[#allocation0]]
  $region66: #{encoder_forward.1} parent=0
    _
  %s17 = ssub.s32 1, %s15
  %s18 = scalar_select 0, %s17, %s15
  $region1: #{encoder_forward.1} parent=0
    #allocation2 [shape = 'u8[8192]{0}', space=vmem, size = 0x2000, scoped, tag = 'output window, operand 0, single buffered']
    #allocation3 [shape = 's32[1]{0}', space=sflag, size = 0x4, scoped, tag = 'scoped memory for encoder_forward.1']
    %19 = vsyncpa [#allocation3], 0
    // Predicated region
    $region2: #{encoder_forward.1} parent=1 // pred_check
      _
    $region3: #{encoder_forward.1} parent=1 // pred_check_branch
      %21 = sbr.rel (0) target = $region5
    $region4: #{encoder_forward.1} parent=1 // pred_region
      _
    $region5: #{encoder_forward.1} parent=1 // pred_fallthru
      _
    // Predicated region
    $region6: #{encoder_forward.1} parent=1 // pred_check
      _
    $region7: #{encoder_forward.1} parent=1 // pred_check_branch
      %23 = sbr.rel (0) target = $region9
    $region8: #{encoder_forward.1} parent=1 // pred_region
      _
    $region9: #{encoder_forward.1} parent=1 // pred_fallthru
      _
    // Predicated region
    $region10: #{encoder_forward.1} parent=1 // pred_check
      _
    $region11: #{encoder_forward.1} parent=1 // pred_check_branch
      %25 = sbr.rel (0) target = $region13
    $region12: #{encoder_forward.1} parent=1 // pred_region
      _
    $region13: #{encoder_forward.1} parent=1 // pred_fallthru
      _
    // Predicated region
    $region14: #{encoder_forward.1} parent=1 // pred_check
      _
    $region15: #{encoder_forward.1} parent=1 // pred_check_branch
      %27 = sbr.rel (0) target = $region17
    $region16: #{encoder_forward.1} parent=1 // pred_region
      _
    $region17: #{encoder_forward.1} parent=1 // pred_fallthru
      _
    // Predicated region
    $region18: #{encoder_forward.1} parent=1 // pred_check
      _
    $region19: #{encoder_forward.1} parent=1 // pred_check_branch
      %29 = sbr.rel (0) target = $region21
    $region20: #{encoder_forward.1} parent=1 // pred_region
      _
    $region21: #{encoder_forward.1} parent=1 // pred_fallthru
      _
    // Predicated region
    $region22: #{encoder_forward.1} parent=1 // pred_check
      _
    $region23: #{encoder_forward.1} parent=1 // pred_check_branch
      %31 = sbr.rel (0) target = $region25
    $region24: #{encoder_forward.1} parent=1 // pred_region
      _
    $region25: #{encoder_forward.1} parent=1 // pred_fallthru
      _
    // Predicated region
    $region26: #{encoder_forward.1} parent=1 // pred_check
      _
    $region27: #{encoder_forward.1} parent=1 // pred_check_branch
      %33 = sbr.rel (0) target = $region29
    $region28: #{encoder_forward.1} parent=1 // pred_region
      _
    $region29: #{encoder_forward.1} parent=1 // pred_fallthru
      _
    // Predicated region
    $region30: #{encoder_forward.1} parent=1 // pred_check
      _
    $region31: #{encoder_forward.1} parent=1 // pred_check_branch
      %35 = sbr.rel (0) target = $region33
    $region32: #{encoder_forward.1} parent=1 // pred_region
      _
    $region33: #{encoder_forward.1} parent=1 // pred_fallthru
      _
    // Predicated region
    $region34: #{encoder_forward.1} parent=1 // pred_check
      _
    $region35: #{encoder_forward.1} parent=1 // pred_check_branch
      %37 = sbr.rel (0) target = $region37
    $region36: #{encoder_forward.1} parent=1 // pred_region
      _
    $region37: #{encoder_forward.1} parent=1 // pred_fallthru
      _
    // Predicated region
    $region38: #{encoder_forward.1} parent=1 // pred_check
      _
    $region39: #{encoder_forward.1} parent=1 // pred_check_branch
      %39 = sbr.rel (0) target = $region41
    $region40: #{encoder_forward.1} parent=1 // pred_region
      _
    $region41: #{encoder_forward.1} parent=1 // pred_fallthru
      _
    // Predicated region
    $region42: #{encoder_forward.1} parent=1 // pred_check
      _
    $region43: #{encoder_forward.1} parent=1 // pred_check_branch
      %41 = sbr.rel (0) target = $region45
    $region44: #{encoder_forward.1} parent=1 // pred_region
      _
    $region45: #{encoder_forward.1} parent=1 // pred_fallthru
      _
    // Predicated region
    $region46: #{encoder_forward.1} parent=1 // pred_check
      _
    $region47: #{encoder_forward.1} parent=1 // pred_check_branch
      %43 = sbr.rel (0) target = $region49
    $region48: #{encoder_forward.1} parent=1 // pred_region
      _
    $region49: #{encoder_forward.1} parent=1 // pred_fallthru
      _
    // Predicated region
    $region50: #{encoder_forward.1} parent=1 // pred_check
      _
    $region51: #{encoder_forward.1} parent=1 // pred_check_branch
      %45 = sbr.rel (0) target = $region53
    $region52: #{encoder_forward.1} parent=1 // pred_region
      _
    $region53: #{encoder_forward.1} parent=1 // pred_fallthru
      _
    // Predicated region
    $region54: #{encoder_forward.1} parent=1 // pred_check
      _
    $region55: #{encoder_forward.1} parent=1 // pred_check_branch
      %47 = sbr.rel (0) target = $region57
    $region56: #{encoder_forward.1} parent=1 // pred_region
      _
    $region57: #{encoder_forward.1} parent=1 // pred_fallthru
      _
    %v48 = vld [vmem:[%s0] sm:$0xff]
    %v49 = vld [vmem:[%s0 + $0x8] sm:$0xff]
    %v50 = vmul.f32 %v48, 5.656854
    %v51 = vmul.f32 %v49, 5.656854
    %v52 = vld [vmem:[%s1] sm:$0xff]
    %v53 = vadd.f32 %v50, %v52
    %v54 = vadd.f32 %v51, %v52
    %v55 = vld [vmem:[%s2] sm:$0x1]
    %v56 = vld [vmem:[%s3] sm:$0x1]
    %vm57 = vcmask 261120
    %v58 = vsel %vm57, %v53, 0.0
    %59 = vadd.xlane.f32.xlu0 %v58
    %v60 = vpop.xlane.xlu0 %59
    %v61 = vsel %vm57, %v54, 0.0
    %62 = vadd.xlane.f32.xlu0 %v61
    %v63 = vpop.xlane.xlu0 %62
    %v64 = vrcp.pop 32.0
    %v65 = vmul.f32 %v60, %v64
    %v66 = vmul.f32 %v63, %v64
    %v67 = vsub.f32 %v53, %v65
    %v68 = vsub.f32 %v54, %v66
    %v69 = vmul.f32 %v67, %v67
    %v70 = vmul.f32 %v68, %v68
    %v71 = vsel %vm57, %v69, 0.0
    %72 = vadd.xlane.f32.xlu0 %v71
    %v73 = vpop.xlane.xlu0 %72
    %v74 = vsel %vm57, %v70, 0.0
    %75 = vadd.xlane.f32.xlu0 %v74
    %v76 = vpop.xlane.xlu0 %75
    %v77 = vmul.f32 %v73, %v64
    %v78 = vmul.f32 %v76, %v64
    %v79 = vadd.f32 %v77, 1e-05
    %v80 = vadd.f32 %v78, 1e-05
    %v81 = vrsqrt.pop %v79
    %v82 = vrsqrt.pop %v80
    %v83 = vmul.f32 %v67, %v81
    %v84 = vmul.f32 %v68, %v82
    %v86 = vlaneseq
    %v87 = vshrl.u32 %v86, 7
    %v88 = vsub.s32 0, %v87
    %v89 = vrot.slane %v55, %v88
    %v91 = vmul.f32 %v83, %v89
    %v92 = vmul.f32 %v84, %v89
    %v94 = vlaneseq
    %v95 = vshrl.u32 %v94, 7
    %v96 = vsub.s32 0, %v95
    %v97 = vrot.slane %v56, %v96
    %v99 = vadd.f32 %v91, %v97
    %v100 = vadd.f32 %v92, %v97
    %v101 = vld [vmem:[%s4] sm:$0xff]
    %v102 = vld [vmem:[%s4 + $0x8] sm:$0xff]
    %v103 = vld [vmem:[%s4 + $0x10] sm:$0xff]
    %v104 = vld [vmem:[%s4 + $0x18] sm:$0xff]
    %v105 = vld [vmem:[%s5] sm:$0x1]
    %v107 = vlaneseq
    %v108 = vshrl.u32 %v107, 7
    %v109 = vsub.s32 0, %v108
    %v110 = vrot.slane %v105, %v109
    %v113 = vsel %vm57, %v99, 0
    %v116 = vsel %vm57, %v100, 0
    %118 = vmatprep.subr.mxu0 0.0
    %119 = vmatpush1.msra.mxu0 %v101
    %120 = vmatprep.subr.mxu0 0.0
    %121 = vmatpush1.msra.mxu0 %v102
    %122 = vmatprep.subr.mxu0 0.0
    %123 = vmatpush1.msra.mxu0 %v103
    %124 = vmatprep.subr.mxu0 0.0
    %125 = vmatpush1.msra.mxu0 %v104
    %126 = vmatprep.subr.mxu0 0.0
    %127 = vmatpush1.msra.mxu0 0.0
    %128 = vmatprep.subr.mxu0 0.0
    %129 = vmatpush1.msra.mxu0 0.0
    %130 = vmatprep.subr.mxu0 0.0
    %131 = vmatpush1.msra.mxu0 0.0
    %132 = vmatprep.subr.mxu0 0.0
    %133 = vmatpush1.msra.mxu0 0.0
    %134 = vmatprep.subr.mxu0 0.0
    %135 = vmatpush1.msra.mxu0 0.0
    %136 = vmatprep.subr.mxu0 0.0
    %137 = vmatpush1.msra.mxu0 0.0
    %138 = vmatprep.subr.mxu0 0.0
    %139 = vmatpush1.msra.mxu0 0.0
    %140 = vmatprep.subr.mxu0 0.0
    %141 = vmatpush1.msra.mxu0 0.0
    %142 = vmatprep.subr.mxu0 0.0
    %143 = vmatpush1.msra.mxu0 0.0
    %144 = vmatprep.subr.mxu0 0.0
    %145 = vmatpush1.msra.mxu0 0.0
    %146 = vmatprep.subr.mxu0 0.0
    %147 = vmatpush1.msra.mxu0 0.0
    %148 = vmatprep.subr.mxu0 0.0
    %149 = vmatpush1.msra.mxu0 0.0
    %150 = vmatprep.subr.mxu0 0.0
    %151 = vmatpush1.msra.mxu0 0.0
    %152 = vmatprep.subr.mxu0 0.0
    %153 = vmatpush1.msra.mxu0 0.0
    %154 = vmatprep.subr.mxu0 0.0
    %155 = vmatpush1.msra.mxu0 0.0
    %156 = vmatprep.subr.mxu0 0.0
    %157 = vmatpush1.msra.mxu0 0.0
    %158 = vmatprep.subr.mxu0 0.0
    %159 = vmatpush1.msra.mxu0 0.0
    %160 = vmatprep.subr.mxu0 0.0
    %161 = vmatpush1.msra.mxu0 0.0
    %162 = vmatprep.subr.mxu0 0.0
    %163 = vmatpush1.msra.mxu0 0.0
    %164 = vmatprep.subr.mxu0 0.0
    %165 = vmatpush1.msra.mxu0 0.0
    %166 = vmatprep.subr.mxu0 0.0
    %167 = vmatpush1.msra.mxu0 0.0
    %168 = vmatprep.subr.mxu0 0.0
    %169 = vmatpush1.msra.mxu0 0.0
    %170 = vmatprep.subr.mxu0 0.0
    %171 = vmatpush1.msra.mxu0 0.0
    %172 = vmatprep.subr.mxu0 0.0
    %173 = vmatpush1.msra.mxu0 0.0
    %174 = vmatprep.subr.mxu0 0.0
    %175 = vmatpush1.msra.mxu0 0.0
    %176 = vmatprep.subr.mxu0 0.0
    %177 = vmatpush1.msra.mxu0 0.0
    %178 = vmatprep.subr.mxu0 0.0
    %179 = vmatpush1.msra.mxu0 0.0
    %180 = vmatprep.subr.mxu0 0.0
    %181 = vmatpush1.msra.mxu0 0.0
    %182 = vmatprep.mubr.f32.mxu0 0.0
    %183 = vmatmul.mubr.f32.gmra.mrb[0].mxu0 %v113
    %v184 = vpop.f32.mrb[0].mxu0
    %v185 = vadd.f32 %v110, %v184
    %v186 = vpop.f32.mrb[0].mxu0
    %187 = vmatprep.mubr.f32.mxu0 0.0
    %188 = vmatmul.mubr.f32.gmra.mrb[0].mxu0 %v116
    %v189 = vpop.f32.mrb[0].mxu0
    %v190 = vadd.f32 %v110, %v189
    %v191 = vpop.f32.mrb[0].mxu0
    %192 = vdwg.mxu0
    %194 = vrot.lane.b32.xlu0 %v185, 96
    %v195 = vpop.permute.xlu0 %194
    %vm196 = vcmask 64512
    %v197 = vsel %vm196, %v185, 0
    %v199 = vsel %vm196, %v195, 0
    %201 = vmatprep.subr.mxu0 0.0
    %202 = vmatpush1.xpose.msra.mxu0 %v199
    %203 = vmatprep.subr.mxu0 0.0
    %204 = vmatpush1.xpose.msra.mxu0 0.0
    %205 = vmatprep.subr.mxu0 0.0
    %206 = vmatpush1.xpose.msra.mxu0 0.0
    %207 = vmatprep.subr.mxu0 0.0
    %208 = vmatpush1.xpose.msra.mxu0 0.0
    %209 = vmatprep.subr.mxu0 0.0
    %210 = vmatpush1.xpose.msra.mxu0 0.0
    %211 = vmatprep.subr.mxu0 0.0
    %212 = vmatpush1.xpose.msra.mxu0 0.0
    %213 = vmatprep.subr.mxu0 0.0
    %214 = vmatpush1.xpose.msra.mxu0 0.0
    %215 = vmatprep.subr.mxu0 0.0
    %216 = vmatpush1.xpose.msra.mxu0 0.0
    %217 = vmatprep.subr.mxu0 0.0
    %218 = vmatpush1.xpose.msra.mxu0 0.0
    %219 = vmatprep.subr.mxu0 0.0
    %220 = vmatpush1.xpose.msra.mxu0 0.0
    %221 = vmatprep.subr.mxu0 0.0
    %222 = vmatpush1.xpose.msra.mxu0 0.0
    %223 = vmatprep.subr.mxu0 0.0
    %224 = vmatpush1.xpose.msra.mxu0 0.0
    %225 = vmatprep.subr.mxu0 0.0
    %226 = vmatpush1.xpose.msra.mxu0 0.0
    %227 = vmatprep.subr.mxu0 0.0
    %228 = vmatpush1.xpose.msra.mxu0 0.0
    %229 = vmatprep.subr.mxu0 0.0
    %230 = vmatpush1.xpose.msra.mxu0 0.0
    %231 = vmatprep.subr.mxu0 0.0
    %232 = vmatpush1.xpose.msra.mxu0 0.0
    %233 = vmatprep.subr.mxu0 0.0
    %234 = vmatpush1.xpose.msra.mxu0 0.0
    %235 = vmatprep.subr.mxu0 0.0
    %236 = vmatpush1.xpose.msra.mxu0 0.0
    %237 = vmatprep.subr.mxu0 0.0
    %238 = vmatpush1.xpose.msra.mxu0 0.0
    %239 = vmatprep.subr.mxu0 0.0
    %240 = vmatpush1.xpose.msra.mxu0 0.0
    %241 = vmatprep.subr.mxu0 0.0
    %242 = vmatpush1.xpose.msra.mxu0 0.0
    %243 = vmatprep.subr.mxu0 0.0
    %244 = vmatpush1.xpose.msra.mxu0 0.0
    %245 = vmatprep.subr.mxu0 0.0
    %246 = vmatpush1.xpose.msra.mxu0 0.0
    %247 = vmatprep.subr.mxu0 0.0
    %248 = vmatpush1.xpose.msra.mxu0 0.0
    %249 = vmatprep.subr.mxu0 0.0
    %250 = vmatpush1.xpose.msra.mxu0 0.0
    %251 = vmatprep.subr.mxu0 0.0
    %252 = vmatpush1.xpose.msra.mxu0 0.0
    %253 = vmatprep.subr.mxu0 0.0
    %254 = vmatpush1.xpose.msra.mxu0 0.0
    %255 = vmatprep.subr.mxu0 0.0
    %256 = vmatpush1.xpose.msra.mxu0 0.0
    %257 = vmatprep.subr.mxu0 0.0
    %258 = vmatpush1.xpose.msra.mxu0 0.0
    %259 = vmatprep.subr.mxu0 0.0
    %260 = vmatpush1.xpose.msra.mxu0 0.0
    %261 = vmatprep.subr.mxu0 0.0
    %262 = vmatpush1.xpose.msra.mxu0 0.0
    %263 = vmatprep.subr.mxu0 0.0
    %264 = vmatpush1.xpose.msra.mxu0 0.0
    %265 = vmatprep.mubr.f32.mxu0 0.0
    %266 = vmatmul.mubr.f32.gmra.mrb[0].mxu0 %v197
    %v267 = vpop.f32.mrb[0].mxu0
    %v268 = vadd.f32 0.0, %v267
    %v269 = vpop.f32.mrb[0].mxu0
    %270 = vdwg.mxu0
    %272 = vrot.lane.b32.xlu0 %v190, 96
    %v273 = vpop.permute.xlu0 %272
    %v274 = vsel %vm196, %v190, 0
    %v276 = vsel %vm196, %v273, 0
    %278 = vmatprep.subr.mxu0 0.0
    %279 = vmatpush1.xpose.msra.mxu0 %v276
    %280 = vmatprep.subr.mxu0 0.0
    %281 = vmatpush1.xpose.msra.mxu0 0.0
    %282 = vmatprep.subr.mxu0 0.0
    %283 = vmatpush1.xpose.msra.mxu0 0.0
    %284 = vmatprep.subr.mxu0 0.0
    %285 = vmatpush1.xpose.msra.mxu0 0.0
    %286 = vmatprep.subr.mxu0 0.0
    %287 = vmatpush1.xpose.msra.mxu0 0.0
    %288 = vmatprep.subr.mxu0 0.0
    %289 = vmatpush1.xpose.msra.mxu0 0.0
    %290 = vmatprep.subr.mxu0 0.0
    %291 = vmatpush1.xpose.msra.mxu0 0.0
    %292 = vmatprep.subr.mxu0 0.0
    %293 = vmatpush1.xpose.msra.mxu0 0.0
    %294 = vmatprep.subr.mxu0 0.0
    %295 = vmatpush1.xpose.msra.mxu0 0.0
    %296 = vmatprep.subr.mxu0 0.0
    %297 = vmatpush1.xpose.msra.mxu0 0.0
    %298 = vmatprep.subr.mxu0 0.0
    %299 = vmatpush1.xpose.msra.mxu0 0.0
    %300 = vmatprep.subr.mxu0 0.0
    %301 = vmatpush1.xpose.msra.mxu0 0.0
    %302 = vmatprep.subr.mxu0 0.0
    %303 = vmatpush1.xpose.msra.mxu0 0.0
    %304 = vmatprep.subr.mxu0 0.0
    %305 = vmatpush1.xpose.msra.mxu0 0.0
    %306 = vmatprep.subr.mxu0 0.0
    %307 = vmatpush1.xpose.msra.mxu0 0.0
    %308 = vmatprep.subr.mxu0 0.0
    %309 = vmatpush1.xpose.msra.mxu0 0.0
    %310 = vmatprep.subr.mxu0 0.0
    %311 = vmatpush1.xpose.msra.mxu0 0.0
    %312 = vmatprep.subr.mxu0 0.0
    %313 = vmatpush1.xpose.msra.mxu0 0.0
    %314 = vmatprep.subr.mxu0 0.0
    %315 = vmatpush1.xpose.msra.mxu0 0.0
    %316 = vmatprep.subr.mxu0 0.0
    %317 = vmatpush1.xpose.msra.mxu0 0.0
    %318 = vmatprep.subr.mxu0 0.0
    %319 = vmatpush1.xpose.msra.mxu0 0.0
    %320 = vmatprep.subr.mxu0 0.0
    %321 = vmatpush1.xpose.msra.mxu0 0.0
    %322 = vmatprep.subr.mxu0 0.0
    %323 = vmatpush1.xpose.msra.mxu0 0.0
    %324 = vmatprep.subr.mxu0 0.0
    %325 = vmatpush1.xpose.msra.mxu0 0.0
    %326 = vmatprep.subr.mxu0 0.0
    %327 = vmatpush1.xpose.msra.mxu0 0.0
    %328 = vmatprep.subr.mxu0 0.0
    %329 = vmatpush1.xpose.msra.mxu0 0.0
    %330 = vmatprep.subr.mxu0 0.0
    %331 = vmatpush1.xpose.msra.mxu0 0.0
    %332 = vmatprep.subr.mxu0 0.0
    %333 = vmatpush1.xpose.msra.mxu0 0.0
    %334 = vmatprep.subr.mxu0 0.0
    %335 = vmatpush1.xpose.msra.mxu0 0.0
    %336 = vmatprep.subr.mxu0 0.0
    %337 = vmatpush1.xpose.msra.mxu0 0.0
    %338 = vmatprep.subr.mxu0 0.0
    %339 = vmatpush1.xpose.msra.mxu0 0.0
    %340 = vmatprep.subr.mxu0 0.0
    %341 = vmatpush1.xpose.msra.mxu0 0.0
    %342 = vmatprep.mubr.f32.mxu0 0.0
    %343 = vmatmul.mubr.f32.gmra.mrb[0].mxu0 %v274
    %v344 = vpop.f32.mrb[0].mxu0
    %v345 = vadd.f32 0.0, %v344
    %v346 = vpop.f32.mrb[0].mxu0
    %347 = vdwg.mxu0
    %v348 = vsel %vm196, %v268, -inf
    %349 = vmax.xlane.f32.xlu0 %v348
    %v350 = vpop.xlane.xlu0 %349
    %v351 = vsel %vm196, %v345, -inf
    %352 = vmax.xlane.f32.xlu0 %v351
    %v353 = vpop.xlane.xlu0 %352
    %v354 = vsub.f32 %v268, %v350
    %v355 = vsub.f32 %v345, %v353
    %v356 = vmul.f32 %v354, 1.442695
    %v357 = vpow.pop %v356
    %v358 = vmul.f32 %v355, 1.442695
    %v359 = vpow.pop %v358
    %v360 = vsel %vm196, %v357, 0.0
    %361 = vadd.xlane.f32.xlu0 %v360
    %v362 = vpop.xlane.xlu0 %361
    %v363 = vsel %vm196, %v359, 0.0
    %364 = vadd.xlane.f32.xlu0 %v363
    %v365 = vpop.xlane.xlu0 %364
    %v366 = vrcp.pop %v362
    %v367 = vmul.f32 %v357, %v366
    %v368 = vrcp.pop %v365
    %v369 = vmul.f32 %v359, %v368
    %370 = vrot.lane.b32.xlu0 %v185, 64
    %v371 = vpop.permute.xlu0 %370
    %v374 = vsel %vm196, %v367, 0
    %376 = vmatprep.subr.mxu0 0.0
    %377 = vmatpush1.msra.mxu0 %v371
    %378 = vmatprep.subr.mxu0 0.0
    %379 = vmatpush1.msra.mxu0 0.0
    %380 = vmatprep.subr.mxu0 0.0
    %381 = vmatpush1.msra.mxu0 0.0
    %382 = vmatprep.subr.mxu0 0.0
    %383 = vmatpush1.msra.mxu0 0.0
    %384 = vmatprep.subr.mxu0 0.0
    %385 = vmatpush1.msra.mxu0 0.0
    %386 = vmatprep.subr.mxu0 0.0
    %387 = vmatpush1.msra.mxu0 0.0
    %388 = vmatprep.subr.mxu0 0.0
    %389 = vmatpush1.msra.mxu0 0.0
    %390 = vmatprep.subr.mxu0 0.0
    %391 = vmatpush1.msra.mxu0 0.0
    %392 = vmatprep.subr.mxu0 0.0
    %393 = vmatpush1.msra.mxu0 0.0
    %394 = vmatprep.subr.mxu0 0.0
    %395 = vmatpush1.msra.mxu0 0.0
    %396 = vmatprep.subr.mxu0 0.0
    %397 = vmatpush1.msra.mxu0 0.0
    %398 = vmatprep.subr.mxu0 0.0
    %399 = vmatpush1.msra.mxu0 0.0
    %400 = vmatprep.subr.mxu0 0.0
    %401 = vmatpush1.msra.mxu0 0.0
    %402 = vmatprep.subr.mxu0 0.0
    %403 = vmatpush1.msra.mxu0 0.0
    %404 = vmatprep.subr.mxu0 0.0
    %405 = vmatpush1.msra.mxu0 0.0
    %406 = vmatprep.subr.mxu0 0.0
    %407 = vmatpush1.msra.mxu0 0.0
    %408 = vmatprep.subr.mxu0 0.0
    %409 = vmatpush1.msra.mxu0 0.0
    %410 = vmatprep.subr.mxu0 0.0
    %411 = vmatpush1.msra.mxu0 0.0
    %412 = vmatprep.subr.mxu0 0.0
    %413 = vmatpush1.msra.mxu0 0.0
    %414 = vmatprep.subr.mxu0 0.0
    %415 = vmatpush1.msra.mxu0 0.0
    %416 = vmatprep.subr.mxu0 0.0
    %417 = vmatpush1.msra.mxu0 0.0
    %418 = vmatprep.subr.mxu0 0.0
    %419 = vmatpush1.msra.mxu0 0.0
    %420 = vmatprep.subr.mxu0 0.0
    %421 = vmatpush1.msra.mxu0 0.0
    %422 = vmatprep.subr.mxu0 0.0
    %423 = vmatpush1.msra.mxu0 0.0
    %424 = vmatprep.subr.mxu0 0.0
    %425 = vmatpush1.msra.mxu0 0.0
    %426 = vmatprep.subr.mxu0 0.0
    %427 = vmatpush1.msra.mxu0 0.0
    %428 = vmatprep.subr.mxu0 0.0
    %429 = vmatpush1.msra.mxu0 0.0
    %430 = vmatprep.subr.mxu0 0.0
    %431 = vmatpush1.msra.mxu0 0.0
    %432 = vmatprep.subr.mxu0 0.0
    %433 = vmatpush1.msra.mxu0 0.0
    %434 = vmatprep.subr.mxu0 0.0
    %435 = vmatpush1.msra.mxu0 0.0
    %436 = vmatprep.subr.mxu0 0.0
    %437 = vmatpush1.msra.mxu0 0.0
    %438 = vmatprep.subr.mxu0 0.0
    %439 = vmatpush1.msra.mxu0 0.0
    %440 = vmatprep.mubr.f32.mxu0 0.0
    %441 = vmatmul.mubr.f32.gmra.mrb[0].mxu0 %v374
    %v442 = vpop.f32.mrb[0].mxu0
    %v443 = vadd.f32 0.0, %v442
    %v444 = vpop.f32.mrb[0].mxu0
    %445 = vdwg.mxu0
    %446 = vrot.lane.b32.xlu0 %v190, 64
    %v447 = vpop.permute.xlu0 %446
    %v450 = vsel %vm196, %v369, 0
    %452 = vmatprep.subr.mxu0 0.0
    %453 = vmatpush1.msra.mxu0 %v447
    %454 = vmatprep.subr.mxu0 0.0
    %455 = vmatpush1.msra.mxu0 0.0
    %456 = vmatprep.subr.mxu0 0.0
    %457 = vmatpush1.msra.mxu0 0.0
    %458 = vmatprep.subr.mxu0 0.0
    %459 = vmatpush1.msra.mxu0 0.0
    %460 = vmatprep.subr.mxu0 0.0
    %461 = vmatpush1.msra.mxu0 0.0
    %462 = vmatprep.subr.mxu0 0.0
    %463 = vmatpush1.msra.mxu0 0.0
    %464 = vmatprep.subr.mxu0 0.0
    %465 = vmatpush1.msra.mxu0 0.0
    %466 = vmatprep.subr.mxu0 0.0
    %467 = vmatpush1.msra.mxu0 0.0
    %468 = vmatprep.subr.mxu0 0.0
    %469 = vmatpush1.msra.mxu0 0.0
    %470 = vmatprep.subr.mxu0 0.0
    %471 = vmatpush1.msra.mxu0 0.0
    %472 = vmatprep.subr.mxu0 0.0
    %473 = vmatpush1.msra.mxu0 0.0
    %474 = vmatprep.subr.mxu0 0.0
    %475 = vmatpush1.msra.mxu0 0.0
    %476 = vmatprep.subr.mxu0 0.0
    %477 = vmatpush1.msra.mxu0 0.0
    %478 = vmatprep.subr.mxu0 0.0
    %479 = vmatpush1.msra.mxu0 0.0
    %480 = vmatprep.subr.mxu0 0.0
    %481 = vmatpush1.msra.mxu0 0.0
    %482 = vmatprep.subr.mxu0 0.0
    %483 = vmatpush1.msra.mxu0 0.0
    %484 = vmatprep.subr.mxu0 0.0
    %485 = vmatpush1.msra.mxu0 0.0
    %486 = vmatprep.subr.mxu0 0.0
    %487 = vmatpush1.msra.mxu0 0.0
    %488 = vmatprep.subr.mxu0 0.0
    %489 = vmatpush1.msra.mxu0 0.0
    %490 = vmatprep.subr.mxu0 0.0
    %491 = vmatpush1.msra.mxu0 0.0
    %492 = vmatprep.subr.mxu0 0.0
    %493 = vmatpush1.msra.mxu0 0.0
    %494 = vmatprep.subr.mxu0 0.0
    %495 = vmatpush1.msra.mxu0 0.0
    %496 = vmatprep.subr.mxu0 0.0
    %497 = vmatpush1.msra.mxu0 0.0
    %498 = vmatprep.subr.mxu0 0.0
    %499 = vmatpush1.msra.mxu0 0.0
    %500 = vmatprep.subr.mxu0 0.0
    %501 = vmatpush1.msra.mxu0 0.0
    %502 = vmatprep.subr.mxu0 0.0
    %503 = vmatpush1.msra.mxu0 0.0
    %504 = vmatprep.subr.mxu0 0.0
    %505 = vmatpush1.msra.mxu0 0.0
    %506 = vmatprep.subr.mxu0 0.0
    %507 = vmatpush1.msra.mxu0 0.0
    %508 = vmatprep.subr.mxu0 0.0
    %509 = vmatpush1.msra.mxu0 0.0
    %510 = vmatprep.subr.mxu0 0.0
    %511 = vmatpush1.msra.mxu0 0.0
    %512 = vmatprep.subr.mxu0 0.0
    %513 = vmatpush1.msra.mxu0 0.0
    %514 = vmatprep.subr.mxu0 0.0
    %515 = vmatpush1.msra.mxu0 0.0
    %516 = vmatprep.mubr.f32.mxu0 0.0
    %517 = vmatmul.mubr.f32.gmra.mrb[0].mxu0 %v450
    %v518 = vpop.f32.mrb[0].mxu0
    %v519 = vadd.f32 0.0, %v518
    %v520 = vpop.f32.mrb[0].mxu0
    %521 = vdwg.mxu0
    %522 = vrot.lane.b32.xlu0 %v185, 120
    %v523 = vpop.permute.xlu0 %522
    %524 = vrot.lane.b32.xlu0 %v185, 88
    %v525 = vpop.permute.xlu0 %524
    %v526 = vsel %vm196, %v523, 0
    %v528 = vsel %vm196, %v525, 0
    %530 = vmatprep.subr.mxu0 0.0
    %531 = vmatpush1.xpose.msra.mxu0 %v528
    %532 = vmatprep.subr.mxu0 0.0
    %533 = vmatpush1.xpose.msra.mxu0 0.0
    %534 = vmatprep.subr.mxu0 0.0
    %535 = vmatpush1.xpose.msra.mxu0 0.0
    %536 = vmatprep.subr.mxu0 0.0
    %537 = vmatpush1.xpose.msra.mxu0 0.0
    %538 = vmatprep.subr.mxu0 0.0
    %539 = vmatpush1.xpose.msra.mxu0 0.0
    %540 = vmatprep.subr.mxu0 0.0
    %541 = vmatpush1.xpose.msra.mxu0 0.0
    %542 = vmatprep.subr.mxu0 0.0
    %543 = vmatpush1.xpose.msra.mxu0 0.0
    %544 = vmatprep.subr.mxu0 0.0
    %545 = vmatpush1.xpose.msra.mxu0 0.0
    %546 = vmatprep.subr.mxu0 0.0
    %547 = vmatpush1.xpose.msra.mxu0 0.0
    %548 = vmatprep.subr.mxu0 0.0
    %549 = vmatpush1.xpose.msra.mxu0 0.0
    %550 = vmatprep.subr.mxu0 0.0
    %551 = vmatpush1.xpose.msra.mxu0 0.0
    %552 = vmatprep.subr.mxu0 0.0
    %553 = vmatpush1.xpose.msra.mxu0 0.0
    %554 = vmatprep.subr.mxu0 0.0
    %555 = vmatpush1.xpose.msra.mxu0 0.0
    %556 = vmatprep.subr.mxu0 0.0
    %557 = vmatpush1.xpose.msra.mxu0 0.0
    %558 = vmatprep.subr.mxu0 0.0
    %559 = vmatpush1.xpose.msra.mxu0 0.0
    %560 = vmatprep.subr.mxu0 0.0
    %561 = vmatpush1.xpose.msra.mxu0 0.0
    %562 = vmatprep.subr.mxu0 0.0
    %563 = vmatpush1.xpose.msra.mxu0 0.0
    %564 = vmatprep.subr.mxu0 0.0
    %565 = vmatpush1.xpose.msra.mxu0 0.0
    %566 = vmatprep.subr.mxu0 0.0
    %567 = vmatpush1.xpose.msra.mxu0 0.0
    %568 = vmatprep.subr.mxu0 0.0
    %569 = vmatpush1.xpose.msra.mxu0 0.0
    %570 = vmatprep.subr.mxu0 0.0
    %571 = vmatpush1.xpose.msra.mxu0 0.0
    %572 = vmatprep.subr.mxu0 0.0
    %573 = vmatpush1.xpose.msra.mxu0 0.0
    %574 = vmatprep.subr.mxu0 0.0
    %575 = vmatpush1.xpose.msra.mxu0 0.0
    %576 = vmatprep.subr.mxu0 0.0
    %577 = vmatpush1.xpose.msra.mxu0 0.0
    %578 = vmatprep.subr.mxu0 0.0
    %579 = vmatpush1.xpose.msra.mxu0 0.0
    %580 = vmatprep.subr.mxu0 0.0
    %581 = vmatpush1.xpose.msra.mxu0 0.0
    %582 = vmatprep.subr.mxu0 0.0
    %583 = vmatpush1.xpose.msra.mxu0 0.0
    %584 = vmatprep.subr.mxu0 0.0
    %585 = vmatpush1.xpose.msra.mxu0 0.0
    %586 = vmatprep.subr.mxu0 0.0
    %587 = vmatpush1.xpose.msra.mxu0 0.0
    %588 = vmatprep.subr.mxu0 0.0
    %589 = vmatpush1.xpose.msra.mxu0 0.0
    %590 = vmatprep.subr.mxu0 0.0
    %591 = vmatpush1.xpose.msra.mxu0 0.0
    %592 = vmatprep.subr.mxu0 0.0
    %593 = vmatpush1.xpose.msra.mxu0 0.0
    %594 = vmatprep.mubr.f32.mxu0 0.0
    %595 = vmatmul.mubr.f32.gmra.mrb[0].mxu0 %v526
    %v596 = vpop.f32.mrb[0].mxu0
    %v597 = vadd.f32 0.0, %v596
    %v598 = vpop.f32.mrb[0].mxu0
    %599 = vdwg.mxu0
    %600 = vrot.lane.b32.xlu0 %v190, 120
    %v601 = vpop.permute.xlu0 %600
    %602 = vrot.lane.b32.xlu0 %v190, 88
    %v603 = vpop.permute.xlu0 %602
    %v604 = vsel %vm196, %v601, 0
    %v606 = vsel %vm196, %v603, 0
    %608 = vmatprep.subr.mxu0 0.0
    %609 = vmatpush1.xpose.msra.mxu0 %v606
    %610 = vmatprep.subr.mxu0 0.0
    %611 = vmatpush1.xpose.msra.mxu0 0.0
    %612 = vmatprep.subr.mxu0 0.0
    %613 = vmatpush1.xpose.msra.mxu0 0.0
    %614 = vmatprep.subr.mxu0 0.0
    %615 = vmatpush1.xpose.msra.mxu0 0.0
    %616 = vmatprep.subr.mxu0 0.0
    %617 = vmatpush1.xpose.msra.mxu0 0.0
    %618 = vmatprep.subr.mxu0 0.0
    %619 = vmatpush1.xpose.msra.mxu0 0.0
    %620 = vmatprep.subr.mxu0 0.0
    %621 = vmatpush1.xpose.msra.mxu0 0.0
    %622 = vmatprep.subr.mxu0 0.0
    %623 = vmatpush1.xpose.msra.mxu0 0.0
    %624 = vmatprep.subr.mxu0 0.0
    %625 = vmatpush1.xpose.msra.mxu0 0.0
    %626 = vmatprep.subr.mxu0 0.0
    %627 = vmatpush1.xpose.msra.mxu0 0.0
    %628 = vmatprep.subr.mxu0 0.0
    %629 = vmatpush1.xpose.msra.mxu0 0.0
    %630 = vmatprep.subr.mxu0 0.0
    %631 = vmatpush1.xpose.msra.mxu0 0.0
    %632 = vmatprep.subr.mxu0 0.0
    %633 = vmatpush1.xpose.msra.mxu0 0.0
    %634 = vmatprep.subr.mxu0 0.0
    %635 = vmatpush1.xpose.msra.mxu0 0.0
    %636 = vmatprep.subr.mxu0 0.0
    %637 = vmatpush1.xpose.msra.mxu0 0.0
    %638 = vmatprep.subr.mxu0 0.0
    %639 = vmatpush1.xpose.msra.mxu0 0.0
    %640 = vmatprep.subr.mxu0 0.0
    %641 = vmatpush1.xpose.msra.mxu0 0.0
    %642 = vmatprep.subr.mxu0 0.0
    %643 = vmatpush1.xpose.msra.mxu0 0.0
    %644 = vmatprep.subr.mxu0 0.0
    %645 = vmatpush1.xpose.msra.mxu0 0.0
    %646 = vmatprep.subr.mxu0 0.0
    %647 = vmatpush1.xpose.msra.mxu0 0.0
    %648 = vmatprep.subr.mxu0 0.0
    %649 = vmatpush1.xpose.msra.mxu0 0.0
    %650 = vmatprep.subr.mxu0 0.0
    %651 = vmatpush1.xpose.msra.mxu0 0.0
    %652 = vmatprep.subr.mxu0 0.0
    %653 = vmatpush1.xpose.msra.mxu0 0.0
    %654 = vmatprep.subr.mxu0 0.0
    %655 = vmatpush1.xpose.msra.mxu0 0.0
    %656 = vmatprep.subr.mxu0 0.0
    %657 = vmatpush1.xpose.msra.mxu0 0.0
    %658 = vmatprep.subr.mxu0 0.0
    %659 = vmatpush1.xpose.msra.mxu0 0.0
    %660 = vmatprep.subr.mxu0 0.0
    %661 = vmatpush1.xpose.msra.mxu0 0.0
    %662 = vmatprep.subr.mxu0 0.0
    %663 = vmatpush1.xpose.msra.mxu0 0.0
    %664 = vmatprep.subr.mxu0 0.0
    %665 = vmatpush1.xpose.msra.mxu0 0.0
    %666 = vmatprep.subr.mxu0 0.0
    %667 = vmatpush1.xpose.msra.mxu0 0.0
    %668 = vmatprep.subr.mxu0 0.0
    %669 = vmatpush1.xpose.msra.mxu0 0.0
    %670 = vmatprep.subr.mxu0 0.0
    %671 = vmatpush1.xpose.msra.mxu0 0.0
    %672 = vmatprep.mubr.f32.mxu0 0.0
    %673 = vmatmul.mubr.f32.gmra.mrb[0].mxu0 %v604
    %v674 = vpop.f32.mrb[0].mxu0
    %v675 = vadd.f32 0.0, %v674
    %v676 = vpop.f32.mrb[0].mxu0
    %677 = vdwg.mxu0
    %v678 = vsel %vm196, %v597, -inf
    %679 = vmax.xlane.f32.xlu0 %v678
    %v680 = vpop.xlane.xlu0 %679
    %v681 = vsel %vm196, %v675, -inf
    %682 = vmax.xlane.f32.xlu0 %v681
    %v683 = vpop.xlane.xlu0 %682
    %v684 = vsub.f32 %v597, %v680
    %v685 = vsub.f32 %v675, %v683
    %v686 = vmul.f32 %v684, 1.442695
    %v687 = vpow.pop %v686
    %v688 = vmul.f32 %v685, 1.442695
    %v689 = vpow.pop %v688
    %v690 = vsel %vm196, %v687, 0.0
    %691 = vadd.xlane.f32.xlu0 %v690
    %v692 = vpop.xlane.xlu0 %691
    %v693 = vsel %vm196, %v689, 0.0
    %694 = vadd.xlane.f32.xlu0 %v693
    %v695 = vpop.xlane.xlu0 %694
    %v696 = vrcp.pop %v692
    %v697 = vmul.f32 %v687, %v696
    %v698 = vrcp.pop %v695
    %v699 = vmul.f32 %v689, %v698
    %700 = vrot.lane.b32.xlu0 %v185, 56
    %v701 = vpop.permute.xlu0 %700
    %v704 = vsel %vm196, %v697, 0
    %706 = vmatprep.subr.mxu0 0.0
    %707 = vmatpush1.msra.mxu0 %v701
    %708 = vmatprep.subr.mxu0 0.0
    %709 = vmatpush1.msra.mxu0 0.0
    %710 = vmatprep.subr.mxu0 0.0
    %711 = vmatpush1.msra.mxu0 0.0
    %712 = vmatprep.subr.mxu0 0.0
    %713 = vmatpush1.msra.mxu0 0.0
    %714 = vmatprep.subr.mxu0 0.0
    %715 = vmatpush1.msra.mxu0 0.0
    %716 = vmatprep.subr.mxu0 0.0
    %717 = vmatpush1.msra.mxu0 0.0
    %718 = vmatprep.subr.mxu0 0.0
    %719 = vmatpush1.msra.mxu0 0.0
    %720 = vmatprep.subr.mxu0 0.0
    %721 = vmatpush1.msra.mxu0 0.0
    %722 = vmatprep.subr.mxu0 0.0
    %723 = vmatpush1.msra.mxu0 0.0
    %724 = vmatprep.subr.mxu0 0.0
    %725 = vmatpush1.msra.mxu0 0.0
    %726 = vmatprep.subr.mxu0 0.0
    %727 = vmatpush1.msra.mxu0 0.0
    %728 = vmatprep.subr.mxu0 0.0
    %729 = vmatpush1.msra.mxu0 0.0
    %730 = vmatprep.subr.mxu0 0.0
    %731 = vmatpush1.msra.mxu0 0.0
    %732 = vmatprep.subr.mxu0 0.0
    %733 = vmatpush1.msra.mxu0 0.0
    %734 = vmatprep.subr.mxu0 0.0
    %735 = vmatpush1.msra.mxu0 0.0
    %736 = vmatprep.subr.mxu0 0.0
    %737 = vmatpush1.msra.mxu0 0.0
    %738 = vmatprep.subr.mxu0 0.0
    %739 = vmatpush1.msra.mxu0 0.0
    %740 = vmatprep.subr.mxu0 0.0
    %741 = vmatpush1.msra.mxu0 0.0
    %742 = vmatprep.subr.mxu0 0.0
    %743 = vmatpush1.msra.mxu0 0.0
    %744 = vmatprep.subr.mxu0 0.0
    %745 = vmatpush1.msra.mxu0 0.0
    %746 = vmatprep.subr.mxu0 0.0
    %747 = vmatpush1.msra.mxu0 0.0
    %748 = vmatprep.subr.mxu0 0.0
    %749 = vmatpush1.msra.mxu0 0.0
    %750 = vmatprep.subr.mxu0 0.0
    %751 = vmatpush1.msra.mxu0 0.0
    %752 = vmatprep.subr.mxu0 0.0
    %753 = vmatpush1.msra.mxu0 0.0
    %754 = vmatprep.subr.mxu0 0.0
    %755 = vmatpush1.msra.mxu0 0.0
    %756 = vmatprep.subr.mxu0 0.0
    %757 = vmatpush1.msra.mxu0 0.0
    %758 = vmatprep.subr.mxu0 0.0
    %759 = vmatpush1.msra.mxu0 0.0
    %760 = vmatprep.subr.mxu0 0.0
    %761 = vmatpush1.msra.mxu0 0.0
    %762 = vmatprep.subr.mxu0 0.0
    %763 = vmatpush1.msra.mxu0 0.0
    %764 = vmatprep.subr.mxu0 0.0
    %765 = vmatpush1.msra.mxu0 0.0
    %766 = vmatprep.subr.mxu0 0.0
    %767 = vmatpush1.msra.mxu0 0.0
    %768 = vmatprep.subr.mxu0 0.0
    %769 = vmatpush1.msra.mxu0 0.0
    %770 = vmatprep.mubr.f32.mxu0 0.0
    %771 = vmatmul.mubr.f32.gmra.mrb[0].mxu0 %v704
    %v772 = vpop.f32.mrb[0].mxu0
    %v773 = vadd.f32 0.0, %v772
    %v774 = vpop.f32.mrb[0].mxu0
    %775 = vdwg.mxu0
    %776 = vrot.lane.b32.xlu0 %v190, 56
    %v777 = vpop.permute.xlu0 %776
    %v780 = vsel %vm196, %v699, 0
    %782 = vmatprep.subr.mxu0 0.0
    %783 = vmatpush1.msra.mxu0 %v777
    %784 = vmatprep.subr.mxu0 0.0
    %785 = vmatpush1.msra.mxu0 0.0
    %786 = vmatprep.subr.mxu0 0.0
    %787 = vmatpush1.msra.mxu0 0.0
    %788 = vmatprep.subr.mxu0 0.0
    %789 = vmatpush1.msra.mxu0 0.0
    %790 = vmatprep.subr.mxu0 0.0
    %791 = vmatpush1.msra.mxu0 0.0
    %792 = vmatprep.subr.mxu0 0.0
    %793 = vmatpush1.msra.mxu0 0.0
    %794 = vmatprep.subr.mxu0 0.0
    %795 = vmatpush1.msra.mxu0 0.0
    %796 = vmatprep.subr.mxu0 0.0
    %797 = vmatpush1.msra.mxu0 0.0
    %798 = vmatprep.subr.mxu0 0.0
    %799 = vmatpush1.msra.mxu0 0.0
    %800 = vmatprep.subr.mxu0 0.0
    %801 = vmatpush1.msra.mxu0 0.0
    %802 = vmatprep.subr.mxu0 0.0
    %803 = vmatpush1.msra.mxu0 0.0
    %804 = vmatprep.subr.mxu0 0.0
    %805 = vmatpush1.msra.mxu0 0.0
    %806 = vmatprep.subr.mxu0 0.0
    %807 = vmatpush1.msra.mxu0 0.0
    %808 = vmatprep.subr.mxu0 0.0
    %809 = vmatpush1.msra.mxu0 0.0
    %810 = vmatprep.subr.mxu0 0.0
    %811 = vmatpush1.msra.mxu0 0.0
    %812 = vmatprep.subr.mxu0 0.0
    %813 = vmatpush1.msra.mxu0 0.0
    %814 = vmatprep.subr.mxu0 0.0
    %815 = vmatpush1.msra.mxu0 0.0
    %816 = vmatprep.subr.mxu0 0.0
    %817 = vmatpush1.msra.mxu0 0.0
    %818 = vmatprep.subr.mxu0 0.0
    %819 = vmatpush1.msra.mxu0 0.0
    %820 = vmatprep.subr.mxu0 0.0
    %821 = vmatpush1.msra.mxu0 0.0
    %822 = vmatprep.subr.mxu0 0.0
    %823 = vmatpush1.msra.mxu0 0.0
    %824 = vmatprep.subr.mxu0 0.0
    %825 = vmatpush1.msra.mxu0 0.0
    %826 = vmatprep.subr.mxu0 0.0
    %827 = vmatpush1.msra.mxu0 0.0
    %828 = vmatprep.subr.mxu0 0.0
    %829 = vmatpush1.msra.mxu0 0.0
    %830 = vmatprep.subr.mxu0 0.0
    %831 = vmatpush1.msra.mxu0 0.0
    %832 = vmatprep.subr.mxu0 0.0
    %833 = vmatpush1.msra.mxu0 0.0
    %834 = vmatprep.subr.mxu0 0.0
    %835 = vmatpush1.msra.mxu0 0.0
    %836 = vmatprep.subr.mxu0 0.0
    %837 = vmatpush1.msra.mxu0 0.0
    %838 = vmatprep.subr.mxu0 0.0
    %839 = vmatpush1.msra.mxu0 0.0
    %840 = vmatprep.subr.mxu0 0.0
    %841 = vmatpush1.msra.mxu0 0.0
    %842 = vmatprep.subr.mxu0 0.0
    %843 = vmatpush1.msra.mxu0 0.0
    %844 = vmatprep.subr.mxu0 0.0
    %845 = vmatpush1.msra.mxu0 0.0
    %846 = vmatprep.mubr.f32.mxu0 0.0
    %847 = vmatmul.mubr.f32.gmra.mrb[0].mxu0 %v780
    %v848 = vpop.f32.mrb[0].mxu0
    %v849 = vadd.f32 0.0, %v848
    %v850 = vpop.f32.mrb[0].mxu0
    %851 = vdwg.mxu0
    %852 = vrot.lane.b32.xlu0 %v185, 112
    %v853 = vpop.permute.xlu0 %852
    %854 = vrot.lane.b32.xlu0 %v185, 80
    %v855 = vpop.permute.xlu0 %854
    %v856 = vsel %vm196, %v853, 0
    %v858 = vsel %vm196, %v855, 0
    %860 = vmatprep.subr.mxu0 0.0
    %861 = vmatpush1.xpose.msra.mxu0 %v858
    %862 = vmatprep.subr.mxu0 0.0
    %863 = vmatpush1.xpose.msra.mxu0 0.0
    %864 = vmatprep.subr.mxu0 0.0
    %865 = vmatpush1.xpose.msra.mxu0 0.0
    %866 = vmatprep.subr.mxu0 0.0
    %867 = vmatpush1.xpose.msra.mxu0 0.0
    %868 = vmatprep.subr.mxu0 0.0
    %869 = vmatpush1.xpose.msra.mxu0 0.0
    %870 = vmatprep.subr.mxu0 0.0
    %871 = vmatpush1.xpose.msra.mxu0 0.0
    %872 = vmatprep.subr.mxu0 0.0
    %873 = vmatpush1.xpose.msra.mxu0 0.0
    %874 = vmatprep.subr.mxu0 0.0
    %875 = vmatpush1.xpose.msra.mxu0 0.0
    %876 = vmatprep.subr.mxu0 0.0
    %877 = vmatpush1.xpose.msra.mxu0 0.0
    %878 = vmatprep.subr.mxu0 0.0
    %879 = vmatpush1.xpose.msra.mxu0 0.0
    %880 = vmatprep.subr.mxu0 0.0
    %881 = vmatpush1.xpose.msra.mxu0 0.0
    %882 = vmatprep.subr.mxu0 0.0
    %883 = vmatpush1.xpose.msra.mxu0 0.0
    %884 = vmatprep.subr.mxu0 0.0
    %885 = vmatpush1.xpose.msra.mxu0 0.0
    %886 = vmatprep.subr.mxu0 0.0
    %887 = vmatpush1.xpose.msra.mxu0 0.0
    %888 = vmatprep.subr.mxu0 0.0
    %889 = vmatpush1.xpose.msra.mxu0 0.0
    %890 = vmatprep.subr.mxu0 0.0
    %891 = vmatpush1.xpose.msra.mxu0 0.0
    %892 = vmatprep.subr.mxu0 0.0
    %893 = vmatpush1.xpose.msra.mxu0 0.0
    %894 = vmatprep.subr.mxu0 0.0
    %895 = vmatpush1.xpose.msra.mxu0 0.0
    %896 = vmatprep.subr.mxu0 0.0
    %897 = vmatpush1.xpose.msra.mxu0 0.0
    %898 = vmatprep.subr.mxu0 0.0
    %899 = vmatpush1.xpose.msra.mxu0 0.0
    %900 = vmatprep.subr.mxu0 0.0
    %901 = vmatpush1.xpose.msra.mxu0 0.0
    %902 = vmatprep.subr.mxu0 0.0
    %903 = vmatpush1.xpose.msra.mxu0 0.0
    %904 = vmatprep.subr.mxu0 0.0
    %905 = vmatpush1.xpose.msra.mxu0 0.0
    %906 = vmatprep.subr.mxu0 0.0
    %907 = vmatpush1.xpose.msra.mxu0 0.0
    %908 = vmatprep.subr.mxu0 0.0
    %909 = vmatpush1.xpose.msra.mxu0 0.0
    %910 = vmatprep.subr.mxu0 0.0
    %911 = vmatpush1.xpose.msra.mxu0 0.0
    %912 = vmatprep.subr.mxu0 0.0
    %913 = vmatpush1.xpose.msra.mxu0 0.0
    %914 = vmatprep.subr.mxu0 0.0
    %915 = vmatpush1.xpose.msra.mxu0 0.0
    %916 = vmatprep.subr.mxu0 0.0
    %917 = vmatpush1.xpose.msra.mxu0 0.0
    %918 = vmatprep.subr.mxu0 0.0
    %919 = vmatpush1.xpose.msra.mxu0 0.0
    %920 = vmatprep.subr.mxu0 0.0
    %921 = vmatpush1.xpose.msra.mxu0 0.0
    %922 = vmatprep.subr.mxu0 0.0
    %923 = vmatpush1.xpose.msra.mxu0 0.0
    %924 = vmatprep.mubr.f32.mxu0 0.0
    %925 = vmatmul.mubr.f32.gmra.mrb[0].mxu0 %v856
    %v926 = vpop.f32.mrb[0].mxu0
    %v927 = vadd.f32 0.0, %v926
    %v928 = vpop.f32.mrb[0].mxu0
    %929 = vdwg.mxu0
    %930 = vrot.lane.b32.xlu0 %v190, 112
    %v931 = vpop.permute.xlu0 %930
    %932 = vrot.lane.b32.xlu0 %v190, 80
    %v933 = vpop.permute.xlu0 %932
    %v934 = vsel %vm196, %v931, 0
    %v936 = vsel %vm196, %v933, 0
    %938 = vmatprep.subr.mxu0 0.0
    %939 = vmatpush1.xpose.msra.mxu0 %v936
    %940 = vmatprep.subr.mxu0 0.0
    %941 = vmatpush1.xpose.msra.mxu0 0.0
    %942 = vmatprep.subr.mxu0 0.0
    %943 = vmatpush1.xpose.msra.mxu0 0.0
    %944 = vmatprep.subr.mxu0 0.0
    %945 = vmatpush1.xpose.msra.mxu0 0.0
    %946 = vmatprep.subr.mxu0 0.0
    %947 = vmatpush1.xpose.msra.mxu0 0.0
    %948 = vmatprep.subr.mxu0 0.0
    %949 = vmatpush1.xpose.msra.mxu0 0.0
    %950 = vmatprep.subr.mxu0 0.0
    %951 = vmatpush1.xpose.msra.mxu0 0.0
    %952 = vmatprep.subr.mxu0 0.0
    %953 = vmatpush1.xpose.msra.mxu0 0.0
    %954 = vmatprep.subr.mxu0 0.0
    %955 = vmatpush1.xpose.msra.mxu0 0.0
    %956 = vmatprep.subr.mxu0 0.0
    %957 = vmatpush1.xpose.msra.mxu0 0.0
    %958 = vmatprep.subr.mxu0 0.0
    %959 = vmatpush1.xpose.msra.mxu0 0.0
    %960 = vmatprep.subr.mxu0 0.0
    %961 = vmatpush1.xpose.msra.mxu0 0.0
    %962 = vmatprep.subr.mxu0 0.0
    %963 = vmatpush1.xpose.msra.mxu0 0.0
    %964 = vmatprep.subr.mxu0 0.0
    %965 = vmatpush1.xpose.msra.mxu0 0.0
    %966 = vmatprep.subr.mxu0 0.0
    %967 = vmatpush1.xpose.msra.mxu0 0.0
    %968 = vmatprep.subr.mxu0 0.0
    %969 = vmatpush1.xpose.msra.mxu0 0.0
    %970 = vmatprep.subr.mxu0 0.0
    %971 = vmatpush1.xpose.msra.mxu0 0.0
    %972 = vmatprep.subr.mxu0 0.0
    %973 = vmatpush1.xpose.msra.mxu0 0.0
    %974 = vmatprep.subr.mxu0 0.0
    %975 = vmatpush1.xpose.msra.mxu0 0.0
    %976 = vmatprep.subr.mxu0 0.0
    %977 = vmatpush1.xpose.msra.mxu0 0.0
    %978 = vmatprep.subr.mxu0 0.0
    %979 = vmatpush1.xpose.msra.mxu0 0.0
    %980 = vmatprep.subr.mxu0 0.0
    %981 = vmatpush1.xpose.msra.mxu0 0.0
    %982 = vmatprep.subr.mxu0 0.0
    %983 = vmatpush1.xpose.msra.mxu0 0.0
    %984 = vmatprep.subr.mxu0 0.0
    %985 = vmatpush1.xpose.msra.mxu0 0.0
    %986 = vmatprep.subr.mxu0 0.0
    %987 = vmatpush1.xpose.msra.mxu0 0.0
    %988 = vmatprep.subr.mxu0 0.0
    %989 = vmatpush1.xpose.msra.mxu0 0.0
    %990 = vmatprep.subr.mxu0 0.0
    %991 = vmatpush1.xpose.msra.mxu0 0.0
    %992 = vmatprep.subr.mxu0 0.0
    %993 = vmatpush1.xpose.msra.mxu0 0.0
    %994 = vmatprep.subr.mxu0 0.0
    %995 = vmatpush1.xpose.msra.mxu0 0.0
    %996 = vmatprep.subr.mxu0 0.0
    %997 = vmatpush1.xpose.msra.mxu0 0.0
    %998 = vmatprep.subr.mxu0 0.0
    %999 = vmatpush1.xpose.msra.mxu0 0.0
    %1000 = vmatprep.subr.mxu0 0.0
    %1001 = vmatpush1.xpose.msra.mxu0 0.0
    %1002 = vmatprep.mubr.f32.mxu0 0.0
    %1003 = vmatmul.mubr.f32.gmra.mrb[0].mxu0 %v934
    %v1004 = vpop.f32.mrb[0].mxu0
    %v1005 = vadd.f32 0.0, %v1004
    %v1006 = vpop.f32.mrb[0].mxu0
    %1007 = vdwg.mxu0
    %v1008 = vsel %vm196, %v927, -inf
    %1009 = vmax.xlane.f32.xlu0 %v1008
    %v1010 = vpop.xlane.xlu0 %1009
    %v1011 = vsel %vm196, %v1005, -inf
    %1012 = vmax.xlane.f32.xlu0 %v1011
    %v1013 = vpop.xlane.xlu0 %1012
    %v1014 = vsub.f32 %v927, %v1010
    %v1015 = vsub.f32 %v1005, %v1013
    %v1016 = vmul.f32 %v1014, 1.442695
    %v1017 = vpow.pop %v1016
    %v1018 = vmul.f32 %v1015, 1.442695
    %v1019 = vpow.pop %v1018
    %v1020 = vsel %vm196, %v1017, 0.0
    %1021 = vadd.xlane.f32.xlu0 %v1020
    %v1022 = vpop.xlane.xlu0 %1021
    %v1023 = vsel %vm196, %v1019, 0.0
    %1024 = vadd.xlane.f32.xlu0 %v1023
    %v1025 = vpop.xlane.xlu0 %1024
    %v1026 = vrcp.pop %v1022
    %v1027 = vmul.f32 %v1017, %v1026
    %v1028 = vrcp.pop %v1025
    %v1029 = vmul.f32 %v1019, %v1028
    %1030 = vrot.lane.b32.xlu0 %v185, 48
    %v1031 = vpop.permute.xlu0 %1030
    %v1034 = vsel %vm196, %v1027, 0
    %1036 = vmatprep.subr.mxu0 0.0
    %1037 = vmatpush1.msra.mxu0 %v1031
    %1038 = vmatprep.subr.mxu0 0.0
    %1039 = vmatpush1.msra.mxu0 0.0
    %1040 = vmatprep.subr.mxu0 0.0
    %1041 = vmatpush1.msra.mxu0 0.0
    %1042 = vmatprep.subr.mxu0 0.0
    %1043 = vmatpush1.msra.mxu0 0.0
    %1044 = vmatprep.subr.mxu0 0.0
    %1045 = vmatpush1.msra.mxu0 0.0
    %1046 = vmatprep.subr.mxu0 0.0
    %1047 = vmatpush1.msra.mxu0 0.0
    %1048 = vmatprep.subr.mxu0 0.0
    %1049 = vmatpush1.msra.mxu0 0.0
    %1050 = vmatprep.subr.mxu0 0.0
    %1051 = vmatpush1.msra.mxu0 0.0
    %1052 = vmatprep.subr.mxu0 0.0
    %1053 = vmatpush1.msra.mxu0 0.0
    %1054 = vmatprep.subr.mxu0 0.0
    %1055 = vmatpush1.msra.mxu0 0.0
    %1056 = vmatprep.subr.mxu0 0.0
    %1057 = vmatpush1.msra.mxu0 0.0
    %1058 = vmatprep.subr.mxu0 0.0
    %1059 = vmatpush1.msra.mxu0 0.0
    %1060 = vmatprep.subr.mxu0 0.0
    %1061 = vmatpush1.msra.mxu0 0.0
    %1062 = vmatprep.subr.mxu0 0.0
    %1063 = vmatpush1.msra.mxu0 0.0
    %1064 = vmatprep.subr.mxu0 0.0
    %1065 = vmatpush1.msra.mxu0 0.0
    %1066 = vmatprep.subr.mxu0 0.0
    %1067 = vmatpush1.msra.mxu0 0.0
    %1068 = vmatprep.subr.mxu0 0.0
    %1069 = vmatpush1.msra.mxu0 0.0
    %1070 = vmatprep.subr.mxu0 0.0
    %1071 = vmatpush1.msra.mxu0 0.0
    %1072 = vmatprep.subr.mxu0 0.0
    %1073 = vmatpush1.msra.mxu0 0.0
    %1074 = vmatprep.subr.mxu0 0.0
    %1075 = vmatpush1.msra.mxu0 0.0
    %1076 = vmatprep.subr.mxu0 0.0
    %1077 = vmatpush1.msra.mxu0 0.0
    %1078 = vmatprep.subr.mxu0 0.0
    %1079 = vmatpush1.msra.mxu0 0.0
    %1080 = vmatprep.subr.mxu0 0.0
    %1081 = vmatpush1.msra.mxu0 0.0
    %1082 = vmatprep.subr.mxu0 0.0
    %1083 = vmatpush1.msra.mxu0 0.0
    %1084 = vmatprep.subr.mxu0 0.0
    %1085 = vmatpush1.msra.mxu0 0.0
    %1086 = vmatprep.subr.mxu0 0.0
    %1087 = vmatpush1.msra.mxu0 0.0
    %1088 = vmatprep.subr.mxu0 0.0
    %1089 = vmatpush1.msra.mxu0 0.0
    %1090 = vmatprep.subr.mxu0 0.0
    %1091 = vmatpush1.msra.mxu0 0.0
    %1092 = vmatprep.subr.mxu0 0.0
    %1093 = vmatpush1.msra.mxu0 0.0
    %1094 = vmatprep.subr.mxu0 0.0
    %1095 = vmatpush1.msra.mxu0 0.0
    %1096 = vmatprep.subr.mxu0 0.0
    %1097 = vmatpush1.msra.mxu0 0.0
    %1098 = vmatprep.subr.mxu0 0.0
    %1099 = vmatpush1.msra.mxu0 0.0
    %1100 = vmatprep.mubr.f32.mxu0 0.0
    %1101 = vmatmul.mubr.f32.gmra.mrb[0].mxu0 %v1034
    %v1102 = vpop.f32.mrb[0].mxu0
    %v1103 = vadd.f32 0.0, %v1102
    %v1104 = vpop.f32.mrb[0].mxu0
    %1105 = vdwg.mxu0
    %1106 = vrot.lane.b32.xlu0 %v190, 48
    %v1107 = vpop.permute.xlu0 %1106
    %v1110 = vsel %vm196, %v1029, 0
    %1112 = vmatprep.subr.mxu0 0.0
    %1113 = vmatpush1.msra.mxu0 %v1107
    %1114 = vmatprep.subr.mxu0 0.0
    %1115 = vmatpush1.msra.mxu0 0.0
    %1116 = vmatprep.subr.mxu0 0.0
    %1117 = vmatpush1.msra.mxu0 0.0
    %1118 = vmatprep.subr.mxu0 0.0
    %1119 = vmatpush1.msra.mxu0 0.0
    %1120 = vmatprep.subr.mxu0 0.0
    %1121 = vmatpush1.msra.mxu0 0.0
    %1122 = vmatprep.subr.mxu0 0.0
    %1123 = vmatpush1.msra.mxu0 0.0
    %1124 = vmatprep.subr.mxu0 0.0
    %1125 = vmatpush1.msra.mxu0 0.0
    %1126 = vmatprep.subr.mxu0 0.0
    %1127 = vmatpush1.msra.mxu0 0.0
    %1128 = vmatprep.subr.mxu0 0.0
    %1129 = vmatpush1.msra.mxu0 0.0
    %1130 = vmatprep.subr.mxu0 0.0
    %1131 = vmatpush1.msra.mxu0 0.0
    %1132 = vmatprep.subr.mxu0 0.0
    %1133 = vmatpush1.msra.mxu0 0.0
    %1134 = vmatprep.subr.mxu0 0.0
    %1135 = vmatpush1.msra.mxu0 0.0
    %1136 = vmatprep.subr.mxu0 0.0
    %1137 = vmatpush1.msra.mxu0 0.0
    %1138 = vmatprep.subr.mxu0 0.0
    %1139 = vmatpush1.msra.mxu0 0.0
    %1140 = vmatprep.subr.mxu0 0.0
    %1141 = vmatpush1.msra.mxu0 0.0
    %1142 = vmatprep.subr.mxu0 0.0
    %1143 = vmatpush1.msra.mxu0 0.0
    %1144 = vmatprep.subr.mxu0 0.0
    %1145 = vmatpush1.msra.mxu0 0.0
    %1146 = vmatprep.subr.mxu0 0.0
    %1147 = vmatpush1.msra.mxu0 0.0
    %1148 = vmatprep.subr.mxu0 0.0
    %1149 = vmatpush1.msra.mxu0 0.0
    %1150 = vmatprep.subr.mxu0 0.0
    %1151 = vmatpush1.msra.mxu0 0.0
    %1152 = vmatprep.subr.mxu0 0.0
    %1153 = vmatpush1.msra.mxu0 0.0
    %1154 = vmatprep.subr.mxu0 0.0
    %1155 = vmatpush1.msra.mxu0 0.0
    %1156 = vmatprep.subr.mxu0 0.0
    %1157 = vmatpush1.msra.mxu0 0.0
    %1158 = vmatprep.subr.mxu0 0.0
    %1159 = vmatpush1.msra.mxu0 0.0
    %1160 = vmatprep.subr.mxu0 0.0
    %1161 = vmatpush1.msra.mxu0 0.0
    %1162 = vmatprep.subr.mxu0 0.0
    %1163 = vmatpush1.msra.mxu0 0.0
    %1164 = vmatprep.subr.mxu0 0.0
    %1165 = vmatpush1.msra.mxu0 0.0
    %1166 = vmatprep.subr.mxu0 0.0
    %1167 = vmatpush1.msra.mxu0 0.0
    %1168 = vmatprep.subr.mxu0 0.0
    %1169 = vmatpush1.msra.mxu0 0.0
    %1170 = vmatprep.subr.mxu0 0.0
    %1171 = vmatpush1.msra.mxu0 0.0
    %1172 = vmatprep.subr.mxu0 0.0
    %1173 = vmatpush1.msra.mxu0 0.0
    %1174 = vmatprep.subr.mxu0 0.0
    %1175 = vmatpush1.msra.mxu0 0.0
    %1176 = vmatprep.mubr.f32.mxu0 0.0
    %1177 = vmatmul.mubr.f32.gmra.mrb[0].mxu0 %v1110
    %v1178 = vpop.f32.mrb[0].mxu0
    %v1179 = vadd.f32 0.0, %v1178
    %v1180 = vpop.f32.mrb[0].mxu0
    %1181 = vdwg.mxu0
    %1182 = vrot.lane.b32.xlu0 %v185, 104
    %v1183 = vpop.permute.xlu0 %1182
    %1184 = vrot.lane.b32.xlu0 %v185, 72
    %v1185 = vpop.permute.xlu0 %1184
    %v1186 = vsel %vm196, %v1183, 0
    %v1188 = vsel %vm196, %v1185, 0
    %1190 = vmatprep.subr.mxu0 0.0
    %1191 = vmatpush1.xpose.msra.mxu0 %v1188
    %1192 = vmatprep.subr.mxu0 0.0
    %1193 = vmatpush1.xpose.msra.mxu0 0.0
    %1194 = vmatprep.subr.mxu0 0.0
    %1195 = vmatpush1.xpose.msra.mxu0 0.0
    %1196 = vmatprep.subr.mxu0 0.0
    %1197 = vmatpush1.xpose.msra.mxu0 0.0
    %1198 = vmatprep.subr.mxu0 0.0
    %1199 = vmatpush1.xpose.msra.mxu0 0.0
    %1200 = vmatprep.subr.mxu0 0.0
    %1201 = vmatpush1.xpose.msra.mxu0 0.0
    %1202 = vmatprep.subr.mxu0 0.0
    %1203 = vmatpush1.xpose.msra.mxu0 0.0
    %1204 = vmatprep.subr.mxu0 0.0
    %1205 = vmatpush1.xpose.msra.mxu0 0.0
    %1206 = vmatprep.subr.mxu0 0.0
    %1207 = vmatpush1.xpose.msra.mxu0 0.0
    %1208 = vmatprep.subr.mxu0 0.0
    %1209 = vmatpush1.xpose.msra.mxu0 0.0
    %1210 = vmatprep.subr.mxu0 0.0
    %1211 = vmatpush1.xpose.msra.mxu0 0.0
    %1212 = vmatprep.subr.mxu0 0.0
    %1213 = vmatpush1.xpose.msra.mxu0 0.0
    %1214 = vmatprep.subr.mxu0 0.0
    %1215 = vmatpush1.xpose.msra.mxu0 0.0
    %1216 = vmatprep.subr.mxu0 0.0
    %1217 = vmatpush1.xpose.msra.mxu0 0.0
    %1218 = vmatprep.subr.mxu0 0.0
    %1219 = vmatpush1.xpose.msra.mxu0 0.0
    %1220 = vmatprep.subr.mxu0 0.0
    %1221 = vmatpush1.xpose.msra.mxu0 0.0
    %1222 = vmatprep.subr.mxu0 0.0
    %1223 = vmatpush1.xpose.msra.mxu0 0.0
    %1224 = vmatprep.subr.mxu0 0.0
    %1225 = vmatpush1.xpose.msra.mxu0 0.0
    %1226 = vmatprep.subr.mxu0 0.0
    %1227 = vmatpush1.xpose.msra.mxu0 0.0
    %1228 = vmatprep.subr.mxu0 0.0
    %1229 = vmatpush1.xpose.msra.mxu0 0.0
    %1230 = vmatprep.subr.mxu0 0.0
    %1231 = vmatpush1.xpose.msra.mxu0 0.0
    %1232 = vmatprep.subr.mxu0 0.0
    %1233 = vmatpush1.xpose.msra.mxu0 0.0
    %1234 = vmatprep.subr.mxu0 0.0
    %1235 = vmatpush1.xpose.msra.mxu0 0.0
    %1236 = vmatprep.subr.mxu0 0.0
    %1237 = vmatpush1.xpose.msra.mxu0 0.0
    %1238 = vmatprep.subr.mxu0 0.0
    %1239 = vmatpush1.xpose.msra.mxu0 0.0
    %1240 = vmatprep.subr.mxu0 0.0
    %1241 = vmatpush1.xpose.msra.mxu0 0.0
    %1242 = vmatprep.subr.mxu0 0.0
    %1243 = vmatpush1.xpose.msra.mxu0 0.0
    %1244 = vmatprep.subr.mxu0 0.0
    %1245 = vmatpush1.xpose.msra.mxu0 0.0
    %1246 = vmatprep.subr.mxu0 0.0
    %1247 = vmatpush1.xpose.msra.mxu0 0.0
    %1248 = vmatprep.subr.mxu0 0.0
    %1249 = vmatpush1.xpose.msra.mxu0 0.0
    %1250 = vmatprep.subr.mxu0 0.0
    %1251 = vmatpush1.xpose.msra.mxu0 0.0
    %1252 = vmatprep.subr.mxu0 0.0
    %1253 = vmatpush1.xpose.msra.mxu0 0.0
    %1254 = vmatprep.mubr.f32.mxu0 0.0
    %1255 = vmatmul.mubr.f32.gmra.mrb[0].mxu0 %v1186
    %v1256 = vpop.f32.mrb[0].mxu0
    %v1257 = vadd.f32 0.0, %v1256
    %v1258 = vpop.f32.mrb[0].mxu0
    %1259 = vdwg.mxu0
    %1260 = vrot.lane.b32.xlu0 %v190, 104
    %v1261 = vpop.permute.xlu0 %1260
    %1262 = vrot.lane.b32.xlu0 %v190, 72
    %v1263 = vpop.permute.xlu0 %1262
    %v1264 = vsel %vm196, %v1261, 0
    %v1266 = vsel %vm196, %v1263, 0
    %1268 = vmatprep.subr.mxu0 0.0
    %1269 = vmatpush1.xpose.msra.mxu0 %v1266
    %1270 = vmatprep.subr.mxu0 0.0
    %1271 = vmatpush1.xpose.msra.mxu0 0.0
    %1272 = vmatprep.subr.mxu0 0.0
    %1273 = vmatpush1.xpose.msra.mxu0 0.0
    %1274 = vmatprep.subr.mxu0 0.0
    %1275 = vmatpush1.xpose.msra.mxu0 0.0
    %1276 = vmatprep.subr.mxu0 0.0
    %1277 = vmatpush1.xpose.msra.mxu0 0.0
    %1278 = vmatprep.subr.mxu0 0.0
    %1279 = vmatpush1.xpose.msra.mxu0 0.0
    %1280 = vmatprep.subr.mxu0 0.0
    %1281 = vmatpush1.xpose.msra.mxu0 0.0
    %1282 = vmatprep.subr.mxu0 0.0
    %1283 = vmatpush1.xpose.msra.mxu0 0.0
    %1284 = vmatprep.subr.mxu0 0.0
    %1285 = vmatpush1.xpose.msra.mxu0 0.0
    %1286 = vmatprep.subr.mxu0 0.0
    %1287 = vmatpush1.xpose.msra.mxu0 0.0
    %1288 = vmatprep.subr.mxu0 0.0
    %1289 = vmatpush1.xpose.msra.mxu0 0.0
    %1290 = vmatprep.subr.mxu0 0.0
    %1291 = vmatpush1.xpose.msra.mxu0 0.0
    %1292 = vmatprep.subr.mxu0 0.0
    %1293 = vmatpush1.xpose.msra.mxu0 0.0
    %1294 = vmatprep.subr.mxu0 0.0
    %1295 = vmatpush1.xpose.msra.mxu0 0.0
    %1296 = vmatprep.subr.mxu0 0.0
    %1297 = vmatpush1.xpose.msra.mxu0 0.0
    %1298 = vmatprep.subr.mxu0 0.0
    %1299 = vmatpush1.xpose.msra.mxu0 0.0
    %1300 = vmatprep.subr.mxu0 0.0
    %1301 = vmatpush1.xpose.msra.mxu0 0.0
    %1302 = vmatprep.subr.mxu0 0.0
    %1303 = vmatpush1.xpose.msra.mxu0 0.0
    %1304 = vmatprep.subr.mxu0 0.0
    %1305 = vmatpush1.xpose.msra.mxu0 0.0
    %1306 = vmatprep.subr.mxu0 0.0
    %1307 = vmatpush1.xpose.msra.mxu0 0.0
    %1308 = vmatprep.subr.mxu0 0.0
    %1309 = vmatpush1.xpose.msra.mxu0 0.0
    %1310 = vmatprep.subr.mxu0 0.0
    %1311 = vmatpush1.xpose.msra.mxu0 0.0
    %1312 = vmatprep.subr.mxu0 0.0
    %1313 = vmatpush1.xpose.msra.mxu0 0.0
    %1314 = vmatprep.subr.mxu0 0.0
    %1315 = vmatpush1.xpose.msra.mxu0 0.0
    %1316 = vmatprep.subr.mxu0 0.0
    %1317 = vmatpush1.xpose.msra.mxu0 0.0
    %1318 = vmatprep.subr.mxu0 0.0
    %1319 = vmatpush1.xpose.msra.mxu0 0.0
    %1320 = vmatprep.subr.mxu0 0.0
    %1321 = vmatpush1.xpose.msra.mxu0 0.0
    %1322 = vmatprep.subr.mxu0 0.0
    %1323 = vmatpush1.xpose.msra.mxu0 0.0
    %1324 = vmatprep.subr.mxu0 0.0
    %1325 = vmatpush1.xpose.msra.mxu0 0.0
    %1326 = vmatprep.subr.mxu0 0.0
    %1327 = vmatpush1.xpose.msra.mxu0 0.0
    %1328 = vmatprep.subr.mxu0 0.0
    %1329 = vmatpush1.xpose.msra.mxu0 0.0
    %1330 = vmatprep.subr.mxu0 0.0
    %1331 = vmatpush1.xpose.msra.mxu0 0.0
    %1332 = vmatprep.mubr.f32.mxu0 0.0
    %1333 = vmatmul.mubr.f32.gmra.mrb[0].mxu0 %v1264
    %v1334 = vpop.f32.mrb[0].mxu0
    %v1335 = vadd.f32 0.0, %v1334
    %v1336 = vpop.f32.mrb[0].mxu0
    %1337 = vdwg.mxu0
    %v1338 = vsel %vm196, %v1257, -inf
    %1339 = vmax.xlane.f32.xlu0 %v1338
    %v1340 = vpop.xlane.xlu0 %1339
    %v1341 = vsel %vm196, %v1335, -inf
    %1342 = vmax.xlane.f32.xlu0 %v1341
    %v1343 = vpop.xlane.xlu0 %1342
    %v1344 = vsub.f32 %v1257, %v1340
    %v1345 = vsub.f32 %v1335, %v1343
    %v1346 = vmul.f32 %v1344, 1.442695
    %v1347 = vpow.pop %v1346
    %v1348 = vmul.f32 %v1345, 1.442695
    %v1349 = vpow.pop %v1348
    %v1350 = vsel %vm196, %v1347, 0.0
    %1351 = vadd.xlane.f32.xlu0 %v1350
    %v1352 = vpop.xlane.xlu0 %1351
    %v1353 = vsel %vm196, %v1349, 0.0
    %1354 = vadd.xlane.f32.xlu0 %v1353
    %v1355 = vpop.xlane.xlu0 %1354
    %v1356 = vrcp.pop %v1352
    %v1357 = vmul.f32 %v1347, %v1356
    %v1358 = vrcp.pop %v1355
    %v1359 = vmul.f32 %v1349, %v1358
    %1360 = vrot.lane.b32.xlu0 %v185, 40
    %v1361 = vpop.permute.xlu0 %1360
    %v1364 = vsel %vm196, %v1357, 0
    %1366 = vmatprep.subr.mxu0 0.0
    %1367 = vmatpush1.msra.mxu0 %v1361
    %1368 = vmatprep.subr.mxu0 0.0
    %1369 = vmatpush1.msra.mxu0 0.0
    %1370 = vmatprep.subr.mxu0 0.0
    %1371 = vmatpush1.msra.mxu0 0.0
    %1372 = vmatprep.subr.mxu0 0.0
    %1373 = vmatpush1.msra.mxu0 0.0
    %1374 = vmatprep.subr.mxu0 0.0
    %1375 = vmatpush1.msra.mxu0 0.0
    %1376 = vmatprep.subr.mxu0 0.0
    %1377 = vmatpush1.msra.mxu0 0.0
    %1378 = vmatprep.subr.mxu0 0.0
    %1379 = vmatpush1.msra.mxu0 0.0
    %1380 = vmatprep.subr.mxu0 0.0
    %1381 = vmatpush1.msra.mxu0 0.0
    %1382 = vmatprep.subr.mxu0 0.0
    %1383 = vmatpush1.msra.mxu0 0.0
    %1384 = vmatprep.subr.mxu0 0.0
    %1385 = vmatpush1.msra.mxu0 0.0
    %1386 = vmatprep.subr.mxu0 0.0
    %1387 = vmatpush1.msra.mxu0 0.0
    %1388 = vmatprep.subr.mxu0 0.0
    %1389 = vmatpush1.msra.mxu0 0.0
    %1390 = vmatprep.subr.mxu0 0.0
    %1391 = vmatpush1.msra.mxu0 0.0
    %1392 = vmatprep.subr.mxu0 0.0
    %1393 = vmatpush1.msra.mxu0 0.0
    %1394 = vmatprep.subr.mxu0 0.0
    %1395 = vmatpush1.msra.mxu0 0.0
    %1396 = vmatprep.subr.mxu0 0.0
    %1397 = vmatpush1.msra.mxu0 0.0
    %1398 = vmatprep.subr.mxu0 0.0
    %1399 = vmatpush1.msra.mxu0 0.0
    %1400 = vmatprep.subr.mxu0 0.0
    %1401 = vmatpush1.msra.mxu0 0.0
    %1402 = vmatprep.subr.mxu0 0.0
    %1403 = vmatpush1.msra.mxu0 0.0
    %1404 = vmatprep.subr.mxu0 0.0
    %1405 = vmatpush1.msra.mxu0 0.0
    %1406 = vmatprep.subr.mxu0 0.0
    %1407 = vmatpush1.msra.mxu0 0.0
    %1408 = vmatprep.subr.mxu0 0.0
    %1409 = vmatpush1.msra.mxu0 0.0
    %1410 = vmatprep.subr.mxu0 0.0
    %1411 = vmatpush1.msra.mxu0 0.0
    %1412 = vmatprep.subr.mxu0 0.0
    %1413 = vmatpush1.msra.mxu0 0.0
    %1414 = vmatprep.subr.mxu0 0.0
    %1415 = vmatpush1.msra.mxu0 0.0
    %1416 = vmatprep.subr.mxu0 0.0
    %1417 = vmatpush1.msra.mxu0 0.0
    %1418 = vmatprep.subr.mxu0 0.0
    %1419 = vmatpush1.msra.mxu0 0.0
    %1420 = vmatprep.subr.mxu0 0.0
    %1421 = vmatpush1.msra.mxu0 0.0
    %1422 = vmatprep.subr.mxu0 0.0
    %1423 = vmatpush1.msra.mxu0 0.0
    %1424 = vmatprep.subr.mxu0 0.0
    %1425 = vmatpush1.msra.mxu0 0.0
    %1426 = vmatprep.subr.mxu0 0.0
    %1427 = vmatpush1.msra.mxu0 0.0
    %1428 = vmatprep.subr.mxu0 0.0
    %1429 = vmatpush1.msra.mxu0 0.0
    %1430 = vmatprep.mubr.f32.mxu0 0.0
    %1431 = vmatmul.mubr.f32.gmra.mrb[0].mxu0 %v1364
    %v1432 = vpop.f32.mrb[0].mxu0
    %v1433 = vadd.f32 0.0, %v1432
    %v1434 = vpop.f32.mrb[0].mxu0
    %1435 = vdwg.mxu0
    %1436 = vrot.lane.b32.xlu0 %v190, 40
    %v1437 = vpop.permute.xlu0 %1436
    %v1440 = vsel %vm196, %v1359, 0
    %1442 = vmatprep.subr.mxu0 0.0
    %1443 = vmatpush1.msra.mxu0 %v1437
    %1444 = vmatprep.subr.mxu0 0.0
    %1445 = vmatpush1.msra.mxu0 0.0
    %1446 = vmatprep.subr.mxu0 0.0
    %1447 = vmatpush1.msra.mxu0 0.0
    %1448 = vmatprep.subr.mxu0 0.0
    %1449 = vmatpush1.msra.mxu0 0.0
    %1450 = vmatprep.subr.mxu0 0.0
    %1451 = vmatpush1.msra.mxu0 0.0
    %1452 = vmatprep.subr.mxu0 0.0
    %1453 = vmatpush1.msra.mxu0 0.0
    %1454 = vmatprep.subr.mxu0 0.0
    %1455 = vmatpush1.msra.mxu0 0.0
    %1456 = vmatprep.subr.mxu0 0.0
    %1457 = vmatpush1.msra.mxu0 0.0
    %1458 = vmatprep.subr.mxu0 0.0
    %1459 = vmatpush1.msra.mxu0 0.0
    %1460 = vmatprep.subr.mxu0 0.0
    %1461 = vmatpush1.msra.mxu0 0.0
    %1462 = vmatprep.subr.mxu0 0.0
    %1463 = vmatpush1.msra.mxu0 0.0
    %1464 = vmatprep.subr.mxu0 0.0
    %1465 = vmatpush1.msra.mxu0 0.0
    %1466 = vmatprep.subr.mxu0 0.0
    %1467 = vmatpush1.msra.mxu0 0.0
    %1468 = vmatprep.subr.mxu0 0.0
    %1469 = vmatpush1.msra.mxu0 0.0
    %1470 = vmatprep.subr.mxu0 0.0
    %1471 = vmatpush1.msra.mxu0 0.0
    %1472 = vmatprep.subr.mxu0 0.0
    %1473 = vmatpush1.msra.mxu0 0.0
    %1474 = vmatprep.subr.mxu0 0.0
    %1475 = vmatpush1.msra.mxu0 0.0
    %1476 = vmatprep.subr.mxu0 0.0
    %1477 = vmatpush1.msra.mxu0 0.0
    %1478 = vmatprep.subr.mxu0 0.0
    %1479 = vmatpush1.msra.mxu0 0.0
    %1480 = vmatprep.subr.mxu0 0.0
    %1481 = vmatpush1.msra.mxu0 0.0
    %1482 = vmatprep.subr.mxu0 0.0
    %1483 = vmatpush1.msra.mxu0 0.0
    %1484 = vmatprep.subr.mxu0 0.0
    %1485 = vmatpush1.msra.mxu0 0.0
    %1486 = vmatprep.subr.mxu0 0.0
    %1487 = vmatpush1.msra.mxu0 0.0
    %1488 = vmatprep.subr.mxu0 0.0
    %1489 = vmatpush1.msra.mxu0 0.0
    %1490 = vmatprep.subr.mxu0 0.0
    %1491 = vmatpush1.msra.mxu0 0.0
    %1492 = vmatprep.subr.mxu0 0.0
    %1493 = vmatpush1.msra.mxu0 0.0
    %1494 = vmatprep.subr.mxu0 0.0
    %1495 = vmatpush1.msra.mxu0 0.0
    %1496 = vmatprep.subr.mxu0 0.0
    %1497 = vmatpush1.msra.mxu0 0.0
    %1498 = vmatprep.subr.mxu0 0.0
    %1499 = vmatpush1.msra.mxu0 0.0
    %1500 = vmatprep.subr.mxu0 0.0
    %1501 = vmatpush1.msra.mxu0 0.0
    %1502 = vmatprep.subr.mxu0 0.0
    %1503 = vmatpush1.msra.mxu0 0.0
    %1504 = vmatprep.subr.mxu0 0.0
    %1505 = vmatpush1.msra.mxu0 0.0
    %1506 = vmatprep.mubr.f32.mxu0 0.0
    %1507 = vmatmul.mubr.f32.gmra.mrb[0].mxu0 %v1440
    %v1508 = vpop.f32.mrb[0].mxu0
    %v1509 = vadd.f32 0.0, %v1508
    %v1510 = vpop.f32.mrb[0].mxu0
    %1511 = vdwg.mxu0
    %1514 = vrot.lane.b32.xlu0 %v773, 8
    %v1515 = vpop.permute.xlu0 %1514
    %1516 = vrot.lane.b32.xlu0 %v849, 8
    %v1517 = vpop.permute.xlu0 %1516
    %1522 = vrot.lane.b32.xlu0 %v1103, 16
    %v1523 = vpop.permute.xlu0 %1522
    %1524 = vrot.lane.b32.xlu0 %v1179, 16
    %v1525 = vpop.permute.xlu0 %1524
    %1530 = vrot.lane.b32.xlu0 %v1433, 24
    %v1531 = vpop.permute.xlu0 %1530
    %1532 = vrot.lane.b32.xlu0 %v1509, 24
    %v1533 = vpop.permute.xlu0 %1532
    %v1536 = vsel %vm196, %v443, %v1515
    %v1537 = vsel %vm196, %v519, %v1517
    %vm1538 = vcmask 130048
    %v1539 = vsel %vm1538, %v1536, %v1523
    %v1540 = vsel %vm1538, %v1537, %v1525
    %vm1541 = vcmask 195584
    %v1542 = vsel %vm1541, %v1539, %v1531
    %v1543 = vsel %vm1541, %v1540, %v1533
    %v1544 = vadd.f32 %v1542, %v99
    %v1545 = vadd.f32 %v1543, %v100
    %v1546 = vld [vmem:[%s6] sm:$0x1]
    %v1547 = vld [vmem:[%s7] sm:$0x1]
    %v1548 = vsel %vm57, %v1544, 0.0
    %1549 = vadd.xlane.f32.xlu0 %v1548
    %v1550 = vpop.xlane.xlu0 %1549
    %v1551 = vsel %vm57, %v1545, 0.0
    %1552 = vadd.xlane.f32.xlu0 %v1551
    %v1553 = vpop.xlane.xlu0 %1552
    %v1554 = vmul.f32 %v1550, %v64
    %v1555 = vmul.f32 %v1553, %v64
    %v1556 = vsub.f32 %v1544, %v1554
    %v1557 = vsub.f32 %v1545, %v1555
    %v1558 = vmul.f32 %v1556, %v1556
    %v1559 = vmul.f32 %v1557, %v1557
    %v1560 = vsel %vm57, %v1558, 0.0
    %1561 = vadd.xlane.f32.xlu0 %v1560
    %v1562 = vpop.xlane.xlu0 %1561
    %v1563 = vsel %vm57, %v1559, 0.0
    %1564 = vadd.xlane.f32.xlu0 %v1563
    %v1565 = vpop.xlane.xlu0 %1564
    %v1566 = vmul.f32 %v1562, %v64
    %v1567 = vmul.f32 %v1565, %v64
    %v1568 = vadd.f32 %v1566, 1e-05
    %v1569 = vadd.f32 %v1567, 1e-05
    %v1570 = vrsqrt.pop %v1568
    %v1571 = vrsqrt.pop %v1569
    %v1572 = vmul.f32 %v1556, %v1570
    %v1573 = vmul.f32 %v1557, %v1571
    %v1575 = vlaneseq
    %v1576 = vshrl.u32 %v1575, 7
    %v1577 = vsub.s32 0, %v1576
    %v1578 = vrot.slane %v1546, %v1577
    %v1580 = vmul.f32 %v1572, %v1578
    %v1581 = vmul.f32 %v1573, %v1578
    %v1583 = vlaneseq
    %v1584 = vshrl.u32 %v1583, 7
    %v1585 = vsub.s32 0, %v1584
    %v1586 = vrot.slane %v1547, %v1585
    %v1588 = vadd.f32 %v1580, %v1586
    %v1589 = vadd.f32 %v1581, %v1586
    %v1590 = vld [vmem:[%s8] sm:$0xff]
    %v1591 = vld [vmem:[%s8 + $0x8] sm:$0xff]
    %v1592 = vld [vmem:[%s8 + $0x10] sm:$0xff]
    %v1593 = vld [vmem:[%s8 + $0x18] sm:$0xff]
    %v1594 = vld [vmem:[%s9] sm:$0x1]
    %v1596 = vlaneseq
    %v1597 = vshrl.u32 %v1596, 7
    %v1598 = vsub.s32 0, %v1597
    %v1599 = vrot.slane %v1594, %v1598
    %v1602 = vsel %vm57, %v1588, 0
    %v1605 = vsel %vm57, %v1589, 0
    %1607 = vmatprep.subr.mxu0 0.0
    %1608 = vmatpush1.msra.mxu0 %v1590
    %1609 = vmatprep.subr.mxu0 0.0
    %1610 = vmatpush1.msra.mxu0 %v1591
    %1611 = vmatprep.subr.mxu0 0.0
    %1612 = vmatpush1.msra.mxu0 %v1592
    %1613 = vmatprep.subr.mxu0 0.0
    %1614 = vmatpush1.msra.mxu0 %v1593
    %1615 = vmatprep.subr.mxu0 0.0
    %1616 = vmatpush1.msra.mxu0 0.0
    %1617 = vmatprep.subr.mxu0 0.0
    %1618 = vmatpush1.msra.mxu0 0.0
    %1619 = vmatprep.subr.mxu0 0.0
    %1620 = vmatpush1.msra.mxu0 0.0
    %1621 = vmatprep.subr.mxu0 0.0
    %1622 = vmatpush1.msra.mxu0 0.0
    %1623 = vmatprep.subr.mxu0 0.0
    %1624 = vmatpush1.msra.mxu0 0.0
    %1625 = vmatprep.subr.mxu0 0.0
    %1626 = vmatpush1.msra.mxu0 0.0
    %1627 = vmatprep.subr.mxu0 0.0
    %1628 = vmatpush1.msra.mxu0 0.0
    %1629 = vmatprep.subr.mxu0 0.0
    %1630 = vmatpush1.msra.mxu0 0.0
    %1631 = vmatprep.subr.mxu0 0.0
    %1632 = vmatpush1.msra.mxu0 0.0
    %1633 = vmatprep.subr.mxu0 0.0
    %1634 = vmatpush1.msra.mxu0 0.0
    %1635 = vmatprep.subr.mxu0 0.0
    %1636 = vmatpush1.msra.mxu0 0.0
    %1637 = vmatprep.subr.mxu0 0.0
    %1638 = vmatpush1.msra.mxu0 0.0
    %1639 = vmatprep.subr.mxu0 0.0
    %1640 = vmatpush1.msra.mxu0 0.0
    %1641 = vmatprep.subr.mxu0 0.0
    %1642 = vmatpush1.msra.mxu0 0.0
    %1643 = vmatprep.subr.mxu0 0.0
    %1644 = vmatpush1.msra.mxu0 0.0
    %1645 = vmatprep.subr.mxu0 0.0
    %1646 = vmatpush1.msra.mxu0 0.0
    %1647 = vmatprep.subr.mxu0 0.0
    %1648 = vmatpush1.msra.mxu0 0.0
    %1649 = vmatprep.subr.mxu0 0.0
    %1650 = vmatpush1.msra.mxu0 0.0
    %1651 = vmatprep.subr.mxu0 0.0
    %1652 = vmatpush1.msra.mxu0 0.0
    %1653 = vmatprep.subr.mxu0 0.0
    %1654 = vmatpush1.msra.mxu0 0.0
    %1655 = vmatprep.subr.mxu0 0.0
    %1656 = vmatpush1.msra.mxu0 0.0
    %1657 = vmatprep.subr.mxu0 0.0
    %1658 = vmatpush1.msra.mxu0 0.0
    %1659 = vmatprep.subr.mxu0 0.0
    %1660 = vmatpush1.msra.mxu0 0.0
    %1661 = vmatprep.subr.mxu0 0.0
    %1662 = vmatpush1.msra.mxu0 0.0
    %1663 = vmatprep.subr.mxu0 0.0
    %1664 = vmatpush1.msra.mxu0 0.0
    %1665 = vmatprep.subr.mxu0 0.0
    %1666 = vmatpush1.msra.mxu0 0.0
    %1667 = vmatprep.subr.mxu0 0.0
    %1668 = vmatpush1.msra.mxu0 0.0
    %1669 = vmatprep.subr.mxu0 0.0
    %1670 = vmatpush1.msra.mxu0 0.0
    %1671 = vmatprep.mubr.f32.mxu0 0.0
    %1672 = vmatmul.mubr.f32.gmra.mrb[0].mxu0 %v1602
    %v1673 = vpop.f32.mrb[0].mxu0
    %v1674 = vadd.f32 %v1599, %v1673
    %v1675 = vpop.f32.mrb[0].mxu0
    %1676 = vmatprep.mubr.f32.mxu0 0.0
    %1677 = vmatmul.mubr.f32.gmra.mrb[0].mxu0 %v1605
    %v1678 = vpop.f32.mrb[0].mxu0
    %v1679 = vadd.f32 %v1599, %v1678
    %v1680 = vpop.f32.mrb[0].mxu0
    %1681 = vdwg.mxu0
    %v1682 = vmax.f32 %v1674, 0.0
    %v1683 = vmax.f32 %v1679, 0.0
    %v1684 = vld [vmem:[%s10] sm:$0xff]
    %v1685 = vld [vmem:[%s10 + $0x8] sm:$0xff]
    %v1686 = vld [vmem:[%s10 + $0x10] sm:$0xff]
    %v1687 = vld [vmem:[%s10 + $0x18] sm:$0xff]
    %v1688 = vld [vmem:[%s10 + $0x20] sm:$0xff]
    %v1689 = vld [vmem:[%s10 + $0x28] sm:$0xff]
    %v1690 = vld [vmem:[%s10 + $0x30] sm:$0xff]
    %v1691 = vld [vmem:[%s10 + $0x38] sm:$0xff]
    %v1692 = vld [vmem:[%s11] sm:$0x1]
    %v1694 = vlaneseq
    %v1695 = vshrl.u32 %v1694, 7
    %v1696 = vsub.s32 0, %v1695
    %v1697 = vrot.slane %v1692, %v1696
    %vm1699 = vcmask 523264
    %v1701 = vsel %vm1699, %v1682, 0
    %v1704 = vsel %vm1699, %v1683, 0
    %1706 = vmatprep.subr.mxu0 0.0
    %1707 = vmatpush1.msra.mxu0 %v1684
    %1708 = vmatprep.subr.mxu0 0.0
    %1709 = vmatpush1.msra.mxu0 %v1685
    %1710 = vmatprep.subr.mxu0 0.0
    %1711 = vmatpush1.msra.mxu0 %v1686
    %1712 = vmatprep.subr.mxu0 0.0
    %1713 = vmatpush1.msra.mxu0 %v1687
    %1714 = vmatprep.subr.mxu0 0.0
    %1715 = vmatpush1.msra.mxu0 %v1688
    %1716 = vmatprep.subr.mxu0 0.0
    %1717 = vmatpush1.msra.mxu0 %v1689
    %1718 = vmatprep.subr.mxu0 0.0
    %1719 = vmatpush1.msra.mxu0 %v1690
    %1720 = vmatprep.subr.mxu0 0.0
    %1721 = vmatpush1.msra.mxu0 %v1691
    %1722 = vmatprep.subr.mxu0 0.0
    %1723 = vmatpush1.msra.mxu0 0.0
    %1724 = vmatprep.subr.mxu0 0.0
    %1725 = vmatpush1.msra.mxu0 0.0
    %1726 = vmatprep.subr.mxu0 0.0
    %1727 = vmatpush1.msra.mxu0 0.0
    %1728 = vmatprep.subr.mxu0 0.0
    %1729 = vmatpush1.msra.mxu0 0.0
    %1730 = vmatprep.subr.mxu0 0.0
    %1731 = vmatpush1.msra.mxu0 0.0
    %1732 = vmatprep.subr.mxu0 0.0
    %1733 = vmatpush1.msra.mxu0 0.0
    %1734 = vmatprep.subr.mxu0 0.0
    %1735 = vmatpush1.msra.mxu0 0.0
    %1736 = vmatprep.subr.mxu0 0.0
    %1737 = vmatpush1.msra.mxu0 0.0
    %1738 = vmatprep.subr.mxu0 0.0
    %1739 = vmatpush1.msra.mxu0 0.0
    %1740 = vmatprep.subr.mxu0 0.0
    %1741 = vmatpush1.msra.mxu0 0.0
    %1742 = vmatprep.subr.mxu0 0.0
    %1743 = vmatpush1.msra.mxu0 0.0
    %1744 = vmatprep.subr.mxu0 0.0
    %1745 = vmatpush1.msra.mxu0 0.0
    %1746 = vmatprep.subr.mxu0 0.0
    %1747 = vmatpush1.msra.mxu0 0.0
    %1748 = vmatprep.subr.mxu0 0.0
    %1749 = vmatpush1.msra.mxu0 0.0
    %1750 = vmatprep.subr.mxu0 0.0
    %1751 = vmatpush1.msra.mxu0 0.0
    %1752 = vmatprep.subr.mxu0 0.0
    %1753 = vmatpush1.msra.mxu0 0.0
    %1754 = vmatprep.subr.mxu0 0.0
    %1755 = vmatpush1.msra.mxu0 0.0
    %1756 = vmatprep.subr.mxu0 0.0
    %1757 = vmatpush1.msra.mxu0 0.0
    %1758 = vmatprep.subr.mxu0 0.0
    %1759 = vmatpush1.msra.mxu0 0.0
    %1760 = vmatprep.subr.mxu0 0.0
    %1761 = vmatpush1.msra.mxu0 0.0
    %1762 = vmatprep.subr.mxu0 0.0
    %1763 = vmatpush1.msra.mxu0 0.0
    %1764 = vmatprep.subr.mxu0 0.0
    %1765 = vmatpush1.msra.mxu0 0.0
    %1766 = vmatprep.subr.mxu0 0.0
    %1767 = vmatpush1.msra.mxu0 0.0
    %1768 = vmatprep.subr.mxu0 0.0
    %1769 = vmatpush1.msra.mxu0 0.0
    %1770 = vmatprep.mubr.f32.mxu0 0.0
    %1771 = vmatmul.mubr.f32.gmra.mrb[0].mxu0 %v1701
    %v1772 = vpop.f32.mrb[0].mxu0
    %v1773 = vadd.f32 %v1697, %v1772
    %v1774 = vpop.f32.mrb[0].mxu0
    %1775 = vmatprep.mubr.f32.mxu0 0.0
    %1776 = vmatmul.mubr.f32.gmra.mrb[0].mxu0 %v1704
    %v1777 = vpop.f32.mrb[0].mxu0
    %v1778 = vadd.f32 %v1697, %v1777
    %v1779 = vpop.f32.mrb[0].mxu0
    %1780 = vdwg.mxu0
    %v1781 = vadd.f32 %v1773, %v1588
    %v1782 = vadd.f32 %v1778, %v1589
    %v1783 = vld [vmem:[%s12] sm:$0x1]
    %v1784 = vld [vmem:[%s13] sm:$0x1]
    %v1785 = vsel %vm57, %v1781, 0.0
    %1786 = vadd.xlane.f32.xlu0 %v1785
    %v1787 = vpop.xlane.xlu0 %1786
    %v1788 = vsel %vm57, %v1782, 0.0
    %1789 = vadd.xlane.f32.xlu0 %v1788
    %v1790 = vpop.xlane.xlu0 %1789
    %v1791 = vmul.f32 %v1787, %v64
    %v1792 = vmul.f32 %v1790, %v64
    %v1793 = vsub.f32 %v1781, %v1791
    %v1794 = vsub.f32 %v1782, %v1792
    %v1795 = vmul.f32 %v1793, %v1793
    %v1796 = vmul.f32 %v1794, %v1794
    %v1797 = vsel %vm57, %v1795, 0.0
    %1798 = vadd.xlane.f32.xlu0 %v1797
    %v1799 = vpop.xlane.xlu0 %1798
    %v1800 = vsel %vm57, %v1796, 0.0
    %1801 = vadd.xlane.f32.xlu0 %v1800
    %v1802 = vpop.xlane.xlu0 %1801
    %v1803 = vmul.f32 %v1799, %v64
    %v1804 = vmul.f32 %v1802, %v64
    %v1805 = vadd.f32 %v1803, 1e-05
    %v1806 = vadd.f32 %v1804, 1e-05
    %v1807 = vrsqrt.pop %v1805
    %v1808 = vrsqrt.pop %v1806
    %v1809 = vmul.f32 %v1793, %v1807
    %v1810 = vmul.f32 %v1794, %v1808
    %v1812 = vlaneseq
    %v1813 = vshrl.u32 %v1812, 7
    %v1814 = vsub.s32 0, %v1813
    %v1815 = vrot.slane %v1783, %v1814
    %v1817 = vmul.f32 %v1809, %v1815
    %v1818 = vmul.f32 %v1810, %v1815
    %v1820 = vlaneseq
    %v1821 = vshrl.u32 %v1820, 7
    %v1822 = vsub.s32 0, %v1821
    %v1823 = vrot.slane %v1784, %v1822
    %v1825 = vadd.f32 %v1817, %v1823
    %v1826 = vadd.f32 %v1818, %v1823
    %s1827 = scalar_lea.vmem %s4, 32
    %v1828 = vld [vmem:[%s1827] sm:$0xff]
    %v1829 = vld [vmem:[%s1827 + $0x8] sm:$0xff]
    %v1830 = vld [vmem:[%s1827 + $0x10] sm:$0xff]
    %v1831 = vld [vmem:[%s1827 + $0x18] sm:$0xff]
    %s1832 = scalar_lea.vmem %s5, 1
    %v1833 = vld [vmem:[%s1832] sm:$0x1]
    %v1835 = vlaneseq
    %v1836 = vshrl.u32 %v1835, 7
    %v1837 = vsub.s32 0, %v1836
    %v1838 = vrot.slane %v1833, %v1837
    %v1841 = vsel %vm57, %v1825, 0
    %v1844 = vsel %vm57, %v1826, 0
    %1846 = vmatprep.subr.mxu0 0.0
    %1847 = vmatpush1.msra.mxu0 %v1828
    %1848 = vmatprep.subr.mxu0 0.0
    %1849 = vmatpush1.msra.mxu0 %v1829
    %1850 = vmatprep.subr.mxu0 0.0
    %1851 = vmatpush1.msra.mxu0 %v1830
    %1852 = vmatprep.subr.mxu0 0.0
    %1853 = vmatpush1.msra.mxu0 %v1831
    %1854 = vmatprep.subr.mxu0 0.0
    %1855 = vmatpush1.msra.mxu0 0.0
    %1856 = vmatprep.subr.mxu0 0.0
    %1857 = vmatpush1.msra.mxu0 0.0
    %1858 = vmatprep.subr.mxu0 0.0
    %1859 = vmatpush1.msra.mxu0 0.0
    %1860 = vmatprep.subr.mxu0 0.0
    %1861 = vmatpush1.msra.mxu0 0.0
    %1862 = vmatprep.subr.mxu0 0.0
    %1863 = vmatpush1.msra.mxu0 0.0
    %1864 = vmatprep.subr.mxu0 0.0
    %1865 = vmatpush1.msra.mxu0 0.0
    %1866 = vmatprep.subr.mxu0 0.0
    %1867 = vmatpush1.msra.mxu0 0.0
    %1868 = vmatprep.subr.mxu0 0.0
    %1869 = vmatpush1.msra.mxu0 0.0
    %1870 = vmatprep.subr.mxu0 0.0
    %1871 = vmatpush1.msra.mxu0 0.0
    %1872 = vmatprep.subr.mxu0 0.0
    %1873 = vmatpush1.msra.mxu0 0.0
    %1874 = vmatprep.subr.mxu0 0.0
    %1875 = vmatpush1.msra.mxu0 0.0
    %1876 = vmatprep.subr.mxu0 0.0
    %1877 = vmatpush1.msra.mxu0 0.0
    %1878 = vmatprep.subr.mxu0 0.0
    %1879 = vmatpush1.msra.mxu0 0.0
    %1880 = vmatprep.subr.mxu0 0.0
    %1881 = vmatpush1.msra.mxu0 0.0
    %1882 = vmatprep.subr.mxu0 0.0
    %1883 = vmatpush1.msra.mxu0 0.0
    %1884 = vmatprep.subr.mxu0 0.0
    %1885 = vmatpush1.msra.mxu0 0.0
    %1886 = vmatprep.subr.mxu0 0.0
    %1887 = vmatpush1.msra.mxu0 0.0
    %1888 = vmatprep.subr.mxu0 0.0
    %1889 = vmatpush1.msra.mxu0 0.0
    %1890 = vmatprep.subr.mxu0 0.0
    %1891 = vmatpush1.msra.mxu0 0.0
    %1892 = vmatprep.subr.mxu0 0.0
    %1893 = vmatpush1.msra.mxu0 0.0
    %1894 = vmatprep.subr.mxu0 0.0
    %1895 = vmatpush1.msra.mxu0 0.0
    %1896 = vmatprep.subr.mxu0 0.0
    %1897 = vmatpush1.msra.mxu0 0.0
    %1898 = vmatprep.subr.mxu0 0.0
    %1899 = vmatpush1.msra.mxu0 0.0
    %1900 = vmatprep.subr.mxu0 0.0
    %1901 = vmatpush1.msra.mxu0 0.0
    %1902 = vmatprep.subr.mxu0 0.0
    %1903 = vmatpush1.msra.mxu0 0.0
    %1904 = vmatprep.subr.mxu0 0.0
    %1905 = vmatpush1.msra.mxu0 0.0
    %1906 = vmatprep.subr.mxu0 0.0
    %1907 = vmatpush1.msra.mxu0 0.0
    %1908 = vmatprep.subr.mxu0 0.0
    %1909 = vmatpush1.msra.mxu0 0.0
    %1910 = vmatprep.mubr.f32.mxu0 0.0
    %1911 = vmatmul.mubr.f32.gmra.mrb[0].mxu0 %v1841
    %v1912 = vpop.f32.mrb[0].mxu0
    %v1913 = vadd.f32 %v1838, %v1912
    %v1914 = vpop.f32.mrb[0].mxu0
    %1915 = vmatprep.mubr.f32.mxu0 0.0
    %1916 = vmatmul.mubr.f32.gmra.mrb[0].mxu0 %v1844
    %v1917 = vpop.f32.mrb[0].mxu0
    %v1918 = vadd.f32 %v1838, %v1917
    %v1919 = vpop.f32.mrb[0].mxu0
    %1920 = vdwg.mxu0
    %1922 = vrot.lane.b32.xlu0 %v1913, 96
    %v1923 = vpop.permute.xlu0 %1922
    %v1924 = vsel %vm196, %v1913, 0
    %v1926 = vsel %vm196, %v1923, 0
    %1928 = vmatprep.subr.mxu0 0.0
    %1929 = vmatpush1.xpose.msra.mxu0 %v1926
    %1930 = vmatprep.subr.mxu0 0.0
    %1931 = vmatpush1.xpose.msra.mxu0 0.0
    %1932 = vmatprep.subr.mxu0 0.0
    %1933 = vmatpush1.xpose.msra.mxu0 0.0
    %1934 = vmatprep.subr.mxu0 0.0
    %1935 = vmatpush1.xpose.msra.mxu0 0.0
    %1936 = vmatprep.subr.mxu0 0.0
    %1937 = vmatpush1.xpose.msra.mxu0 0.0
    %1938 = vmatprep.subr.mxu0 0.0
    %1939 = vmatpush1.xpose.msra.mxu0 0.0
    %1940 = vmatprep.subr.mxu0 0.0
    %1941 = vmatpush1.xpose.msra.mxu0 0.0
    %1942 = vmatprep.subr.mxu0 0.0
    %1943 = vmatpush1.xpose.msra.mxu0 0.0
    %1944 = vmatprep.subr.mxu0 0.0
    %1945 = vmatpush1.xpose.msra.mxu0 0.0
    %1946 = vmatprep.subr.mxu0 0.0
    %1947 = vmatpush1.xpose.msra.mxu0 0.0
    %1948 = vmatprep.subr.mxu0 0.0
    %1949 = vmatpush1.xpose.msra.mxu0 0.0
    %1950 = vmatprep.subr.mxu0 0.0
    %1951 = vmatpush1.xpose.msra.mxu0 0.0
    %1952 = vmatprep.subr.mxu0 0.0
    %1953 = vmatpush1.xpose.msra.mxu0 0.0
    %1954 = vmatprep.subr.mxu0 0.0
    %1955 = vmatpush1.xpose.msra.mxu0 0.0
    %1956 = vmatprep.subr.mxu0 0.0
    %1957 = vmatpush1.xpose.msra.mxu0 0.0
    %1958 = vmatprep.subr.mxu0 0.0
    %1959 = vmatpush1.xpose.msra.mxu0 0.0
    %1960 = vmatprep.subr.mxu0 0.0
    %1961 = vmatpush1.xpose.msra.mxu0 0.0
    %1962 = vmatprep.subr.mxu0 0.0
    %1963 = vmatpush1.xpose.msra.mxu0 0.0
    %1964 = vmatprep.subr.mxu0 0.0
    %1965 = vmatpush1.xpose.msra.mxu0 0.0
    %1966 = vmatprep.subr.mxu0 0.0
    %1967 = vmatpush1.xpose.msra.mxu0 0.0
    %1968 = vmatprep.subr.mxu0 0.0
    %1969 = vmatpush1.xpose.msra.mxu0 0.0
    %1970 = vmatprep.subr.mxu0 0.0
    %1971 = vmatpush1.xpose.msra.mxu0 0.0
    %1972 = vmatprep.subr.mxu0 0.0
    %1973 = vmatpush1.xpose.msra.mxu0 0.0
    %1974 = vmatprep.subr.mxu0 0.0
    %1975 = vmatpush1.xpose.msra.mxu0 0.0
    %1976 = vmatprep.subr.mxu0 0.0
    %1977 = vmatpush1.xpose.msra.mxu0 0.0
    %1978 = vmatprep.subr.mxu0 0.0
    %1979 = vmatpush1.xpose.msra.mxu0 0.0
    %1980 = vmatprep.subr.mxu0 0.0
    %1981 = vmatpush1.xpose.msra.mxu0 0.0
    %1982 = vmatprep.subr.mxu0 0.0
    %1983 = vmatpush1.xpose.msra.mxu0 0.0
    %1984 = vmatprep.subr.mxu0 0.0
    %1985 = vmatpush1.xpose.msra.mxu0 0.0
    %1986 = vmatprep.subr.mxu0 0.0
    %1987 = vmatpush1.xpose.msra.mxu0 0.0
    %1988 = vmatprep.subr.mxu0 0.0
    %1989 = vmatpush1.xpose.msra.mxu0 0.0
    %1990 = vmatprep.subr.mxu0 0.0
    %1991 = vmatpush1.xpose.msra.mxu0 0.0
    %1992 = vmatprep.mubr.f32.mxu0 0.0
    %1993 = vmatmul.mubr.f32.gmra.mrb[0].mxu0 %v1924
    %v1994 = vpop.f32.mrb[0].mxu0
    %v1995 = vadd.f32 0.0, %v1994
    %v1996 = vpop.f32.mrb[0].mxu0
    %1997 = vdwg.mxu0
    %1999 = vrot.lane.b32.xlu0 %v1918, 96
    %v2000 = vpop.permute.xlu0 %1999
    %v2001 = vsel %vm196, %v1918, 0
    %v2003 = vsel %vm196, %v2000, 0
    %2005 = vmatprep.subr.mxu0 0.0
    %2006 = vmatpush1.xpose.msra.mxu0 %v2003
    %2007 = vmatprep.subr.mxu0 0.0
    %2008 = vmatpush1.xpose.msra.mxu0 0.0
    %2009 = vmatprep.subr.mxu0 0.0
    %2010 = vmatpush1.xpose.msra.mxu0 0.0
    %2011 = vmatprep.subr.mxu0 0.0
    %2012 = vmatpush1.xpose.msra.mxu0 0.0
    %2013 = vmatprep.subr.mxu0 0.0
    %2014 = vmatpush1.xpose.msra.mxu0 0.0
    %2015 = vmatprep.subr.mxu0 0.0
    %2016 = vmatpush1.xpose.msra.mxu0 0.0
    %2017 = vmatprep.subr.mxu0 0.0
    %2018 = vmatpush1.xpose.msra.mxu0 0.0
    %2019 = vmatprep.subr.mxu0 0.0
    %2020 = vmatpush1.xpose.msra.mxu0 0.0
    %2021 = vmatprep.subr.mxu0 0.0
    %2022 = vmatpush1.xpose.msra.mxu0 0.0
    %2023 = vmatprep.subr.mxu0 0.0
    %2024 = vmatpush1.xpose.msra.mxu0 0.0
    %2025 = vmatprep.subr.mxu0 0.0
    %2026 = vmatpush1.xpose.msra.mxu0 0.0
    %2027 = vmatprep.subr.mxu0 0.0
    %2028 = vmatpush1.xpose.msra.mxu0 0.0
    %2029 = vmatprep.subr.mxu0 0.0
    %2030 = vmatpush1.xpose.msra.mxu0 0.0
    %2031 = vmatprep.subr.mxu0 0.0
    %2032 = vmatpush1.xpose.msra.mxu0 0.0
    %2033 = vmatprep.subr.mxu0 0.0
    %2034 = vmatpush1.xpose.msra.mxu0 0.0
    %2035 = vmatprep.subr.mxu0 0.0
    %2036 = vmatpush1.xpose.msra.mxu0 0.0
    %2037 = vmatprep.subr.mxu0 0.0
    %2038 = vmatpush1.xpose.msra.mxu0 0.0
    %2039 = vmatprep.subr.mxu0 0.0
    %2040 = vmatpush1.xpose.msra.mxu0 0.0
    %2041 = vmatprep.subr.mxu0 0.0
    %2042 = vmatpush1.xpose.msra.mxu0 0.0
    %2043 = vmatprep.subr.mxu0 0.0
    %2044 = vmatpush1.xpose.msra.mxu0 0.0
    %2045 = vmatprep.subr.mxu0 0.0
    %2046 = vmatpush1.xpose.msra.mxu0 0.0
    %2047 = vmatprep.subr.mxu0 0.0
    %2048 = vmatpush1.xpose.msra.mxu0 0.0
    %2049 = vmatprep.subr.mxu0 0.0
    %2050 = vmatpush1.xpose.msra.mxu0 0.0
    %2051 = vmatprep.subr.mxu0 0.0
    %2052 = vmatpush1.xpose.msra.mxu0 0.0
    %2053 = vmatprep.subr.mxu0 0.0
    %2054 = vmatpush1.xpose.msra.mxu0 0.0
    %2055 = vmatprep.subr.mxu0 0.0
    %2056 = vmatpush1.xpose.msra.mxu0 0.0
    %2057 = vmatprep.subr.mxu0 0.0
    %2058 = vmatpush1.xpose.msra.mxu0 0.0
    %2059 = vmatprep.subr.mxu0 0.0
    %2060 = vmatpush1.xpose.msra.mxu0 0.0
    %2061 = vmatprep.subr.mxu0 0.0
    %2062 = vmatpush1.xpose.msra.mxu0 0.0
    %2063 = vmatprep.subr.mxu0 0.0
    %2064 = vmatpush1.xpose.msra.mxu0 0.0
    %2065 = vmatprep.subr.mxu0 0.0
    %2066 = vmatpush1.xpose.msra.mxu0 0.0
    %2067 = vmatprep.subr.mxu0 0.0
    %2068 = vmatpush1.xpose.msra.mxu0 0.0
    %2069 = vmatprep.mubr.f32.mxu0 0.0
    %2070 = vmatmul.mubr.f32.gmra.mrb[0].mxu0 %v2001
    %v2071 = vpop.f32.mrb[0].mxu0
    %v2072 = vadd.f32 0.0, %v2071
    %v2073 = vpop.f32.mrb[0].mxu0
    %2074 = vdwg.mxu0
    %v2075 = vsel %vm196, %v1995, -inf
    %2076 = vmax.xlane.f32.xlu0 %v2075
    %v2077 = vpop.xlane.xlu0 %2076
    %v2078 = vsel %vm196, %v2072, -inf
    %2079 = vmax.xlane.f32.xlu0 %v2078
    %v2080 = vpop.xlane.xlu0 %2079
    %v2081 = vsub.f32 %v1995, %v2077
    %v2082 = vsub.f32 %v2072, %v2080
    %v2083 = vmul.f32 %v2081, 1.442695
    %v2084 = vpow.pop %v2083
    %v2085 = vmul.f32 %v2082, 1.442695
    %v2086 = vpow.pop %v2085
    %v2087 = vsel %vm196, %v2084, 0.0
    %2088 = vadd.xlane.f32.xlu0 %v2087
    %v2089 = vpop.xlane.xlu0 %2088
    %v2090 = vsel %vm196, %v2086, 0.0
    %2091 = vadd.xlane.f32.xlu0 %v2090
    %v2092 = vpop.xlane.xlu0 %2091
    %v2093 = vrcp.pop %v2089
    %v2094 = vmul.f32 %v2084, %v2093
    %v2095 = vrcp.pop %v2092
    %v2096 = vmul.f32 %v2086, %v2095
    %2097 = vrot.lane.b32.xlu0 %v1913, 64
    %v2098 = vpop.permute.xlu0 %2097
    %v2101 = vsel %vm196, %v2094, 0
    %2103 = vmatprep.subr.mxu0 0.0
    %2104 = vmatpush1.msra.mxu0 %v2098
    %2105 = vmatprep.subr.mxu0 0.0
    %2106 = vmatpush1.msra.mxu0 0.0
    %2107 = vmatprep.subr.mxu0 0.0
    %2108 = vmatpush1.msra.mxu0 0.0
    %2109 = vmatprep.subr.mxu0 0.0
    %2110 = vmatpush1.msra.mxu0 0.0
    %2111 = vmatprep.subr.mxu0 0.0
    %2112 = vmatpush1.msra.mxu0 0.0
    %2113 = vmatprep.subr.mxu0 0.0
    %2114 = vmatpush1.msra.mxu0 0.0
    %2115 = vmatprep.subr.mxu0 0.0
    %2116 = vmatpush1.msra.mxu0 0.0
    %2117 = vmatprep.subr.mxu0 0.0
    %2118 = vmatpush1.msra.mxu0 0.0
    %2119 = vmatprep.subr.mxu0 0.0
    %2120 = vmatpush1.msra.mxu0 0.0
    %2121 = vmatprep.subr.mxu0 0.0
    %2122 = vmatpush1.msra.mxu0 0.0
    %2123 = vmatprep.subr.mxu0 0.0
    %2124 = vmatpush1.msra.mxu0 0.0
    %2125 = vmatprep.subr.mxu0 0.0
    %2126 = vmatpush1.msra.mxu0 0.0
    %2127 = vmatprep.subr.mxu0 0.0
    %2128 = vmatpush1.msra.mxu0 0.0
    %2129 = vmatprep.subr.mxu0 0.0
    %2130 = vmatpush1.msra.mxu0 0.0
    %2131 = vmatprep.subr.mxu0 0.0
    %2132 = vmatpush1.msra.mxu0 0.0
    %2133 = vmatprep.subr.mxu0 0.0
    %2134 = vmatpush1.msra.mxu0 0.0
    %2135 = vmatprep.subr.mxu0 0.0
    %2136 = vmatpush1.msra.mxu0 0.0
    %2137 = vmatprep.subr.mxu0 0.0
    %2138 = vmatpush1.msra.mxu0 0.0
    %2139 = vmatprep.subr.mxu0 0.0
    %2140 = vmatpush1.msra.mxu0 0.0
    %2141 = vmatprep.subr.mxu0 0.0
    %2142 = vmatpush1.msra.mxu0 0.0
    %2143 = vmatprep.subr.mxu0 0.0
    %2144 = vmatpush1.msra.mxu0 0.0
    %2145 = vmatprep.subr.mxu0 0.0
    %2146 = vmatpush1.msra.mxu0 0.0
    %2147 = vmatprep.subr.mxu0 0.0
    %2148 = vmatpush1.msra.mxu0 0.0
    %2149 = vmatprep.subr.mxu0 0.0
    %2150 = vmatpush1.msra.mxu0 0.0
    %2151 = vmatprep.subr.mxu0 0.0
    %2152 = vmatpush1.msra.mxu0 0.0
    %2153 = vmatprep.subr.mxu0 0.0
    %2154 = vmatpush1.msra.mxu0 0.0
    %2155 = vmatprep.subr.mxu0 0.0
    %2156 = vmatpush1.msra.mxu0 0.0
    %2157 = vmatprep.subr.mxu0 0.0
    %2158 = vmatpush1.msra.mxu0 0.0
    %2159 = vmatprep.subr.mxu0 0.0
    %2160 = vmatpush1.msra.mxu0 0.0
    %2161 = vmatprep.subr.mxu0 0.0
    %2162 = vmatpush1.msra.mxu0 0.0
    %2163 = vmatprep.subr.mxu0 0.0
    %2164 = vmatpush1.msra.mxu0 0.0
    %2165 = vmatprep.subr.mxu0 0.0
    %2166 = vmatpush1.msra.mxu0 0.0
    %2167 = vmatprep.mubr.f32.mxu0 0.0
    %2168 = vmatmul.mubr.f32.gmra.mrb[0].mxu0 %v2101
    %v2169 = vpop.f32.mrb[0].mxu0
    %v2170 = vadd.f32 0.0, %v2169
    %v2171 = vpop.f32.mrb[0].mxu0
    %2172 = vdwg.mxu0
    %2173 = vrot.lane.b32.xlu0 %v1918, 64
    %v2174 = vpop.permute.xlu0 %2173
    %v2177 = vsel %vm196, %v2096, 0
    %2179 = vmatprep.subr.mxu0 0.0
    %2180 = vmatpush1.msra.mxu0 %v2174
    %2181 = vmatprep.subr.mxu0 0.0
    %2182 = vmatpush1.msra.mxu0 0.0
    %2183 = vmatprep.subr.mxu0 0.0
    %2184 = vmatpush1.msra.mxu0 0.0
    %2185 = vmatprep.subr.mxu0 0.0
    %2186 = vmatpush1.msra.mxu0 0.0
    %2187 = vmatprep.subr.mxu0 0.0
    %2188 = vmatpush1.msra.mxu0 0.0
    %2189 = vmatprep.subr.mxu0 0.0
    %2190 = vmatpush1.msra.mxu0 0.0
    %2191 = vmatprep.subr.mxu0 0.0
    %2192 = vmatpush1.msra.mxu0 0.0
    %2193 = vmatprep.subr.mxu0 0.0
    %2194 = vmatpush1.msra.mxu0 0.0
    %2195 = vmatprep.subr.mxu0 0.0
    %2196 = vmatpush1.msra.mxu0 0.0
    %2197 = vmatprep.subr.mxu0 0.0
    %2198 = vmatpush1.msra.mxu0 0.0
    %2199 = vmatprep.subr.mxu0 0.0
    %2200 = vmatpush1.msra.mxu0 0.0
    %2201 = vmatprep.subr.mxu0 0.0
    %2202 = vmatpush1.msra.mxu0 0.0
    %2203 = vmatprep.subr.mxu0 0.0
    %2204 = vmatpush1.msra.mxu0 0.0
    %2205 = vmatprep.subr.mxu0 0.0
    %2206 = vmatpush1.msra.mxu0 0.0
    %2207 = vmatprep.subr.mxu0 0.0
    %2208 = vmatpush1.msra.mxu0 0.0
    %2209 = vmatprep.subr.mxu0 0.0
    %2210 = vmatpush1.msra.mxu0 0.0
    %2211 = vmatprep.subr.mxu0 0.0
    %2212 = vmatpush1.msra.mxu0 0.0
    %2213 = vmatprep.subr.mxu0 0.0
    %2214 = vmatpush1.msra.mxu0 0.0
    %2215 = vmatprep.subr.mxu0 0.0
    %2216 = vmatpush1.msra.mxu0 0.0
    %2217 = vmatprep.subr.mxu0 0.0
    %2218 = vmatpush1.msra.mxu0 0.0
    %2219 = vmatprep.subr.mxu0 0.0
    %2220 = vmatpush1.msra.mxu0 0.0
    %2221 = vmatprep.subr.mxu0 0.0
    %2222 = vmatpush1.msra.mxu0 0.0
    %2223 = vmatprep.subr.mxu0 0.0
    %2224 = vmatpush1.msra.mxu0 0.0
    %2225 = vmatprep.subr.mxu0 0.0
    %2226 = vmatpush1.msra.mxu0 0.0
    %2227 = vmatprep.subr.mxu0 0.0
    %2228 = vmatpush1.msra.mxu0 0.0
    %2229 = vmatprep.subr.mxu0 0.0
    %2230 = vmatpush1.msra.mxu0 0.0
    %2231 = vmatprep.subr.mxu0 0.0
    %2232 = vmatpush1.msra.mxu0 0.0
    %2233 = vmatprep.subr.mxu0 0.0
    %2234 = vmatpush1.msra.mxu0 0.0
    %2235 = vmatprep.subr.mxu0 0.0
    %2236 = vmatpush1.msra.mxu0 0.0
    %2237 = vmatprep.subr.mxu0 0.0
    %2238 = vmatpush1.msra.mxu0 0.0
    %2239 = vmatprep.subr.mxu0 0.0
    %2240 = vmatpush1.msra.mxu0 0.0
    %2241 = vmatprep.subr.mxu0 0.0
    %2242 = vmatpush1.msra.mxu0 0.0
    %2243 = vmatprep.mubr.f32.mxu0 0.0
    %2244 = vmatmul.mubr.f32.gmra.mrb[0].mxu0 %v2177
    %v2245 = vpop.f32.mrb[0].mxu0
    %v2246 = vadd.f32 0.0, %v2245
    %v2247 = vpop.f32.mrb[0].mxu0
    %2248 = vdwg.mxu0
    %2249 = vrot.lane.b32.xlu0 %v1913, 120
    %v2250 = vpop.permute.xlu0 %2249
    %2251 = vrot.lane.b32.xlu0 %v1913, 88
    %v2252 = vpop.permute.xlu0 %2251
    %v2253 = vsel %vm196, %v2250, 0
    %v2255 = vsel %vm196, %v2252, 0
    %2257 = vmatprep.subr.mxu0 0.0
    %2258 = vmatpush1.xpose.msra.mxu0 %v2255
    %2259 = vmatprep.subr.mxu0 0.0
    %2260 = vmatpush1.xpose.msra.mxu0 0.0
    %2261 = vmatprep.subr.mxu0 0.0
    %2262 = vmatpush1.xpose.msra.mxu0 0.0
    %2263 = vmatprep.subr.mxu0 0.0
    %2264 = vmatpush1.xpose.msra.mxu0 0.0
    %2265 = vmatprep.subr.mxu0 0.0
    %2266 = vmatpush1.xpose.msra.mxu0 0.0
    %2267 = vmatprep.subr.mxu0 0.0
    %2268 = vmatpush1.xpose.msra.mxu0 0.0
    %2269 = vmatprep.subr.mxu0 0.0
    %2270 = vmatpush1.xpose.msra.mxu0 0.0
    %2271 = vmatprep.subr.mxu0 0.0
    %2272 = vmatpush1.xpose.msra.mxu0 0.0
    %2273 = vmatprep.subr.mxu0 0.0
    %2274 = vmatpush1.xpose.msra.mxu0 0.0
    %2275 = vmatprep.subr.mxu0 0.0
    %2276 = vmatpush1.xpose.msra.mxu0 0.0
    %2277 = vmatprep.subr.mxu0 0.0
    %2278 = vmatpush1.xpose.msra.mxu0 0.0
    %2279 = vmatprep.subr.mxu0 0.0
    %2280 = vmatpush1.xpose.msra.mxu0 0.0
    %2281 = vmatprep.subr.mxu0 0.0
    %2282 = vmatpush1.xpose.msra.mxu0 0.0
    %2283 = vmatprep.subr.mxu0 0.0
    %2284 = vmatpush1.xpose.msra.mxu0 0.0
    %2285 = vmatprep.subr.mxu0 0.0
    %2286 = vmatpush1.xpose.msra.mxu0 0.0
    %2287 = vmatprep.subr.mxu0 0.0
    %2288 = vmatpush1.xpose.msra.mxu0 0.0
    %2289 = vmatprep.subr.mxu0 0.0
    %2290 = vmatpush1.xpose.msra.mxu0 0.0
    %2291 = vmatprep.subr.mxu0 0.0
    %2292 = vmatpush1.xpose.msra.mxu0 0.0
    %2293 = vmatprep.subr.mxu0 0.0
    %2294 = vmatpush1.xpose.msra.mxu0 0.0
    %2295 = vmatprep.subr.mxu0 0.0
    %2296 = vmatpush1.xpose.msra.mxu0 0.0
    %2297 = vmatprep.subr.mxu0 0.0
    %2298 = vmatpush1.xpose.msra.mxu0 0.0
    %2299 = vmatprep.subr.mxu0 0.0
    %2300 = vmatpush1.xpose.msra.mxu0 0.0
    %2301 = vmatprep.subr.mxu0 0.0
    %2302 = vmatpush1.xpose.msra.mxu0 0.0
    %2303 = vmatprep.subr.mxu0 0.0
    %2304 = vmatpush1.xpose.msra.mxu0 0.0
    %2305 = vmatprep.subr.mxu0 0.0
    %2306 = vmatpush1.xpose.msra.mxu0 0.0
    %2307 = vmatprep.subr.mxu0 0.0
    %2308 = vmatpush1.xpose.msra.mxu0 0.0
    %2309 = vmatprep.subr.mxu0 0.0
    %2310 = vmatpush1.xpose.msra.mxu0 0.0
    %2311 = vmatprep.subr.mxu0 0.0
    %2312 = vmatpush1.xpose.msra.mxu0 0.0
    %2313 = vmatprep.subr.mxu0 0.0
    %2314 = vmatpush1.xpose.msra.mxu0 0.0
    %2315 = vmatprep.subr.mxu0 0.0
    %2316 = vmatpush1.xpose.msra.mxu0 0.0
    %2317 = vmatprep.subr.mxu0 0.0
    %2318 = vmatpush1.xpose.msra.mxu0 0.0
    %2319 = vmatprep.subr.mxu0 0.0
    %2320 = vmatpush1.xpose.msra.mxu0 0.0
    %2321 = vmatprep.mubr.f32.mxu0 0.0
    %2322 = vmatmul.mubr.f32.gmra.mrb[0].mxu0 %v2253
    %v2323 = vpop.f32.mrb[0].mxu0
    %v2324 = vadd.f32 0.0, %v2323
    %v2325 = vpop.f32.mrb[0].mxu0
    %2326 = vdwg.mxu0
    %2327 = vrot.lane.b32.xlu0 %v1918, 120
    %v2328 = vpop.permute.xlu0 %2327
    %2329 = vrot.lane.b32.xlu0 %v1918, 88
    %v2330 = vpop.permute.xlu0 %2329
    %v2331 = vsel %vm196, %v2328, 0
    %v2333 = vsel %vm196, %v2330, 0
    %2335 = vmatprep.subr.mxu0 0.0
    %2336 = vmatpush1.xpose.msra.mxu0 %v2333
    %2337 = vmatprep.subr.mxu0 0.0
    %2338 = vmatpush1.xpose.msra.mxu0 0.0
    %2339 = vmatprep.subr.mxu0 0.0
    %2340 = vmatpush1.xpose.msra.mxu0 0.0
    %2341 = vmatprep.subr.mxu0 0.0
    %2342 = vmatpush1.xpose.msra.mxu0 0.0
    %2343 = vmatprep.subr.mxu0 0.0
    %2344 = vmatpush1.xpose.msra.mxu0 0.0
    %2345 = vmatprep.subr.mxu0 0.0
    %2346 = vmatpush1.xpose.msra.mxu0 0.0
    %2347 = vmatprep.subr.mxu0 0.0
    %2348 = vmatpush1.xpose.msra.mxu0 0.0
    %2349 = vmatprep.subr.mxu0 0.0
    %2350 = vmatpush1.xpose.msra.mxu0 0.0
    %2351 = vmatprep.subr.mxu0 0.0
    %2352 = vmatpush1.xpose.msra.mxu0 0.0
    %2353 = vmatprep.subr.mxu0 0.0
    %2354 = vmatpush1.xpose.msra.mxu0 0.0
    %2355 = vmatprep.subr.mxu0 0.0
    %2356 = vmatpush1.xpose.msra.mxu0 0.0
    %2357 = vmatprep.subr.mxu0 0.0
    %2358 = vmatpush1.xpose.msra.mxu0 0.0
    %2359 = vmatprep.subr.mxu0 0.0
    %2360 = vmatpush1.xpose.msra.mxu0 0.0
    %2361 = vmatprep.subr.mxu0 0.0
    %2362 = vmatpush1.xpose.msra.mxu0 0.0
    %2363 = vmatprep.subr.mxu0 0.0
    %2364 = vmatpush1.xpose.msra.mxu0 0.0
    %2365 = vmatprep.subr.mxu0 0.0
    %2366 = vmatpush1.xpose.msra.mxu0 0.0
    %2367 = vmatprep.subr.mxu0 0.0
    %2368 = vmatpush1.xpose.msra.mxu0 0.0
    %2369 = vmatprep.subr.mxu0 0.0
    %2370 = vmatpush1.xpose.msra.mxu0 0.0
    %2371 = vmatprep.subr.mxu0 0.0
    %2372 = vmatpush1.xpose.msra.mxu0 0.0
    %2373 = vmatprep.subr.mxu0 0.0
    %2374 = vmatpush1.xpose.msra.mxu0 0.0
    %2375 = vmatprep.subr.mxu0 0.0
    %2376 = vmatpush1.xpose.msra.mxu0 0.0
    %2377 = vmatprep.subr.mxu0 0.0
    %2378 = vmatpush1.xpose.msra.mxu0 0.0
    %2379 = vmatprep.subr.mxu0 0.0
    %2380 = vmatpush1.xpose.msra.mxu0 0.0
    %2381 = vmatprep.subr.mxu0 0.0
    %2382 = vmatpush1.xpose.msra.mxu0 0.0
    %2383 = vmatprep.subr.mxu0 0.0
    %2384 = vmatpush1.xpose.msra.mxu0 0.0
    %2385 = vmatprep.subr.mxu0 0.0
    %2386 = vmatpush1.xpose.msra.mxu0 0.0
    %2387 = vmatprep.subr.mxu0 0.0
    %2388 = vmatpush1.xpose.msra.mxu0 0.0
    %2389 = vmatprep.subr.mxu0 0.0
    %2390 = vmatpush1.xpose.msra.mxu0 0.0
    %2391 = vmatprep.subr.mxu0 0.0
    %2392 = vmatpush1.xpose.msra.mxu0 0.0
    %2393 = vmatprep.subr.mxu0 0.0
    %2394 = vmatpush1.xpose.msra.mxu0 0.0
    %2395 = vmatprep.subr.mxu0 0.0
    %2396 = vmatpush1.xpose.msra.mxu0 0.0
    %2397 = vmatprep.subr.mxu0 0.0
    %2398 = vmatpush1.xpose.msra.mxu0 0.0
    %2399 = vmatprep.mubr.f32.mxu0 0.0
    %2400 = vmatmul.mubr.f32.gmra.mrb[0].mxu0 %v2331
    %v2401 = vpop.f32.mrb[0].mxu0
    %v2402 = vadd.f32 0.0, %v2401
    %v2403 = vpop.f32.mrb[0].mxu0
    %2404 = vdwg.mxu0
    %v2405 = vsel %vm196, %v2324, -inf
    %2406 = vmax.xlane.f32.xlu0 %v2405
    %v2407 = vpop.xlane.xlu0 %2406
    %v2408 = vsel %vm196, %v2402, -inf
    %2409 = vmax.xlane.f32.xlu0 %v2408
    %v2410 = vpop.xlane.xlu0 %2409
    %v2411 = vsub.f32 %v2324, %v2407
    %v2412 = vsub.f32 %v2402, %v2410
    %v2413 = vmul.f32 %v2411, 1.442695
    %v2414 = vpow.pop %v2413
    %v2415 = vmul.f32 %v2412, 1.442695
    %v2416 = vpow.pop %v2415
    %v2417 = vsel %vm196, %v2414, 0.0
    %2418 = vadd.xlane.f32.xlu0 %v2417
    %v2419 = vpop.xlane.xlu0 %2418
    %v2420 = vsel %vm196, %v2416, 0.0
    %2421 = vadd.xlane.f32.xlu0 %v2420
    %v2422 = vpop.xlane.xlu0 %2421
    %v2423 = vrcp.pop %v2419
    %v2424 = vmul.f32 %v2414, %v2423
    %v2425 = vrcp.pop %v2422
    %v2426 = vmul.f32 %v2416, %v2425
    %2427 = vrot.lane.b32.xlu0 %v1913, 56
    %v2428 = vpop.permute.xlu0 %2427
    %v2431 = vsel %vm196, %v2424, 0
    %2433 = vmatprep.subr.mxu0 0.0
    %2434 = vmatpush1.msra.mxu0 %v2428
    %2435 = vmatprep.subr.mxu0 0.0
    %2436 = vmatpush1.msra.mxu0 0.0
    %2437 = vmatprep.subr.mxu0 0.0
    %2438 = vmatpush1.msra.mxu0 0.0
    %2439 = vmatprep.subr.mxu0 0.0
    %2440 = vmatpush1.msra.mxu0 0.0
    %2441 = vmatprep.subr.mxu0 0.0
    %2442 = vmatpush1.msra.mxu0 0.0
    %2443 = vmatprep.subr.mxu0 0.0
    %2444 = vmatpush1.msra.mxu0 0.0
    %2445 = vmatprep.subr.mxu0 0.0
    %2446 = vmatpush1.msra.mxu0 0.0
    %2447 = vmatprep.subr.mxu0 0.0
    %2448 = vmatpush1.msra.mxu0 0.0
    %2449 = vmatprep.subr.mxu0 0.0
    %2450 = vmatpush1.msra.mxu0 0.0
    %2451 = vmatprep.subr.mxu0 0.0
    %2452 = vmatpush1.msra.mxu0 0.0
    %2453 = vmatprep.subr.mxu0 0.0
    %2454 = vmatpush1.msra.mxu0 0.0
    %2455 = vmatprep.subr.mxu0 0.0
    %2456 = vmatpush1.msra.mxu0 0.0
    %2457 = vmatprep.subr.mxu0 0.0
    %2458 = vmatpush1.msra.mxu0 0.0
    %2459 = vmatprep.subr.mxu0 0.0
    %2460 = vmatpush1.msra.mxu0 0.0
    %2461 = vmatprep.subr.mxu0 0.0
    %2462 = vmatpush1.msra.mxu0 0.0
    %2463 = vmatprep.subr.mxu0 0.0
    %2464 = vmatpush1.msra.mxu0 0.0
    %2465 = vmatprep.subr.mxu0 0.0
    %2466 = vmatpush1.msra.mxu0 0.0
    %2467 = vmatprep.subr.mxu0 0.0
    %2468 = vmatpush1.msra.mxu0 0.0
    %2469 = vmatprep.subr.mxu0 0.0
    %2470 = vmatpush1.msra.mxu0 0.0
    %2471 = vmatprep.subr.mxu0 0.0
    %2472 = vmatpush1.msra.mxu0 0.0
    %2473 = vmatprep.subr.mxu0 0.0
    %2474 = vmatpush1.msra.mxu0 0.0
    %2475 = vmatprep.subr.mxu0 0.0
    %2476 = vmatpush1.msra.mxu0 0.0
    %2477 = vmatprep.subr.mxu0 0.0
    %2478 = vmatpush1.msra.mxu0 0.0
    %2479 = vmatprep.subr.mxu0 0.0
    %2480 = vmatpush1.msra.mxu0 0.0
    %2481 = vmatprep.subr.mxu0 0.0
    %2482 = vmatpush1.msra.mxu0 0.0
    %2483 = vmatprep.subr.mxu0 0.0
    %2484 = vmatpush1.msra.mxu0 0.0
    %2485 = vmatprep.subr.mxu0 0.0
    %2486 = vmatpush1.msra.mxu0 0.0
    %2487 = vmatprep.subr.mxu0 0.0
    %2488 = vmatpush1.msra.mxu0 0.0
    %2489 = vmatprep.subr.mxu0 0.0
    %2490 = vmatpush1.msra.mxu0 0.0
    %2491 = vmatprep.subr.mxu0 0.0
    %2492 = vmatpush1.msra.mxu0 0.0
    %2493 = vmatprep.subr.mxu0 0.0
    %2494 = vmatpush1.msra.mxu0 0.0
    %2495 = vmatprep.subr.mxu0 0.0
    %2496 = vmatpush1.msra.mxu0 0.0
    %2497 = vmatprep.mubr.f32.mxu0 0.0
    %2498 = vmatmul.mubr.f32.gmra.mrb[0].mxu0 %v2431
    %v2499 = vpop.f32.mrb[0].mxu0
    %v2500 = vadd.f32 0.0, %v2499
    %v2501 = vpop.f32.mrb[0].mxu0
    %2502 = vdwg.mxu0
    %2503 = vrot.lane.b32.xlu0 %v1918, 56
    %v2504 = vpop.permute.xlu0 %2503
    %v2507 = vsel %vm196, %v2426, 0
    %2509 = vmatprep.subr.mxu0 0.0
    %2510 = vmatpush1.msra.mxu0 %v2504
    %2511 = vmatprep.subr.mxu0 0.0
    %2512 = vmatpush1.msra.mxu0 0.0
    %2513 = vmatprep.subr.mxu0 0.0
    %2514 = vmatpush1.msra.mxu0 0.0
    %2515 = vmatprep.subr.mxu0 0.0
    %2516 = vmatpush1.msra.mxu0 0.0
    %2517 = vmatprep.subr.mxu0 0.0
    %2518 = vmatpush1.msra.mxu0 0.0
    %2519 = vmatprep.subr.mxu0 0.0
    %2520 = vmatpush1.msra.mxu0 0.0
    %2521 = vmatprep.subr.mxu0 0.0
    %2522 = vmatpush1.msra.mxu0 0.0
    %2523 = vmatprep.subr.mxu0 0.0
    %2524 = vmatpush1.msra.mxu0 0.0
    %2525 = vmatprep.subr.mxu0 0.0
    %2526 = vmatpush1.msra.mxu0 0.0
    %2527 = vmatprep.subr.mxu0 0.0
    %2528 = vmatpush1.msra.mxu0 0.0
    %2529 = vmatprep.subr.mxu0 0.0
    %2530 = vmatpush1.msra.mxu0 0.0
    %2531 = vmatprep.subr.mxu0 0.0
    %2532 = vmatpush1.msra.mxu0 0.0
    %2533 = vmatprep.subr.mxu0 0.0
    %2534 = vmatpush1.msra.mxu0 0.0
    %2535 = vmatprep.subr.mxu0 0.0
    %2536 = vmatpush1.msra.mxu0 0.0
    %2537 = vmatprep.subr.mxu0 0.0
    %2538 = vmatpush1.msra.mxu0 0.0
    %2539 = vmatprep.subr.mxu0 0.0
    %2540 = vmatpush1.msra.mxu0 0.0
    %2541 = vmatprep.subr.mxu0 0.0
    %2542 = vmatpush1.msra.mxu0 0.0
    %2543 = vmatprep.subr.mxu0 0.0
    %2544 = vmatpush1.msra.mxu0 0.0
    %2545 = vmatprep.subr.mxu0 0.0
    %2546 = vmatpush1.msra.mxu0 0.0
    %2547 = vmatprep.subr.mxu0 0.0
    %2548 = vmatpush1.msra.mxu0 0.0
    %2549 = vmatprep.subr.mxu0 0.0
    %2550 = vmatpush1.msra.mxu0 0.0
    %2551 = vmatprep.subr.mxu0 0.0
    %2552 = vmatpush1.msra.mxu0 0.0
    %2553 = vmatprep.subr.mxu0 0.0
    %2554 = vmatpush1.msra.mxu0 0.0
    %2555 = vmatprep.subr.mxu0 0.0
    %2556 = vmatpush1.msra.mxu0 0.0
    %2557 = vmatprep.subr.mxu0 0.0
    %2558 = vmatpush1.msra.mxu0 0.0
    %2559 = vmatprep.subr.mxu0 0.0
    %2560 = vmatpush1.msra.mxu0 0.0
    %2561 = vmatprep.subr.mxu0 0.0
    %2562 = vmatpush1.msra.mxu0 0.0
    %2563 = vmatprep.subr.mxu0 0.0
    %2564 = vmatpush1.msra.mxu0 0.0
    %2565 = vmatprep.subr.mxu0 0.0
    %2566 = vmatpush1.msra.mxu0 0.0
    %2567 = vmatprep.subr.mxu0 0.0
    %2568 = vmatpush1.msra.mxu0 0.0
    %2569 = vmatprep.subr.mxu0 0.0
    %2570 = vmatpush1.msra.mxu0 0.0
    %2571 = vmatprep.subr.mxu0 0.0
    %2572 = vmatpush1.msra.mxu0 0.0
    %2573 = vmatprep.mubr.f32.mxu0 0.0
    %2574 = vmatmul.mubr.f32.gmra.mrb[0].mxu0 %v2507
    %v2575 = vpop.f32.mrb[0].mxu0
    %v2576 = vadd.f32 0.0, %v2575
    %v2577 = vpop.f32.mrb[0].mxu0
    %2578 = vdwg.mxu0
    %2579 = vrot.lane.b32.xlu0 %v1913, 112
    %v2580 = vpop.permute.xlu0 %2579
    %2581 = vrot.lane.b32.xlu0 %v1913, 80
    %v2582 = vpop.permute.xlu0 %2581
    %v2583 = vsel %vm196, %v2580, 0
    %v2585 = vsel %vm196, %v2582, 0
    %2587 = vmatprep.subr.mxu0 0.0
    %2588 = vmatpush1.xpose.msra.mxu0 %v2585
    %2589 = vmatprep.subr.mxu0 0.0
    %2590 = vmatpush1.xpose.msra.mxu0 0.0
    %2591 = vmatprep.subr.mxu0 0.0
    %2592 = vmatpush1.xpose.msra.mxu0 0.0
    %2593 = vmatprep.subr.mxu0 0.0
    %2594 = vmatpush1.xpose.msra.mxu0 0.0
    %2595 = vmatprep.subr.mxu0 0.0
    %2596 = vmatpush1.xpose.msra.mxu0 0.0
    %2597 = vmatprep.subr.mxu0 0.0
    %2598 = vmatpush1.xpose.msra.mxu0 0.0
    %2599 = vmatprep.subr.mxu0 0.0
    %2600 = vmatpush1.xpose.msra.mxu0 0.0
    %2601 = vmatprep.subr.mxu0 0.0
    %2602 = vmatpush1.xpose.msra.mxu0 0.0
    %2603 = vmatprep.subr.mxu0 0.0
    %2604 = vmatpush1.xpose.msra.mxu0 0.0
    %2605 = vmatprep.subr.mxu0 0.0
    %2606 = vmatpush1.xpose.msra.mxu0 0.0
    %2607 = vmatprep.subr.mxu0 0.0
    %2608 = vmatpush1.xpose.msra.mxu0 0.0
    %2609 = vmatprep.subr.mxu0 0.0
    %2610 = vmatpush1.xpose.msra.mxu0 0.0
    %2611 = vmatprep.subr.mxu0 0.0
    %2612 = vmatpush1.xpose.msra.mxu0 0.0
    %2613 = vmatprep.subr.mxu0 0.0
    %2614 = vmatpush1.xpose.msra.mxu0 0.0
    %2615 = vmatprep.subr.mxu0 0.0
    %2616 = vmatpush1.xpose.msra.mxu0 0.0
    %2617 = vmatprep.subr.mxu0 0.0
    %2618 = vmatpush1.xpose.msra.mxu0 0.0
    %2619 = vmatprep.subr.mxu0 0.0
    %2620 = vmatpush1.xpose.msra.mxu0 0.0
    %2621 = vmatprep.subr.mxu0 0.0
    %2622 = vmatpush1.xpose.msra.mxu0 0.0
    %2623 = vmatprep.subr.mxu0 0.0
    %2624 = vmatpush1.xpose.msra.mxu0 0.0
    %2625 = vmatprep.subr.mxu0 0.0
    %2626 = vmatpush1.xpose.msra.mxu0 0.0
    %2627 = vmatprep.subr.mxu0 0.0
    %2628 = vmatpush1.xpose.msra.mxu0 0.0
    %2629 = vmatprep.subr.mxu0 0.0
    %2630 = vmatpush1.xpose.msra.mxu0 0.0
    %2631 = vmatprep.subr.mxu0 0.0
    %2632 = vmatpush1.xpose.msra.mxu0 0.0
    %2633 = vmatprep.subr.mxu0 0.0
    %2634 = vmatpush1.xpose.msra.mxu0 0.0
    %2635 = vmatprep.subr.mxu0 0.0
    %2636 = vmatpush1.xpose.msra.mxu0 0.0
    %2637 = vmatprep.subr.mxu0 0.0
    %2638 = vmatpush1.xpose.msra.mxu0 0.0
    %2639 = vmatprep.subr.mxu0 0.0
    %2640 = vmatpush1.xpose.msra.mxu0 0.0
    %2641 = vmatprep.subr.mxu0 0.0
    %2642 = vmatpush1.xpose.msra.mxu0 0.0
    %2643 = vmatprep.subr.mxu0 0.0
    %2644 = vmatpush1.xpose.msra.mxu0 0.0
    %2645 = vmatprep.subr.mxu0 0.0
    %2646 = vmatpush1.xpose.msra.mxu0 0.0
    %2647 = vmatprep.subr.mxu0 0.0
    %2648 = vmatpush1.xpose.msra.mxu0 0.0
    %2649 = vmatprep.subr.mxu0 0.0
    %2650 = vmatpush1.xpose.msra.mxu0 0.0
    %2651 = vmatprep.mubr.f32.mxu0 0.0
    %2652 = vmatmul.mubr.f32.gmra.mrb[0].mxu0 %v2583
    %v2653 = vpop.f32.mrb[0].mxu0
    %v2654 = vadd.f32 0.0, %v2653
    %v2655 = vpop.f32.mrb[0].mxu0
    %2656 = vdwg.mxu0
    %2657 = vrot.lane.b32.xlu0 %v1918, 112
    %v2658 = vpop.permute.xlu0 %2657
    %2659 = vrot.lane.b32.xlu0 %v1918, 80
    %v2660 = vpop.permute.xlu0 %2659
    %v2661 = vsel %vm196, %v2658, 0
    %v2663 = vsel %vm196, %v2660, 0
    %2665 = vmatprep.subr.mxu0 0.0
    %2666 = vmatpush1.xpose.msra.mxu0 %v2663
    %2667 = vmatprep.subr.mxu0 0.0
    %2668 = vmatpush1.xpose.msra.mxu0 0.0
    %2669 = vmatprep.subr.mxu0 0.0
    %2670 = vmatpush1.xpose.msra.mxu0 0.0
    %2671 = vmatprep.subr.mxu0 0.0
    %2672 = vmatpush1.xpose.msra.mxu0 0.0
    %2673 = vmatprep.subr.mxu0 0.0
    %2674 = vmatpush1.xpose.msra.mxu0 0.0
    %2675 = vmatprep.subr.mxu0 0.0
    %2676 = vmatpush1.xpose.msra.mxu0 0.0
    %2677 = vmatprep.subr.mxu0 0.0
    %2678 = vmatpush1.xpose.msra.mxu0 0.0
    %2679 = vmatprep.subr.mxu0 0.0
    %2680 = vmatpush1.xpose.msra.mxu0 0.0
    %2681 = vmatprep.subr.mxu0 0.0
    %2682 = vmatpush1.xpose.msra.mxu0 0.0
    %2683 = vmatprep.subr.mxu0 0.0
    %2684 = vmatpush1.xpose.msra.mxu0 0.0
    %2685 = vmatprep.subr.mxu0 0.0
    %2686 = vmatpush1.xpose.msra.mxu0 0.0
    %2687 = vmatprep.subr.mxu0 0.0
    %2688 = vmatpush1.xpose.msra.mxu0 0.0
    %2689 = vmatprep.subr.mxu0 0.0
    %2690 = vmatpush1.xpose.msra.mxu0 0.0
    %2691 = vmatprep.subr.mxu0 0.0
    %2692 = vmatpush1.xpose.msra.mxu0 0.0
    %2693 = vmatprep.subr.mxu0 0.0
    %2694 = vmatpush1.xpose.msra.mxu0 0.0
    %2695 = vmatprep.subr.mxu0 0.0
    %2696 = vmatpush1.xpose.msra.mxu0 0.0
    %2697 = vmatprep.subr.mxu0 0.0
    %2698 = vmatpush1.xpose.msra.mxu0 0.0
    %2699 = vmatprep.subr.mxu0 0.0
    %2700 = vmatpush1.xpose.msra.mxu0 0.0
    %2701 = vmatprep.subr.mxu0 0.0
    %2702 = vmatpush1.xpose.msra.mxu0 0.0
    %2703 = vmatprep.subr.mxu0 0.0
    %2704 = vmatpush1.xpose.msra.mxu0 0.0
    %2705 = vmatprep.subr.mxu0 0.0
    %2706 = vmatpush1.xpose.msra.mxu0 0.0
    %2707 = vmatprep.subr.mxu0 0.0
    %2708 = vmatpush1.xpose.msra.mxu0 0.0
    %2709 = vmatprep.subr.mxu0 0.0
    %2710 = vmatpush1.xpose.msra.mxu0 0.0
    %2711 = vmatprep.subr.mxu0 0.0
    %2712 = vmatpush1.xpose.msra.mxu0 0.0
    %2713 = vmatprep.subr.mxu0 0.0
    %2714 = vmatpush1.xpose.msra.mxu0 0.0
    %2715 = vmatprep.subr.mxu0 0.0
    %2716 = vmatpush1.xpose.msra.mxu0 0.0
    %2717 = vmatprep.subr.mxu0 0.0
    %2718 = vmatpush1.xpose.msra.mxu0 0.0
    %2719 = vmatprep.subr.mxu0 0.0
    %2720 = vmatpush1.xpose.msra.mxu0 0.0
    %2721 = vmatprep.subr.mxu0 0.0
    %2722 = vmatpush1.xpose.msra.mxu0 0.0
    %2723 = vmatprep.subr.mxu0 0.0
    %2724 = vmatpush1.xpose.msra.mxu0 0.0
    %2725 = vmatprep.subr.mxu0 0.0
    %2726 = vmatpush1.xpose.msra.mxu0 0.0
    %2727 = vmatprep.subr.mxu0 0.0
    %2728 = vmatpush1.xpose.msra.mxu0 0.0
    %2729 = vmatprep.mubr.f32.mxu0 0.0
    %2730 = vmatmul.mubr.f32.gmra.mrb[0].mxu0 %v2661
    %v2731 = vpop.f32.mrb[0].mxu0
    %v2732 = vadd.f32 0.0, %v2731
    %v2733 = vpop.f32.mrb[0].mxu0
    %2734 = vdwg.mxu0
    %v2735 = vsel %vm196, %v2654, -inf
    %2736 = vmax.xlane.f32.xlu0 %v2735
    %v2737 = vpop.xlane.xlu0 %2736
    %v2738 = vsel %vm196, %v2732, -inf
    %2739 = vmax.xlane.f32.xlu0 %v2738
    %v2740 = vpop.xlane.xlu0 %2739
    %v2741 = vsub.f32 %v2654, %v2737
    %v2742 = vsub.f32 %v2732, %v2740
    %v2743 = vmul.f32 %v2741, 1.442695
    %v2744 = vpow.pop %v2743
    %v2745 = vmul.f32 %v2742, 1.442695
    %v2746 = vpow.pop %v2745
    %v2747 = vsel %vm196, %v2744, 0.0
    %2748 = vadd.xlane.f32.xlu0 %v2747
    %v2749 = vpop.xlane.xlu0 %2748
    %v2750 = vsel %vm196, %v2746, 0.0
    %2751 = vadd.xlane.f32.xlu0 %v2750
    %v2752 = vpop.xlane.xlu0 %2751
    %v2753 = vrcp.pop %v2749
    %v2754 = vmul.f32 %v2744, %v2753
    %v2755 = vrcp.pop %v2752
    %v2756 = vmul.f32 %v2746, %v2755
    %2757 = vrot.lane.b32.xlu0 %v1913, 48
    %v2758 = vpop.permute.xlu0 %2757
    %v2761 = vsel %vm196, %v2754, 0
    %2763 = vmatprep.subr.mxu0 0.0
    %2764 = vmatpush1.msra.mxu0 %v2758
    %2765 = vmatprep.subr.mxu0 0.0
    %2766 = vmatpush1.msra.mxu0 0.0
    %2767 = vmatprep.subr.mxu0 0.0
    %2768 = vmatpush1.msra.mxu0 0.0
    %2769 = vmatprep.subr.mxu0 0.0
    %2770 = vmatpush1.msra.mxu0 0.0
    %2771 = vmatprep.subr.mxu0 0.0
    %2772 = vmatpush1.msra.mxu0 0.0
    %2773 = vmatprep.subr.mxu0 0.0
    %2774 = vmatpush1.msra.mxu0 0.0
    %2775 = vmatprep.subr.mxu0 0.0
    %2776 = vmatpush1.msra.mxu0 0.0
    %2777 = vmatprep.subr.mxu0 0.0
    %2778 = vmatpush1.msra.mxu0 0.0
    %2779 = vmatprep.subr.mxu0 0.0
    %2780 = vmatpush1.msra.mxu0 0.0
    %2781 = vmatprep.subr.mxu0 0.0
    %2782 = vmatpush1.msra.mxu0 0.0
    %2783 = vmatprep.subr.mxu0 0.0
    %2784 = vmatpush1.msra.mxu0 0.0
    %2785 = vmatprep.subr.mxu0 0.0
    %2786 = vmatpush1.msra.mxu0 0.0
    %2787 = vmatprep.subr.mxu0 0.0
    %2788 = vmatpush1.msra.mxu0 0.0
    %2789 = vmatprep.subr.mxu0 0.0
    %2790 = vmatpush1.msra.mxu0 0.0
    %2791 = vmatprep.subr.mxu0 0.0
    %2792 = vmatpush1.msra.mxu0 0.0
    %2793 = vmatprep.subr.mxu0 0.0
    %2794 = vmatpush1.msra.mxu0 0.0
    %2795 = vmatprep.subr.mxu0 0.0
    %2796 = vmatpush1.msra.mxu0 0.0
    %2797 = vmatprep.subr.mxu0 0.0
    %2798 = vmatpush1.msra.mxu0 0.0
    %2799 = vmatprep.subr.mxu0 0.0
    %2800 = vmatpush1.msra.mxu0 0.0
    %2801 = vmatprep.subr.mxu0 0.0
    %2802 = vmatpush1.msra.mxu0 0.0
    %2803 = vmatprep.subr.mxu0 0.0
    %2804 = vmatpush1.msra.mxu0 0.0
    %2805 = vmatprep.subr.mxu0 0.0
    %2806 = vmatpush1.msra.mxu0 0.0
    %2807 = vmatprep.subr.mxu0 0.0
    %2808 = vmatpush1.msra.mxu0 0.0
    %2809 = vmatprep.subr.mxu0 0.0
    %2810 = vmatpush1.msra.mxu0 0.0
    %2811 = vmatprep.subr.mxu0 0.0
    %2812 = vmatpush1.msra.mxu0 0.0
    %2813 = vmatprep.subr.mxu0 0.0
    %2814 = vmatpush1.msra.mxu0 0.0
    %2815 = vmatprep.subr.mxu0 0.0
    %2816 = vmatpush1.msra.mxu0 0.0
    %2817 = vmatprep.subr.mxu0 0.0
    %2818 = vmatpush1.msra.mxu0 0.0
    %2819 = vmatprep.subr.mxu0 0.0
    %2820 = vmatpush1.msra.mxu0 0.0
    %2821 = vmatprep.subr.mxu0 0.0
    %2822 = vmatpush1.msra.mxu0 0.0
    %2823 = vmatprep.subr.mxu0 0.0
    %2824 = vmatpush1.msra.mxu0 0.0
    %2825 = vmatprep.subr.mxu0 0.0
    %2826 = vmatpush1.msra.mxu0 0.0
    %2827 = vmatprep.mubr.f32.mxu0 0.0
    %2828 = vmatmul.mubr.f32.gmra.mrb[0].mxu0 %v2761
    %v2829 = vpop.f32.mrb[0].mxu0
    %v2830 = vadd.f32 0.0, %v2829
    %v2831 = vpop.f32.mrb[0].mxu0
    %2832 = vdwg.mxu0
    %2833 = vrot.lane.b32.xlu0 %v1918, 48
    %v2834 = vpop.permute.xlu0 %2833
    %v2837 = vsel %vm196, %v2756, 0
    %2839 = vmatprep.subr.mxu0 0.0
    %2840 = vmatpush1.msra.mxu0 %v2834
    %2841 = vmatprep.subr.mxu0 0.0
    %2842 = vmatpush1.msra.mxu0 0.0
    %2843 = vmatprep.subr.mxu0 0.0
    %2844 = vmatpush1.msra.mxu0 0.0
    %2845 = vmatprep.subr.mxu0 0.0
    %2846 = vmatpush1.msra.mxu0 0.0
    %2847 = vmatprep.subr.mxu0 0.0
    %2848 = vmatpush1.msra.mxu0 0.0
    %2849 = vmatprep.subr.mxu0 0.0
    %2850 = vmatpush1.msra.mxu0 0.0
    %2851 = vmatprep.subr.mxu0 0.0
    %2852 = vmatpush1.msra.mxu0 0.0
    %2853 = vmatprep.subr.mxu0 0.0
    %2854 = vmatpush1.msra.mxu0 0.0
    %2855 = vmatprep.subr.mxu0 0.0
    %2856 = vmatpush1.msra.mxu0 0.0
    %2857 = vmatprep.subr.mxu0 0.0
    %2858 = vmatpush1.msra.mxu0 0.0
    %2859 = vmatprep.subr.mxu0 0.0
    %2860 = vmatpush1.msra.mxu0 0.0
    %2861 = vmatprep.subr.mxu0 0.0
    %2862 = vmatpush1.msra.mxu0 0.0
    %2863 = vmatprep.subr.mxu0 0.0
    %2864 = vmatpush1.msra.mxu0 0.0
    %2865 = vmatprep.subr.mxu0 0.0
    %2866 = vmatpush1.msra.mxu0 0.0
    %2867 = vmatprep.subr.mxu0 0.0
    %2868 = vmatpush1.msra.mxu0 0.0
    %2869 = vmatprep.subr.mxu0 0.0
    %2870 = vmatpush1.msra.mxu0 0.0
    %2871 = vmatprep.subr.mxu0 0.0
    %2872 = vmatpush1.msra.mxu0 0.0
    %2873 = vmatprep.subr.mxu0 0.0
    %2874 = vmatpush1.msra.mxu0 0.0
    %2875 = vmatprep.subr.mxu0 0.0
    %2876 = vmatpush1.msra.mxu0 0.0
    %2877 = vmatprep.subr.mxu0 0.0
    %2878 = vmatpush1.msra.mxu0 0.0
    %2879 = vmatprep.subr.mxu0 0.0
    %2880 = vmatpush1.msra.mxu0 0.0
    %2881 = vmatprep.subr.mxu0 0.0
    %2882 = vmatpush1.msra.mxu0 0.0
    %2883 = vmatprep.subr.mxu0 0.0
    %2884 = vmatpush1.msra.mxu0 0.0
    %2885 = vmatprep.subr.mxu0 0.0
    %2886 = vmatpush1.msra.mxu0 0.0
    %2887 = vmatprep.subr.mxu0 0.0
    %2888 = vmatpush1.msra.mxu0 0.0
    %2889 = vmatprep.subr.mxu0 0.0
    %2890 = vmatpush1.msra.mxu0 0.0
    %2891 = vmatprep.subr.mxu0 0.0
    %2892 = vmatpush1.msra.mxu0 0.0
    %2893 = vmatprep.subr.mxu0 0.0
    %2894 = vmatpush1.msra.mxu0 0.0
    %2895 = vmatprep.subr.mxu0 0.0
    %2896 = vmatpush1.msra.mxu0 0.0
    %2897 = vmatprep.subr.mxu0 0.0
    %2898 = vmatpush1.msra.mxu0 0.0
    %2899 = vmatprep.subr.mxu0 0.0
    %2900 = vmatpush1.msra.mxu0 0.0
    %2901 = vmatprep.subr.mxu0 0.0
    %2902 = vmatpush1.msra.mxu0 0.0
    %2903 = vmatprep.mubr.f32.mxu0 0.0
    %2904 = vmatmul.mubr.f32.gmra.mrb[0].mxu0 %v2837
    %v2905 = vpop.f32.mrb[0].mxu0
    %v2906 = vadd.f32 0.0, %v2905
    %v2907 = vpop.f32.mrb[0].mxu0
    %2908 = vdwg.mxu0
    %2909 = vrot.lane.b32.xlu0 %v1913, 104
    %v2910 = vpop.permute.xlu0 %2909
    %2911 = vrot.lane.b32.xlu0 %v1913, 72
    %v2912 = vpop.permute.xlu0 %2911
    %v2913 = vsel %vm196, %v2910, 0
    %v2915 = vsel %vm196, %v2912, 0
    %2917 = vmatprep.subr.mxu0 0.0
    %2918 = vmatpush1.xpose.msra.mxu0 %v2915
    %2919 = vmatprep.subr.mxu0 0.0
    %2920 = vmatpush1.xpose.msra.mxu0 0.0
    %2921 = vmatprep.subr.mxu0 0.0
    %2922 = vmatpush1.xpose.msra.mxu0 0.0
    %2923 = vmatprep.subr.mxu0 0.0
    %2924 = vmatpush1.xpose.msra.mxu0 0.0
    %2925 = vmatprep.subr.mxu0 0.0
    %2926 = vmatpush1.xpose.msra.mxu0 0.0
    %2927 = vmatprep.subr.mxu0 0.0
    %2928 = vmatpush1.xpose.msra.mxu0 0.0
    %2929 = vmatprep.subr.mxu0 0.0
    %2930 = vmatpush1.xpose.msra.mxu0 0.0
    %2931 = vmatprep.subr.mxu0 0.0
    %2932 = vmatpush1.xpose.msra.mxu0 0.0
    %2933 = vmatprep.subr.mxu0 0.0
    %2934 = vmatpush1.xpose.msra.mxu0 0.0
    %2935 = vmatprep.subr.mxu0 0.0
    %2936 = vmatpush1.xpose.msra.mxu0 0.0
    %2937 = vmatprep.subr.mxu0 0.0
    %2938 = vmatpush1.xpose.msra.mxu0 0.0
    %2939 = vmatprep.subr.mxu0 0.0
    %2940 = vmatpush1.xpose.msra.mxu0 0.0
    %2941 = vmatprep.subr.mxu0 0.0
    %2942 = vmatpush1.xpose.msra.mxu0 0.0
    %2943 = vmatprep.subr.mxu0 0.0
    %2944 = vmatpush1.xpose.msra.mxu0 0.0
    %2945 = vmatprep.subr.mxu0 0.0
    %2946 = vmatpush1.xpose.msra.mxu0 0.0
    %2947 = vmatprep.subr.mxu0 0.0
    %2948 = vmatpush1.xpose.msra.mxu0 0.0
    %2949 = vmatprep.subr.mxu0 0.0
    %2950 = vmatpush1.xpose.msra.mxu0 0.0
    %2951 = vmatprep.subr.mxu0 0.0
    %2952 = vmatpush1.xpose.msra.mxu0 0.0
    %2953 = vmatprep.subr.mxu0 0.0
    %2954 = vmatpush1.xpose.msra.mxu0 0.0
    %2955 = vmatprep.subr.mxu0 0.0
    %2956 = vmatpush1.xpose.msra.mxu0 0.0
    %2957 = vmatprep.subr.mxu0 0.0
    %2958 = vmatpush1.xpose.msra.mxu0 0.0
    %2959 = vmatprep.subr.mxu0 0.0
    %2960 = vmatpush1.xpose.msra.mxu0 0.0
    %2961 = vmatprep.subr.mxu0 0.0
    %2962 = vmatpush1.xpose.msra.mxu0 0.0
    %2963 = vmatprep.subr.mxu0 0.0
    %2964 = vmatpush1.xpose.msra.mxu0 0.0
    %2965 = vmatprep.subr.mxu0 0.0
    %2966 = vmatpush1.xpose.msra.mxu0 0.0
    %2967 = vmatprep.subr.mxu0 0.0
    %2968 = vmatpush1.xpose.msra.mxu0 0.0
    %2969 = vmatprep.subr.mxu0 0.0
    %2970 = vmatpush1.xpose.msra.mxu0 0.0
    %2971 = vmatprep.subr.mxu0 0.0
    %2972 = vmatpush1.xpose.msra.mxu0 0.0
    %2973 = vmatprep.subr.mxu0 0.0
    %2974 = vmatpush1.xpose.msra.mxu0 0.0
    %2975 = vmatprep.subr.mxu0 0.0
    %2976 = vmatpush1.xpose.msra.mxu0 0.0
    %2977 = vmatprep.subr.mxu0 0.0
    %2978 = vmatpush1.xpose.msra.mxu0 0.0
    %2979 = vmatprep.subr.mxu0 0.0
    %2980 = vmatpush1.xpose.msra.mxu0 0.0
    %2981 = vmatprep.mubr.f32.mxu0 0.0
    %2982 = vmatmul.mubr.f32.gmra.mrb[0].mxu0 %v2913
    %v2983 = vpop.f32.mrb[0].mxu0
    %v2984 = vadd.f32 0.0, %v2983
    %v2985 = vpop.f32.mrb[0].mxu0
    %2986 = vdwg.mxu0
    %2987 = vrot.lane.b32.xlu0 %v1918, 104
    %v2988 = vpop.permute.xlu0 %2987
    %2989 = vrot.lane.b32.xlu0 %v1918, 72
    %v2990 = vpop.permute.xlu0 %2989
    %v2991 = vsel %vm196, %v2988, 0
    %v2993 = vsel %vm196, %v2990, 0
    %2995 = vmatprep.subr.mxu0 0.0
    %2996 = vmatpush1.xpose.msra.mxu0 %v2993
    %2997 = vmatprep.subr.mxu0 0.0
    %2998 = vmatpush1.xpose.msra.mxu0 0.0
    %2999 = vmatprep.subr.mxu0 0.0
    %3000 = vmatpush1.xpose.msra.mxu0 0.0
    %3001 = vmatprep.subr.mxu0 0.0
    %3002 = vmatpush1.xpose.msra.mxu0 0.0
    %3003 = vmatprep.subr.mxu0 0.0
    %3004 = vmatpush1.xpose.msra.mxu0 0.0
    %3005 = vmatprep.subr.mxu0 0.0
    %3006 = vmatpush1.xpose.msra.mxu0 0.0
    %3007 = vmatprep.subr.mxu0 0.0
    %3008 = vmatpush1.xpose.msra.mxu0 0.0
    %3009 = vmatprep.subr.mxu0 0.0
    %3010 = vmatpush1.xpose.msra.mxu0 0.0
    %3011 = vmatprep.subr.mxu0 0.0
    %3012 = vmatpush1.xpose.msra.mxu0 0.0
    %3013 = vmatprep.subr.mxu0 0.0
    %3014 = vmatpush1.xpose.msra.mxu0 0.0
    %3015 = vmatprep.subr.mxu0 0.0
    %3016 = vmatpush1.xpose.msra.mxu0 0.0
    %3017 = vmatprep.subr.mxu0 0.0
    %3018 = vmatpush1.xpose.msra.mxu0 0.0
    %3019 = vmatprep.subr.mxu0 0.0
    %3020 = vmatpush1.xpose.msra.mxu0 0.0
    %3021 = vmatprep.subr.mxu0 0.0
    %3022 = vmatpush1.xpose.msra.mxu0 0.0
    %3023 = vmatprep.subr.mxu0 0.0
    %3024 = vmatpush1.xpose.msra.mxu0 0.0
    %3025 = vmatprep.subr.mxu0 0.0
    %3026 = vmatpush1.xpose.msra.mxu0 0.0
    %3027 = vmatprep.subr.mxu0 0.0
    %3028 = vmatpush1.xpose.msra.mxu0 0.0
    %3029 = vmatprep.subr.mxu0 0.0
    %3030 = vmatpush1.xpose.msra.mxu0 0.0
    %3031 = vmatprep.subr.mxu0 0.0
    %3032 = vmatpush1.xpose.msra.mxu0 0.0
    %3033 = vmatprep.subr.mxu0 0.0
    %3034 = vmatpush1.xpose.msra.mxu0 0.0
    %3035 = vmatprep.subr.mxu0 0.0
    %3036 = vmatpush1.xpose.msra.mxu0 0.0
    %3037 = vmatprep.subr.mxu0 0.0
    %3038 = vmatpush1.xpose.msra.mxu0 0.0
    %3039 = vmatprep.subr.mxu0 0.0
    %3040 = vmatpush1.xpose.msra.mxu0 0.0
    %3041 = vmatprep.subr.mxu0 0.0
    %3042 = vmatpush1.xpose.msra.mxu0 0.0
    %3043 = vmatprep.subr.mxu0 0.0
    %3044 = vmatpush1.xpose.msra.mxu0 0.0
    %3045 = vmatprep.subr.mxu0 0.0
    %3046 = vmatpush1.xpose.msra.mxu0 0.0
    %3047 = vmatprep.subr.mxu0 0.0
    %3048 = vmatpush1.xpose.msra.mxu0 0.0
    %3049 = vmatprep.subr.mxu0 0.0
    %3050 = vmatpush1.xpose.msra.mxu0 0.0
    %3051 = vmatprep.subr.mxu0 0.0
    %3052 = vmatpush1.xpose.msra.mxu0 0.0
    %3053 = vmatprep.subr.mxu0 0.0
    %3054 = vmatpush1.xpose.msra.mxu0 0.0
    %3055 = vmatprep.subr.mxu0 0.0
    %3056 = vmatpush1.xpose.msra.mxu0 0.0
    %3057 = vmatprep.subr.mxu0 0.0
    %3058 = vmatpush1.xpose.msra.mxu0 0.0
    %3059 = vmatprep.mubr.f32.mxu0 0.0
    %3060 = vmatmul.mubr.f32.gmra.mrb[0].mxu0 %v2991
    %v3061 = vpop.f32.mrb[0].mxu0
    %v3062 = vadd.f32 0.0, %v3061
    %v3063 = vpop.f32.mrb[0].mxu0
    %3064 = vdwg.mxu0
    %v3065 = vsel %vm196, %v2984, -inf
    %3066 = vmax.xlane.f32.xlu0 %v3065
    %v3067 = vpop.xlane.xlu0 %3066
    %v3068 = vsel %vm196, %v3062, -inf
    %3069 = vmax.xlane.f32.xlu0 %v3068
    %v3070 = vpop.xlane.xlu0 %3069
    %v3071 = vsub.f32 %v2984, %v3067
    %v3072 = vsub.f32 %v3062, %v3070
    %v3073 = vmul.f32 %v3071, 1.442695
    %v3074 = vpow.pop %v3073
    %v3075 = vmul.f32 %v3072, 1.442695
    %v3076 = vpow.pop %v3075
    %v3077 = vsel %vm196, %v3074, 0.0
    %3078 = vadd.xlane.f32.xlu0 %v3077
    %v3079 = vpop.xlane.xlu0 %3078
    %v3080 = vsel %vm196, %v3076, 0.0
    %3081 = vadd.xlane.f32.xlu0 %v3080
    %v3082 = vpop.xlane.xlu0 %3081
    %v3083 = vrcp.pop %v3079
    %v3084 = vmul.f32 %v3074, %v3083
    %v3085 = vrcp.pop %v3082
    %v3086 = vmul.f32 %v3076, %v3085
    %3087 = vrot.lane.b32.xlu0 %v1913, 40
    %v3088 = vpop.permute.xlu0 %3087
    %v3091 = vsel %vm196, %v3084, 0
    %3093 = vmatprep.subr.mxu0 0.0
    %3094 = vmatpush1.msra.mxu0 %v3088
    %3095 = vmatprep.subr.mxu0 0.0
    %3096 = vmatpush1.msra.mxu0 0.0
    %3097 = vmatprep.subr.mxu0 0.0
    %3098 = vmatpush1.msra.mxu0 0.0
    %3099 = vmatprep.subr.mxu0 0.0
    %3100 = vmatpush1.msra.mxu0 0.0
    %3101 = vmatprep.subr.mxu0 0.0
    %3102 = vmatpush1.msra.mxu0 0.0
    %3103 = vmatprep.subr.mxu0 0.0
    %3104 = vmatpush1.msra.mxu0 0.0
    %3105 = vmatprep.subr.mxu0 0.0
    %3106 = vmatpush1.msra.mxu0 0.0
    %3107 = vmatprep.subr.mxu0 0.0
    %3108 = vmatpush1.msra.mxu0 0.0
    %3109 = vmatprep.subr.mxu0 0.0
    %3110 = vmatpush1.msra.mxu0 0.0
    %3111 = vmatprep.subr.mxu0 0.0
    %3112 = vmatpush1.msra.mxu0 0.0
    %3113 = vmatprep.subr.mxu0 0.0
    %3114 = vmatpush1.msra.mxu0 0.0
    %3115 = vmatprep.subr.mxu0 0.0
    %3116 = vmatpush1.msra.mxu0 0.0
    %3117 = vmatprep.subr.mxu0 0.0
    %3118 = vmatpush1.msra.mxu0 0.0
    %3119 = vmatprep.subr.mxu0 0.0
    %3120 = vmatpush1.msra.mxu0 0.0
    %3121 = vmatprep.subr.mxu0 0.0
    %3122 = vmatpush1.msra.mxu0 0.0
    %3123 = vmatprep.subr.mxu0 0.0
    %3124 = vmatpush1.msra.mxu0 0.0
    %3125 = vmatprep.subr.mxu0 0.0
    %3126 = vmatpush1.msra.mxu0 0.0
    %3127 = vmatprep.subr.mxu0 0.0
    %3128 = vmatpush1.msra.mxu0 0.0
    %3129 = vmatprep.subr.mxu0 0.0
    %3130 = vmatpush1.msra.mxu0 0.0
    %3131 = vmatprep.subr.mxu0 0.0
    %3132 = vmatpush1.msra.mxu0 0.0
    %3133 = vmatprep.subr.mxu0 0.0
    %3134 = vmatpush1.msra.mxu0 0.0
    %3135 = vmatprep.subr.mxu0 0.0
    %3136 = vmatpush1.msra.mxu0 0.0
    %3137 = vmatprep.subr.mxu0 0.0
    %3138 = vmatpush1.msra.mxu0 0.0
    %3139 = vmatprep.subr.mxu0 0.0
    %3140 = vmatpush1.msra.mxu0 0.0
    %3141 = vmatprep.subr.mxu0 0.0
    %3142 = vmatpush1.msra.mxu0 0.0
    %3143 = vmatprep.subr.mxu0 0.0
    %3144 = vmatpush1.msra.mxu0 0.0
    %3145 = vmatprep.subr.mxu0 0.0
    %3146 = vmatpush1.msra.mxu0 0.0
    %3147 = vmatprep.subr.mxu0 0.0
    %3148 = vmatpush1.msra.mxu0 0.0
    %3149 = vmatprep.subr.mxu0 0.0
    %3150 = vmatpush1.msra.mxu0 0.0
    %3151 = vmatprep.subr.mxu0 0.0
    %3152 = vmatpush1.msra.mxu0 0.0
    %3153 = vmatprep.subr.mxu0 0.0
    %3154 = vmatpush1.msra.mxu0 0.0
    %3155 = vmatprep.subr.mxu0 0.0
    %3156 = vmatpush1.msra.mxu0 0.0
    %3157 = vmatprep.mubr.f32.mxu0 0.0
    %3158 = vmatmul.mubr.f32.gmra.mrb[0].mxu0 %v3091
    %v3159 = vpop.f32.mrb[0].mxu0
    %v3160 = vadd.f32 0.0, %v3159
    %v3161 = vpop.f32.mrb[0].mxu0
    %3162 = vdwg.mxu0
    %3163 = vrot.lane.b32.xlu0 %v1918, 40
    %v3164 = vpop.permute.xlu0 %3163
    %v3167 = vsel %vm196, %v3086, 0
    %3169 = vmatprep.subr.mxu0 0.0
    %3170 = vmatpush1.msra.mxu0 %v3164
    %3171 = vmatprep.subr.mxu0 0.0
    %3172 = vmatpush1.msra.mxu0 0.0
    %3173 = vmatprep.subr.mxu0 0.0
    %3174 = vmatpush1.msra.mxu0 0.0
    %3175 = vmatprep.subr.mxu0 0.0
    %3176 = vmatpush1.msra.mxu0 0.0
    %3177 = vmatprep.subr.mxu0 0.0
    %3178 = vmatpush1.msra.mxu0 0.0
    %3179 = vmatprep.subr.mxu0 0.0
    %3180 = vmatpush1.msra.mxu0 0.0
    %3181 = vmatprep.subr.mxu0 0.0
    %3182 = vmatpush1.msra.mxu0 0.0
    %3183 = vmatprep.subr.mxu0 0.0
    %3184 = vmatpush1.msra.mxu0 0.0
    %3185 = vmatprep.subr.mxu0 0.0
    %3186 = vmatpush1.msra.mxu0 0.0
    %3187 = vmatprep.subr.mxu0 0.0
    %3188 = vmatpush1.msra.mxu0 0.0
    %3189 = vmatprep.subr.mxu0 0.0
    %3190 = vmatpush1.msra.mxu0 0.0
    %3191 = vmatprep.subr.mxu0 0.0
    %3192 = vmatpush1.msra.mxu0 0.0
    %3193 = vmatprep.subr.mxu0 0.0
    %3194 = vmatpush1.msra.mxu0 0.0
    %3195 = vmatprep.subr.mxu0 0.0
    %3196 = vmatpush1.msra.mxu0 0.0
    %3197 = vmatprep.subr.mxu0 0.0
    %3198 = vmatpush1.msra.mxu0 0.0
    %3199 = vmatprep.subr.mxu0 0.0
    %3200 = vmatpush1.msra.mxu0 0.0
    %3201 = vmatprep.subr.mxu0 0.0
    %3202 = vmatpush1.msra.mxu0 0.0
    %3203 = vmatprep.subr.mxu0 0.0
    %3204 = vmatpush1.msra.mxu0 0.0
    %3205 = vmatprep.subr.mxu0 0.0
    %3206 = vmatpush1.msra.mxu0 0.0
    %3207 = vmatprep.subr.mxu0 0.0
    %3208 = vmatpush1.msra.mxu0 0.0
    %3209 = vmatprep.subr.mxu0 0.0
    %3210 = vmatpush1.msra.mxu0 0.0
    %3211 = vmatprep.subr.mxu0 0.0
    %3212 = vmatpush1.msra.mxu0 0.0
    %3213 = vmatprep.subr.mxu0 0.0
    %3214 = vmatpush1.msra.mxu0 0.0
    %3215 = vmatprep.subr.mxu0 0.0
    %3216 = vmatpush1.msra.mxu0 0.0
    %3217 = vmatprep.subr.mxu0 0.0
    %3218 = vmatpush1.msra.mxu0 0.0
    %3219 = vmatprep.subr.mxu0 0.0
    %3220 = vmatpush1.msra.mxu0 0.0
    %3221 = vmatprep.subr.mxu0 0.0
    %3222 = vmatpush1.msra.mxu0 0.0
    %3223 = vmatprep.subr.mxu0 0.0
    %3224 = vmatpush1.msra.mxu0 0.0
    %3225 = vmatprep.subr.mxu0 0.0
    %3226 = vmatpush1.msra.mxu0 0.0
    %3227 = vmatprep.subr.mxu0 0.0
    %3228 = vmatpush1.msra.mxu0 0.0
    %3229 = vmatprep.subr.mxu0 0.0
    %3230 = vmatpush1.msra.mxu0 0.0
    %3231 = vmatprep.subr.mxu0 0.0
    %3232 = vmatpush1.msra.mxu0 0.0
    %3233 = vmatprep.mubr.f32.mxu0 0.0
    %3234 = vmatmul.mubr.f32.gmra.mrb[0].mxu0 %v3167
    %v3235 = vpop.f32.mrb[0].mxu0
    %v3236 = vadd.f32 0.0, %v3235
    %v3237 = vpop.f32.mrb[0].mxu0
    %3238 = vdwg.mxu0
    %3241 = vrot.lane.b32.xlu0 %v2500, 8
    %v3242 = vpop.permute.xlu0 %3241
    %3243 = vrot.lane.b32.xlu0 %v2576, 8
    %v3244 = vpop.permute.xlu0 %3243
    %3249 = vrot.lane.b32.xlu0 %v2830, 16
    %v3250 = vpop.permute.xlu0 %3249
    %3251 = vrot.lane.b32.xlu0 %v2906, 16
    %v3252 = vpop.permute.xlu0 %3251
    %3257 = vrot.lane.b32.xlu0 %v3160, 24
    %v3258 = vpop.permute.xlu0 %3257
    %3259 = vrot.lane.b32.xlu0 %v3236, 24
    %v3260 = vpop.permute.xlu0 %3259
    %v3263 = vsel %vm196, %v2170, %v3242
    %v3264 = vsel %vm196, %v2246, %v3244
    %v3265 = vsel %vm1538, %v3263, %v3250
    %v3266 = vsel %vm1538, %v3264, %v3252
    %v3267 = vsel %vm1541, %v3265, %v3258
    %v3268 = vsel %vm1541, %v3266, %v3260
    %v3269 = vadd.f32 %v3267, %v1825
    %v3270 = vadd.f32 %v3268, %v1826
    %s3271 = scalar_lea.vmem %s6, 1
    %v3272 = vld [vmem:[%s3271] sm:$0x1]
    %s3273 = scalar_lea.vmem %s7, 1
    %v3274 = vld [vmem:[%s3273] sm:$0x1]
    %v3275 = vsel %vm57, %v3269, 0.0
    %3276 = vadd.xlane.f32.xlu0 %v3275
    %v3277 = vpop.xlane.xlu0 %3276
    %v3278 = vsel %vm57, %v3270, 0.0
    %3279 = vadd.xlane.f32.xlu0 %v3278
    %v3280 = vpop.xlane.xlu0 %3279
    %v3281 = vmul.f32 %v3277, %v64
    %v3282 = vmul.f32 %v3280, %v64
    %v3283 = vsub.f32 %v3269, %v3281
    %v3284 = vsub.f32 %v3270, %v3282
    %v3285 = vmul.f32 %v3283, %v3283
    %v3286 = vmul.f32 %v3284, %v3284
    %v3287 = vsel %vm57, %v3285, 0.0
    %3288 = vadd.xlane.f32.xlu0 %v3287
    %v3289 = vpop.xlane.xlu0 %3288
    %v3290 = vsel %vm57, %v3286, 0.0
    %3291 = vadd.xlane.f32.xlu0 %v3290
    %v3292 = vpop.xlane.xlu0 %3291
    %v3293 = vmul.f32 %v3289, %v64
    %v3294 = vmul.f32 %v3292, %v64
    %v3295 = vadd.f32 %v3293, 1e-05
    %v3296 = vadd.f32 %v3294, 1e-05
    %v3297 = vrsqrt.pop %v3295
    %v3298 = vrsqrt.pop %v3296
    %v3299 = vmul.f32 %v3283, %v3297
    %v3300 = vmul.f32 %v3284, %v3298
    %v3302 = vlaneseq
    %v3303 = vshrl.u32 %v3302, 7
    %v3304 = vsub.s32 0, %v3303
    %v3305 = vrot.slane %v3272, %v3304
    %v3307 = vmul.f32 %v3299, %v3305
    %v3308 = vmul.f32 %v3300, %v3305
    %v3310 = vlaneseq
    %v3311 = vshrl.u32 %v3310, 7
    %v3312 = vsub.s32 0, %v3311
    %v3313 = vrot.slane %v3274, %v3312
    %v3315 = vadd.f32 %v3307, %v3313
    %v3316 = vadd.f32 %v3308, %v3313
    %s3317 = scalar_lea.vmem %s8, 32
    %v3318 = vld [vmem:[%s3317] sm:$0xff]
    %v3319 = vld [vmem:[%s3317 + $0x8] sm:$0xff]
    %v3320 = vld [vmem:[%s3317 + $0x10] sm:$0xff]
    %v3321 = vld [vmem:[%s3317 + $0x18] sm:$0xff]
    %s3322 = scalar_lea.vmem %s9, 1
    %v3323 = vld [vmem:[%s3322] sm:$0x1]
    %v3325 = vlaneseq
    %v3326 = vshrl.u32 %v3325, 7
    %v3327 = vsub.s32 0, %v3326
    %v3328 = vrot.slane %v3323, %v3327
    %v3331 = vsel %vm57, %v3315, 0
    %v3334 = vsel %vm57, %v3316, 0
    %3336 = vmatprep.subr.mxu0 0.0
    %3337 = vmatpush1.msra.mxu0 %v3318
    %3338 = vmatprep.subr.mxu0 0.0
    %3339 = vmatpush1.msra.mxu0 %v3319
    %3340 = vmatprep.subr.mxu0 0.0
    %3341 = vmatpush1.msra.mxu0 %v3320
    %3342 = vmatprep.subr.mxu0 0.0
    %3343 = vmatpush1.msra.mxu0 %v3321
    %3344 = vmatprep.subr.mxu0 0.0
    %3345 = vmatpush1.msra.mxu0 0.0
    %3346 = vmatprep.subr.mxu0 0.0
    %3347 = vmatpush1.msra.mxu0 0.0
    %3348 = vmatprep.subr.mxu0 0.0
    %3349 = vmatpush1.msra.mxu0 0.0
    %3350 = vmatprep.subr.mxu0 0.0
    %3351 = vmatpush1.msra.mxu0 0.0
    %3352 = vmatprep.subr.mxu0 0.0
    %3353 = vmatpush1.msra.mxu0 0.0
    %3354 = vmatprep.subr.mxu0 0.0
    %3355 = vmatpush1.msra.mxu0 0.0
    %3356 = vmatprep.subr.mxu0 0.0
    %3357 = vmatpush1.msra.mxu0 0.0
    %3358 = vmatprep.subr.mxu0 0.0
    %3359 = vmatpush1.msra.mxu0 0.0
    %3360 = vmatprep.subr.mxu0 0.0
    %3361 = vmatpush1.msra.mxu0 0.0
    %3362 = vmatprep.subr.mxu0 0.0
    %3363 = vmatpush1.msra.mxu0 0.0
    %3364 = vmatprep.subr.mxu0 0.0
    %3365 = vmatpush1.msra.mxu0 0.0
    %3366 = vmatprep.subr.mxu0 0.0
    %3367 = vmatpush1.msra.mxu0 0.0
    %3368 = vmatprep.subr.mxu0 0.0
    %3369 = vmatpush1.msra.mxu0 0.0
    %3370 = vmatprep.subr.mxu0 0.0
    %3371 = vmatpush1.msra.mxu0 0.0
    %3372 = vmatprep.subr.mxu0 0.0
    %3373 = vmatpush1.msra.mxu0 0.0
    %3374 = vmatprep.subr.mxu0 0.0
    %3375 = vmatpush1.msra.mxu0 0.0
    %3376 = vmatprep.subr.mxu0 0.0
    %3377 = vmatpush1.msra.mxu0 0.0
    %3378 = vmatprep.subr.mxu0 0.0
    %3379 = vmatpush1.msra.mxu0 0.0
    %3380 = vmatprep.subr.mxu0 0.0
    %3381 = vmatpush1.msra.mxu0 0.0
    %3382 = vmatprep.subr.mxu0 0.0
    %3383 = vmatpush1.msra.mxu0 0.0
    %3384 = vmatprep.subr.mxu0 0.0
    %3385 = vmatpush1.msra.mxu0 0.0
    %3386 = vmatprep.subr.mxu0 0.0
    %3387 = vmatpush1.msra.mxu0 0.0
    %3388 = vmatprep.subr.mxu0 0.0
    %3389 = vmatpush1.msra.mxu0 0.0
    %3390 = vmatprep.subr.mxu0 0.0
    %3391 = vmatpush1.msra.mxu0 0.0
    %3392 = vmatprep.subr.mxu0 0.0
    %3393 = vmatpush1.msra.mxu0 0.0
    %3394 = vmatprep.subr.mxu0 0.0
    %3395 = vmatpush1.msra.mxu0 0.0
    %3396 = vmatprep.subr.mxu0 0.0
    %3397 = vmatpush1.msra.mxu0 0.0
    %3398 = vmatprep.subr.mxu0 0.0
    %3399 = vmatpush1.msra.mxu0 0.0
    %3400 = vmatprep.mubr.f32.mxu0 0.0
    %3401 = vmatmul.mubr.f32.gmra.mrb[0].mxu0 %v3331
    %v3402 = vpop.f32.mrb[0].mxu0
    %v3403 = vadd.f32 %v3328, %v3402
    %v3404 = vpop.f32.mrb[0].mxu0
    %3405 = vmatprep.mubr.f32.mxu0 0.0
    %3406 = vmatmul.mubr.f32.gmra.mrb[0].mxu0 %v3334
    %v3407 = vpop.f32.mrb[0].mxu0
    %v3408 = vadd.f32 %v3328, %v3407
    %v3409 = vpop.f32.mrb[0].mxu0
    %3410 = vdwg.mxu0
    %v3411 = vmax.f32 %v3403, 0.0
    %v3412 = vmax.f32 %v3408, 0.0
    %s3413 = scalar_lea.vmem %s10, 64
    %v3414 = vld [vmem:[%s3413] sm:$0xff]
    %v3415 = vld [vmem:[%s3413 + $0x8] sm:$0xff]
    %v3416 = vld [vmem:[%s3413 + $0x10] sm:$0xff]
    %v3417 = vld [vmem:[%s3413 + $0x18] sm:$0xff]
    %v3418 = vld [vmem:[%s3413 + $0x20] sm:$0xff]
    %v3419 = vld [vmem:[%s3413 + $0x28] sm:$0xff]
    %v3420 = vld [vmem:[%s3413 + $0x30] sm:$0xff]
    %v3421 = vld [vmem:[%s3413 + $0x38] sm:$0xff]
    %s3422 = scalar_lea.vmem %s11, 1
    %v3423 = vld [vmem:[%s3422] sm:$0x1]
    %v3425 = vlaneseq
    %v3426 = vshrl.u32 %v3425, 7
    %v3427 = vsub.s32 0, %v3426
    %v3428 = vrot.slane %v3423, %v3427
    %v3431 = vsel %vm1699, %v3411, 0
    %v3434 = vsel %vm1699, %v3412, 0
    %3436 = vmatprep.subr.mxu0 0.0
    %3437 = vmatpush1.msra.mxu0 %v3414
    %3438 = vmatprep.subr.mxu0 0.0
    %3439 = vmatpush1.msra.mxu0 %v3415
    %3440 = vmatprep.subr.mxu0 0.0
    %3441 = vmatpush1.msra.mxu0 %v3416
    %3442 = vmatprep.subr.mxu0 0.0
    %3443 = vmatpush1.msra.mxu0 %v3417
    %3444 = vmatprep.subr.mxu0 0.0
    %3445 = vmatpush1.msra.mxu0 %v3418
    %3446 = vmatprep.subr.mxu0 0.0
    %3447 = vmatpush1.msra.mxu0 %v3419
    %3448 = vmatprep.subr.mxu0 0.0
    %3449 = vmatpush1.msra.mxu0 %v3420
    %3450 = vmatprep.subr.mxu0 0.0
    %3451 = vmatpush1.msra.mxu0 %v3421
    %3452 = vmatprep.subr.mxu0 0.0
    %3453 = vmatpush1.msra.mxu0 0.0
    %3454 = vmatprep.subr.mxu0 0.0
    %3455 = vmatpush1.msra.mxu0 0.0
    %3456 = vmatprep.subr.mxu0 0.0
    %3457 = vmatpush1.msra.mxu0 0.0
    %3458 = vmatprep.subr.mxu0 0.0
    %3459 = vmatpush1.msra.mxu0 0.0
    %3460 = vmatprep.subr.mxu0 0.0
    %3461 = vmatpush1.msra.mxu0 0.0
    %3462 = vmatprep.subr.mxu0 0.0
    %3463 = vmatpush1.msra.mxu0 0.0
    %3464 = vmatprep.subr.mxu0 0.0
    %3465 = vmatpush1.msra.mxu0 0.0
    %3466 = vmatprep.subr.mxu0 0.0
    %3467 = vmatpush1.msra.mxu0 0.0
    %3468 = vmatprep.subr.mxu0 0.0
    %3469 = vmatpush1.msra.mxu0 0.0
    %3470 = vmatprep.subr.mxu0 0.0
    %3471 = vmatpush1.msra.mxu0 0.0
    %3472 = vmatprep.subr.mxu0 0.0
    %3473 = vmatpush1.msra.mxu0 0.0
    %3474 = vmatprep.subr.mxu0 0.0
    %3475 = vmatpush1.msra.mxu0 0.0
    %3476 = vmatprep.subr.mxu0 0.0
    %3477 = vmatpush1.msra.mxu0 0.0
    %3478 = vmatprep.subr.mxu0 0.0
    %3479 = vmatpush1.msra.mxu0 0.0
    %3480 = vmatprep.subr.mxu0 0.0
    %3481 = vmatpush1.msra.mxu0 0.0
    %3482 = vmatprep.subr.mxu0 0.0
    %3483 = vmatpush1.msra.mxu0 0.0
    %3484 = vmatprep.subr.mxu0 0.0
    %3485 = vmatpush1.msra.mxu0 0.0
    %3486 = vmatprep.subr.mxu0 0.0
    %3487 = vmatpush1.msra.mxu0 0.0
    %3488 = vmatprep.subr.mxu0 0.0
    %3489 = vmatpush1.msra.mxu0 0.0
    %3490 = vmatprep.subr.mxu0 0.0
    %3491 = vmatpush1.msra.mxu0 0.0
    %3492 = vmatprep.subr.mxu0 0.0
    %3493 = vmatpush1.msra.mxu0 0.0
    %3494 = vmatprep.subr.mxu0 0.0
    %3495 = vmatpush1.msra.mxu0 0.0
    %3496 = vmatprep.subr.mxu0 0.0
    %3497 = vmatpush1.msra.mxu0 0.0
    %3498 = vmatprep.subr.mxu0 0.0
    %3499 = vmatpush1.msra.mxu0 0.0
    %3500 = vmatprep.mubr.f32.mxu0 0.0
    %3501 = vmatmul.mubr.f32.gmra.mrb[0].mxu0 %v3431
    %v3502 = vpop.f32.mrb[0].mxu0
    %v3503 = vadd.f32 %v3428, %v3502
    %v3504 = vpop.f32.mrb[0].mxu0
    %3505 = vmatprep.mubr.f32.mxu0 0.0
    %3506 = vmatmul.mubr.f32.gmra.mrb[0].mxu0 %v3434
    %v3507 = vpop.f32.mrb[0].mxu0
    %v3508 = vadd.f32 %v3428, %v3507
    %v3509 = vpop.f32.mrb[0].mxu0
    %3510 = vdwg.mxu0
    %v3511 = vadd.f32 %v3503, %v3315
    %v3512 = vadd.f32 %v3508, %v3316
    %s3513 = scalar_lea.vmem %s12, 1
    %v3514 = vld [vmem:[%s3513] sm:$0x1]
    %s3515 = scalar_lea.vmem %s13, 1
    %v3516 = vld [vmem:[%s3515] sm:$0x1]
    %v3517 = vsel %vm57, %v3511, 0.0
    %3518 = vadd.xlane.f32.xlu0 %v3517
    %v3519 = vpop.xlane.xlu0 %3518
    %v3520 = vsel %vm57, %v3512, 0.0
    %3521 = vadd.xlane.f32.xlu0 %v3520
    %v3522 = vpop.xlane.xlu0 %3521
    %v3523 = vmul.f32 %v3519, %v64
    %v3524 = vmul.f32 %v3522, %v64
    %v3525 = vsub.f32 %v3511, %v3523
    %v3526 = vsub.f32 %v3512, %v3524
    %v3527 = vmul.f32 %v3525, %v3525
    %v3528 = vmul.f32 %v3526, %v3526
    %v3529 = vsel %vm57, %v3527, 0.0
    %3530 = vadd.xlane.f32.xlu0 %v3529
    %v3531 = vpop.xlane.xlu0 %3530
    %v3532 = vsel %vm57, %v3528, 0.0
    %3533 = vadd.xlane.f32.xlu0 %v3532
    %v3534 = vpop.xlane.xlu0 %3533
    %v3535 = vmul.f32 %v3531, %v64
    %v3536 = vmul.f32 %v3534, %v64
    %v3537 = vadd.f32 %v3535, 1e-05
    %v3538 = vadd.f32 %v3536, 1e-05
    %v3539 = vrsqrt.pop %v3537
    %v3540 = vrsqrt.pop %v3538
    %v3541 = vmul.f32 %v3525, %v3539
    %v3542 = vmul.f32 %v3526, %v3540
    %v3544 = vlaneseq
    %v3545 = vshrl.u32 %v3544, 7
    %v3546 = vsub.s32 0, %v3545
    %v3547 = vrot.slane %v3514, %v3546
    %v3549 = vmul.f32 %v3541, %v3547
    %v3550 = vmul.f32 %v3542, %v3547
    %v3552 = vlaneseq
    %v3553 = vshrl.u32 %v3552, 7
    %v3554 = vsub.s32 0, %v3553
    %v3555 = vrot.slane %v3516, %v3554
    %v3557 = vadd.f32 %v3549, %v3555
    %v3558 = vadd.f32 %v3550, %v3555
    %3559 = vst.msk [vmem:[#allocation2] sm:$0xff] %vm57, %v3557
    %3560 = vst.msk [vmem:[#allocation2 + $0x8] sm:$0xff] %vm57, %v3558
    // Predicated region
    $region58: #{encoder_forward.1} parent=1 // pred_check
      _
    $region59: #{encoder_forward.1} parent=1 // pred_check_branch
      %3562 = sbr.rel (0) target = $region61
    $region60: #{encoder_forward.1} parent=1 // pred_region
      %s3564 = ssub.s32 256, 256
      %3565 = vsyncadd [#allocation3], %s3564
      %s3566 = sshll.u32 [#allocation2], 4
      %s3567 = int_to_ptr.vmem [resolvable:$true] %s3566
      %3572 = dma.vmem_to_hbm [thread:$0]  %s3567, 256, %s14, [#allocation3], 128, 128, 8
    $region61: #{encoder_forward.1} parent=1 // pred_fallthru
      _
    // Predicated region
    $region62: #{encoder_forward.1} parent=1 // pred_check
      _
    $region63: #{encoder_forward.1} parent=1 // pred_check_branch
      %3574 = sbr.rel (0) target = $region65
    $region64: #{encoder_forward.1} parent=1 // pred_region
      %3575 = dma.done [#allocation3], 256
    $region65: #{encoder_forward.1} parent=1 // pred_fallthru
      _
    %3576 = vsyncpa [#allocation3], 1

</llo_original>
